<compile_context>
chip_gen: v7x
topology: tpu7x:2x2x1
jax: 0.10.0
libtpu: 0.0.40
codegen_flags: <defaults>
</compile_context>

<pallas_src>
import numpy as np
import jax
import jax.numpy as jnp
from jax.experimental import pallas as pl
from jax.experimental.pallas import tpu as pltpu


# ------------------------------- Pallas kernel -------------------------------

def _make_unet_up_kernel(hi, wi, cin, cout, cs, eps):
    """Fused ConvTranspose(3,2) + InstanceNorm + ReLU + channel-concat kernel."""
    ho, wo = 2 * hi + 1, 2 * wi + 1
    s, p = hi * wi, ho * wo
    gc = 3 * cout                                  # columns per kh group

    # output row oy  <-  list of (kh, input row i) sources with 2*i + kh == oy
    row_sources = []
    for oy in range(ho):
        srcs = [(kh, (oy - kh) // 2) for kh in range(3)
                if (oy - kh) % 2 == 0 and 0 <= (oy - kh) // 2 < hi]
        row_sources.append(srcs)

    def kernel(x_ref, w_ref, skip_ref, out_ref, p_ref, rowacc_ref, stage_ref):
        # x_ref      : (1, S, Cin)        bf16   per-sample input (spatial flattened)
        # w_ref      : (3, Cin, 3*Cout)   bf16   packed weight (kh, Cin, kw-major*Cout)
        # skip_ref   : (1, P, Cs)         bf16   per-sample skip (spatial flattened)
        # out_ref    : (1, P, Cout+Cs)    bf16
        # p_ref      : (S, 9*Cout)        f32    staged per-tap matmul results
        # rowacc_ref : (3, Wi+1, Cout)    f32    kw-planar scratch for one output row
        # stage_ref  : (P, Cout)          f32    interleaved pre-norm activation
        x = x_ref[0]                                               # (S, Cin) bf16

        # ---- 1. fused tap matmuls (3 chunks, N = 3*Cout each; f32 accumulation) ----
        for g in range(3):
            p_ref[:, g * gc:(g + 1) * gc] = jnp.dot(
                x, w_ref[g], preferred_element_type=jnp.float32)

        # ---- 2. sub-pixel overlap-add: build each output row, place with stride 2 ----
        # Zero once: only the pad rows (plane0/1 row Wi, plane2 row 0) rely on it; all
        # other rowacc cells are fully overwritten for every output row (no RMW).
        rowacc_ref[...] = jnp.zeros_like(rowacc_ref)
        for oy in range(ho):
            for kw in range(3):
                contrib = None
                for (kh, i) in row_sources[oy]:                    # 1 or 2 sources
                    c0 = (kh * 3 + kw) * cout
                    slab = p_ref[pl.ds(i * wi, wi), c0:c0 + cout]  # (Wi, Cout) f32
                    contrib = slab if contrib is None else contrib + slab
                off = 1 if kw == 2 else 0                          # bake in the +1 shift
                rowacc_ref[kw, pl.ds(off, wi), :] = contrib        # dense store
            # even output cols 0,2,..,2*Wi  <- kw=0 plane + shifted kw=2 plane
            e_row = rowacc_ref[0] + rowacc_ref[2]                  # (Wi+1, Cout)
            # odd  output cols 1,3,..,2*Wi-1 <- kw=1 plane
            o_row = rowacc_ref[1, 0:wi, :]                         # (Wi,   Cout)
            stage_ref[pl.ds(oy * wo, wi + 1, stride=2), :] = e_row
            stage_ref[pl.ds(oy * wo + 1, wi, stride=2), :] = o_row

        # ---- 3. InstanceNorm (one pass, f32 stats) + ReLU + lane-aligned writeback ----
        act = stage_ref[...]                                       # (P, Cout) f32
        ssum = jnp.sum(act, axis=0, keepdims=True)
        sqsum = jnp.sum(act * act, axis=0, keepdims=True)
        mean = ssum * (1.0 / p)
        var = sqsum * (1.0 / p) - mean * mean                      # biased variance
        inv = jax.lax.rsqrt(var + eps)
        y = jnp.maximum((act - mean) * inv, 0.0)
        # TODO(synk): Dropout(p>0) not modeled (inference identity); would need
        # pltpu.prng_seed / pltpu.prng_random_bits for training mode.
        out_ref[0, :, :cout] = y.astype(out_ref.dtype)
        out_ref[0, :, cout:] = skip_ref[0]

    return kernel


# ------------------------------ packing helper --------------------------------

def pack_weight(w):
    """PyTorch ConvTranspose2d weight (Cin, Cout, 3, 3) -> (3, Cin, 3*Cout) bf16.

    Grouped by kh (row tap), kw-major columns inside each group.  Done once,
    outside the jitted forward."""
    cin, cout = w.shape[0], w.shape[1]
    wt = jnp.transpose(jnp.asarray(w), (2, 0, 3, 1))          # (kh, Cin, kw, Cout)
    return wt.reshape(3, cin, 3 * cout).astype(jnp.bfloat16)


# --------------------------------- forward ------------------------------------

@jax.jit
def unet_up_forward(w_packed, x_nhwc, skip_nhwc):
    """UNetUp forward, NHWC end-to-end.

    x: (N, Hi, Wi, Cin), skip: (N, 2*Hi+1, 2*Wi+1, Cs) -> (N, Ho, Wo, Cout+Cs) bf16."""
    n, hi, wi, cin = x_nhwc.shape
    cout = w_packed.shape[2] // 3
    _, hs, ws, cs = skip_nhwc.shape
    ho, wo = 2 * hi + 1, 2 * wi + 1
    assert (hs, ws) == (ho, wo), "skip spatial dims must match ConvTranspose output"
    s, p = hi * wi, ho * wo

    # Free reshapes only (no transposes): spatial flattened, channels stay last.
    x = x_nhwc.reshape(n, s, cin).astype(jnp.bfloat16)
    skip = skip_nhwc.reshape(n, p, cs).astype(jnp.bfloat16)

    kernel = _make_unet_up_kernel(hi, wi, cin, cout, cs, 1e-5)

    def _const_spec(shape):
        # grid-invariant operand: request single buffering when supported.
        index_map = lambda b: (0,) * len(shape)
        try:
            return pl.BlockSpec(shape, index_map, pipeline_mode=pl.Buffered(1))
        except Exception:
            return pl.BlockSpec(shape, index_map)

    out = pl.pallas_call(
        kernel,
        out_shape=jax.ShapeDtypeStruct((n, p, cout + cs), jnp.bfloat16),
        grid=(n,),
        in_specs=[
            pl.BlockSpec((1, s, cin), lambda b: (b, 0, 0)),     # x    (per sample)
            _const_spec((3, cin, 3 * cout)),                    # packed weight
            pl.BlockSpec((1, p, cs), lambda b: (b, 0, 0)),      # skip (per sample)
        ],
        out_specs=pl.BlockSpec((1, p, cout + cs), lambda b: (b, 0, 0)),
        scratch_shapes=[
            pltpu.VMEM((s, 9 * cout), jnp.float32),             # staged tap matmuls
            pltpu.VMEM((3, wi + 1, cout), jnp.float32),         # kw-planar row scratch
            pltpu.VMEM((p, cout), jnp.float32),                 # interleaved pre-norm act
        ],
        compiler_params=pltpu.CompilerParams(dimension_semantics=("parallel",)),
    )(x, w_packed, skip)

    return out.reshape(n, ho, wo, cout + cs)


# ----------------------------- numpy reference --------------------------------

def reference_unet_up(x_nchw, skip_nchw, w, eps=1e-5):
    """Straight PyTorch-semantics reference in f32 numpy (NCHW)."""
    n, cin, hi, wi = x_nchw.shape
    cout = w.shape[1]
    ho, wo = 2 * hi + 1, 2 * wi + 1
    out = np.zeros((n, cout, ho, wo), np.float32)
    for kh in range(3):
        for kw in range(3):
            contrib = np.einsum("nchw,cd->ndhw", x_nchw, w[:, :, kh, kw])
            out[:, :, kh:kh + 2 * hi:2, kw:kw + 2 * wi:2] += contrib
    mean = out.mean(axis=(2, 3), keepdims=True)
    var = out.var(axis=(2, 3), keepdims=True)          # biased, as InstanceNorm2d
    out = np.maximum((out - mean) / np.sqrt(var + eps), 0.0)
    return np.concatenate([out, skip_nchw], axis=1)


# ----------------------------------- main --------------------------------------

if __name__ == "__main__":
    key = jax.random.PRNGKey(0)
    kx, ks, kw = jax.random.split(key, 3)

    N, Cin, Cout, Cs = 2, 128, 128, 128
    Hi = Wi = 7
    Ho, Wo = 2 * Hi + 1, 2 * Wi + 1                    # 15 x 15

    x = jax.random.normal(kx, (N, Hi, Wi, Cin), jnp.float32)       # NHWC
    skip = jax.random.normal(ks, (N, Ho, Wo, Cs), jnp.float32)     # NHWC
    w = jax.random.normal(kw, (Cin, Cout, 3, 3), jnp.float32) * 0.05

    w_packed = pack_weight(w)                          # (3, Cin, 3*Cout) bf16, once

    y = unet_up_forward(w_packed, x, skip)
    jax.block_until_ready(y)

    assert y.shape == (N, Ho, Wo, Cout + Cs), y.shape
    assert bool(jnp.all(jnp.isfinite(y.astype(jnp.float32))))

    # Compare against reference computed with the same bf16-rounded x / w / skip
    # (kernel accumulates in f32; output is bf16, hence the slightly looser tol).
    x_bf = np.asarray(x.astype(jnp.bfloat16).astype(jnp.float32))
    w_bf = np.asarray(jnp.asarray(w).astype(jnp.bfloat16).astype(jnp.float32))
    skip_bf = np.asarray(skip.astype(jnp.bfloat16).astype(jnp.float32))
    ref_nchw = reference_unet_up(np.transpose(x_bf, (0, 3, 1, 2)),
                                 np.transpose(skip_bf, (0, 3, 1, 2)), w_bf)
    ref = np.transpose(ref_nchw, (0, 2, 3, 1))         # test-side NCHW -> NHWC
    err = float(np.max(np.abs(np.asarray(y.astype(jnp.float32)) - ref)))
    assert err < 3e-2, f"max abs error {err}"

    print("KERNEL_OK")
</pallas_src>

<mosaic_0001>
module attributes {stable_mosaic.version = 11 : i64} {
  func.func @kernel(%arg0: i32, %arg1: memref<1x49x128xbf16, #tpu.memory_space<vmem>>, %arg2: memref<3x128x384xbf16, #tpu.memory_space<vmem>>, %arg3: memref<1x225x128xbf16, #tpu.memory_space<vmem>>, %arg4: memref<1x225x256xbf16, #tpu.memory_space<vmem>>, %arg5: memref<49x1152xf32, #tpu.memory_space<vmem>>, %arg6: memref<3x8x128xf32, #tpu.memory_space<vmem>>, %arg7: memref<225x128xf32, #tpu.memory_space<vmem>>) attributes {dimension_semantics = [#tpu.dimension_semantics<parallel>], iteration_bounds = array<i64: 2>, scalar_prefetch = 0 : i64, scratch_operands = 3 : i64, tpu.core_type = #tpu.core_type<tc>, window_params = [{transform_indices = @transform_0, window_bounds = array<i64: 1, 49, 128>}, {pipeline_mode = #tpu.pipeline_mode<synchronous>, transform_indices = @transform_1, window_bounds = array<i64: 3, 128, 384>}, {transform_indices = @transform_2, window_bounds = array<i64: 1, 225, 128>}, {transform_indices = @transform_3, window_bounds = array<i64: 1, 225, 256>}]} {
    %c0 = arith.constant 0 : index
    %c0_0 = arith.constant 0 : index
    %c0_1 = arith.constant 0 : index
    %0 = vector.load %arg1[%c0, %c0_0, %c0_1] : memref<1x49x128xbf16, #tpu.memory_space<vmem>>, vector<1x49x128xbf16>
    %1 = vector.shape_cast %0 : vector<1x49x128xbf16> to vector<49x128xbf16>
    %c0_2 = arith.constant 0 : index
    %c0_3 = arith.constant 0 : index
    %c0_4 = arith.constant 0 : index
    %2 = vector.load %arg2[%c0_2, %c0_3, %c0_4] : memref<3x128x384xbf16, #tpu.memory_space<vmem>>, vector<1x128x384xbf16>
    %3 = vector.shape_cast %2 : vector<1x128x384xbf16> to vector<128x384xbf16>
    %cst = arith.constant dense<0.000000e+00> : vector<49x384xf32>
    %4 = tpu.matmul %1, %3, %cst {dimension_numbers = #tpu.dot_dimension_numbers<[1], [0], [0], [1], [0, 0, 1, 1], [], []>} : vector<49x128xbf16>, vector<128x384xbf16>, vector<49x384xf32> -> vector<49x384xf32>
    %c0_5 = arith.constant 0 : index
    %c0_6 = arith.constant 0 : index
    %5 = vector.load %arg5[%c0_5, %c0_6] : memref<49x1152xf32, #tpu.memory_space<vmem>>, vector<49x384xf32>
    tpu.vector_store %arg5[%c0_5, %c0_6], %4 {strides = array<i32>} : memref<49x1152xf32, #tpu.memory_space<vmem>>, vector<49x384xf32>,
    %c1 = arith.constant 1 : index
    %c0_7 = arith.constant 0 : index
    %c0_8 = arith.constant 0 : index
    %6 = vector.load %arg2[%c1, %c0_7, %c0_8] : memref<3x128x384xbf16, #tpu.memory_space<vmem>>, vector<1x128x384xbf16>
    %7 = vector.shape_cast %6 : vector<1x128x384xbf16> to vector<128x384xbf16>
    %cst_9 = arith.constant dense<0.000000e+00> : vector<49x384xf32>
    %8 = tpu.matmul %1, %7, %cst_9 {dimension_numbers = #tpu.dot_dimension_numbers<[1], [0], [0], [1], [0, 0, 1, 1], [], []>} : vector<49x128xbf16>, vector<128x384xbf16>, vector<49x384xf32> -> vector<49x384xf32>
    %c0_10 = arith.constant 0 : index
    %c384 = arith.constant 384 : index
    %9 = vector.load %arg5[%c0_10, %c384] : memref<49x1152xf32, #tpu.memory_space<vmem>>, vector<49x384xf32>
    tpu.vector_store %arg5[%c0_10, %c384], %8 {strides = array<i32>} : memref<49x1152xf32, #tpu.memory_space<vmem>>, vector<49x384xf32>,
    %c2 = arith.constant 2 : index
    %c0_11 = arith.constant 0 : index
    %c0_12 = arith.constant 0 : index
    %10 = vector.load %arg2[%c2, %c0_11, %c0_12] : memref<3x128x384xbf16, #tpu.memory_space<vmem>>, vector<1x128x384xbf16>
    %11 = vector.shape_cast %10 : vector<1x128x384xbf16> to vector<128x384xbf16>
    %cst_13 = arith.constant dense<0.000000e+00> : vector<49x384xf32>
    %12 = tpu.matmul %1, %11, %cst_13 {dimension_numbers = #tpu.dot_dimension_numbers<[1], [0], [0], [1], [0, 0, 1, 1], [], []>} : vector<49x128xbf16>, vector<128x384xbf16>, vector<49x384xf32> -> vector<49x384xf32>
    %c0_14 = arith.constant 0 : index
    %c768 = arith.constant 768 : index
    %13 = vector.load %arg5[%c0_14, %c768] : memref<49x1152xf32, #tpu.memory_space<vmem>>, vector<49x384xf32>
    tpu.vector_store %arg5[%c0_14, %c768], %12 {strides = array<i32>} : memref<49x1152xf32, #tpu.memory_space<vmem>>, vector<49x384xf32>,
    %cst_15 = arith.constant 0.000000e+00 : f32
    %14 = vector.broadcast %cst_15 : f32 to vector<3x8x128xf32>
    %c0_16 = arith.constant 0 : index
    %c0_17 = arith.constant 0 : index
    %c0_18 = arith.constant 0 : index
    %15 = vector.load %arg6[%c0_16, %c0_17, %c0_18] : memref<3x8x128xf32, #tpu.memory_space<vmem>>, vector<3x8x128xf32>
    tpu.vector_store %arg6[%c0_16, %c0_17, %c0_18], %14 {strides = array<i32>} : memref<3x8x128xf32, #tpu.memory_space<vmem>>, vector<3x8x128xf32>,
    %c0_19 = arith.constant 0 : index
    %c0_20 = arith.constant 0 : index
    %16 = vector.load %arg5[%c0_19, %c0_20] : memref<49x1152xf32, #tpu.memory_space<vmem>>, vector<7x128xf32>
    %c0_21 = arith.constant 0 : index
    %c0_22 = arith.constant 0 : index
    %c0_23 = arith.constant 0 : index
    %17 = vector.load %arg6[%c0_21, %c0_22, %c0_23] : memref<3x8x128xf32, #tpu.memory_space<vmem>>, vector<1x7x128xf32>
    %18 = vector.shape_cast %17 : vector<1x7x128xf32> to vector<7x128xf32>
    %19 = vector.shape_cast %16 : vector<7x128xf32> to vector<1x7x128xf32>
    tpu.vector_store %arg6[%c0_21, %c0_22, %c0_23], %19 {strides = array<i32>} : memref<3x8x128xf32, #tpu.memory_space<vmem>>, vector<1x7x128xf32>,
    %c0_24 = arith.constant 0 : index
    %c128 = arith.constant 128 : index
    %20 = vector.load %arg5[%c0_24, %c128] : memref<49x1152xf32, #tpu.memory_space<vmem>>, vector<7x128xf32>
    %c1_25 = arith.constant 1 : index
    %c0_26 = arith.constant 0 : index
    %c0_27 = arith.constant 0 : index
    %21 = vector.load %arg6[%c1_25, %c0_26, %c0_27] : memref<3x8x128xf32, #tpu.memory_space<vmem>>, vector<1x7x128xf32>
    %22 = vector.shape_cast %21 : vector<1x7x128xf32> to vector<7x128xf32>
    %23 = vector.shape_cast %20 : vector<7x128xf32> to vector<1x7x128xf32>
    tpu.vector_store %arg6[%c1_25, %c0_26, %c0_27], %23 {strides = array<i32>} : memref<3x8x128xf32, #tpu.memory_space<vmem>>, vector<1x7x128xf32>,
    %c0_28 = arith.constant 0 : index
    %c256 = arith.constant 256 : index
    %24 = vector.load %arg5[%c0_28, %c256] : memref<49x1152xf32, #tpu.memory_space<vmem>>, vector<7x128xf32>
    %c2_29 = arith.constant 2 : index
    %c1_30 = arith.constant 1 : index
    %c0_31 = arith.constant 0 : index
    %25 = vector.load %arg6[%c2_29, %c1_30, %c0_31] : memref<3x8x128xf32, #tpu.memory_space<vmem>>, vector<1x7x128xf32>
    %26 = vector.shape_cast %25 : vector<1x7x128xf32> to vector<7x128xf32>
    %27 = vector.shape_cast %24 : vector<7x128xf32> to vector<1x7x128xf32>
    tpu.vector_store %arg6[%c2_29, %c1_30, %c0_31], %27 {strides = array<i32>} : memref<3x8x128xf32, #tpu.memory_space<vmem>>, vector<1x7x128xf32>,
    %c0_32 = arith.constant 0 : index
    %c0_33 = arith.constant 0 : index
    %c0_34 = arith.constant 0 : index
    %28 = vector.load %arg6[%c0_32, %c0_33, %c0_34] : memref<3x8x128xf32, #tpu.memory_space<vmem>>, vector<1x8x128xf32>
    %29 = vector.shape_cast %28 : vector<1x8x128xf32> to vector<8x128xf32>
    %c2_35 = arith.constant 2 : index
    %c0_36 = arith.constant 0 : index
    %c0_37 = arith.constant 0 : index
    %30 = vector.load %arg6[%c2_35, %c0_36, %c0_37] : memref<3x8x128xf32, #tpu.memory_space<vmem>>, vector<1x8x128xf32>
    %31 = vector.shape_cast %30 : vector<1x8x128xf32> to vector<8x128xf32>
    %32 = arith.addf %29, %31 : vector<8x128xf32>
    %c1_38 = arith.constant 1 : index
    %c0_39 = arith.constant 0 : index
    %c0_40 = arith.constant 0 : index
    %33 = vector.load %arg6[%c1_38, %c0_39, %c0_40] : memref<3x8x128xf32, #tpu.memory_space<vmem>>, vector<1x7x128xf32>
    %34 = vector.shape_cast %33 : vector<1x7x128xf32> to vector<7x128xf32>
    %c0_41 = arith.constant 0 : index
    %c0_42 = arith.constant 0 : index
    %35 = tpu.strided_load %arg7[%c0_41, %c0_42] {strides = array<i32: 2, 1>} : memref<225x128xf32, #tpu.memory_space<vmem>>, vector<8x128xf32>
    tpu.strided_store %arg7[%c0_41, %c0_42], %32 {strides = array<i32: 2, 1>} : memref<225x128xf32, #tpu.memory_space<vmem>>, vector<8x128xf32>
    %c1_43 = arith.constant 1 : index
    %c0_44 = arith.constant 0 : index
    %36 = tpu.strided_load %arg7[%c1_43, %c0_44] {strides = array<i32: 2, 1>} : memref<225x128xf32, #tpu.memory_space<vmem>>, vector<7x128xf32>
    tpu.strided_store %arg7[%c1_43, %c0_44], %34 {strides = array<i32: 2, 1>} : memref<225x128xf32, #tpu.memory_space<vmem>>, vector<7x128xf32>
    %c0_45 = arith.constant 0 : index
    %c384_46 = arith.constant 384 : index
    %37 = vector.load %arg5[%c0_45, %c384_46] : memref<49x1152xf32, #tpu.memory_space<vmem>>, vector<7x128xf32>
    %c0_47 = arith.constant 0 : index
    %c0_48 = arith.constant 0 : index
    %c0_49 = arith.constant 0 : index
    %38 = vector.load %arg6[%c0_47, %c0_48, %c0_49] : memref<3x8x128xf32, #tpu.memory_space<vmem>>, vector<1x7x128xf32>
    %39 = vector.shape_cast %38 : vector<1x7x128xf32> to vector<7x128xf32>
    %40 = vector.shape_cast %37 : vector<7x128xf32> to vector<1x7x128xf32>
    tpu.vector_store %arg6[%c0_47, %c0_48, %c0_49], %40 {strides = array<i32>} : memref<3x8x128xf32, #tpu.memory_space<vmem>>, vector<1x7x128xf32>,
    %c0_50 = arith.constant 0 : index
    %c512 = arith.constant 512 : index
    %41 = vector.load %arg5[%c0_50, %c512] : memref<49x1152xf32, #tpu.memory_space<vmem>>, vector<7x128xf32>
    %c1_51 = arith.constant 1 : index
    %c0_52 = arith.constant 0 : index
    %c0_53 = arith.constant 0 : index
    %42 = vector.load %arg6[%c1_51, %c0_52, %c0_53] : memref<3x8x128xf32, #tpu.memory_space<vmem>>, vector<1x7x128xf32>
    %43 = vector.shape_cast %42 : vector<1x7x128xf32> to vector<7x128xf32>
    %44 = vector.shape_cast %41 : vector<7x128xf32> to vector<1x7x128xf32>
    tpu.vector_store %arg6[%c1_51, %c0_52, %c0_53], %44 {strides = array<i32>} : memref<3x8x128xf32, #tpu.memory_space<vmem>>, vector<1x7x128xf32>,
    %c0_54 = arith.constant 0 : index
    %c640 = arith.constant 640 : index
    %45 = vector.load %arg5[%c0_54, %c640] : memref<49x1152xf32, #tpu.memory_space<vmem>>, vector<7x128xf32>
    %c2_55 = arith.constant 2 : index
    %c1_56 = arith.constant 1 : index
    %c0_57 = arith.constant 0 : index
    %46 = vector.load %arg6[%c2_55, %c1_56, %c0_57] : memref<3x8x128xf32, #tpu.memory_space<vmem>>, vector<1x7x128xf32>
    %47 = vector.shape_cast %46 : vector<1x7x128xf32> to vector<7x128xf32>
    %48 = vector.shape_cast %45 : vector<7x128xf32> to vector<1x7x128xf32>
    tpu.vector_store %arg6[%c2_55, %c1_56, %c0_57], %48 {strides = array<i32>} : memref<3x8x128xf32, #tpu.memory_space<vmem>>, vector<1x7x128xf32>,
    %c0_58 = arith.constant 0 : index
    %c0_59 = arith.constant 0 : index
    %c0_60 = arith.constant 0 : index
    %49 = vector.load %arg6[%c0_58, %c0_59, %c0_60] : memref<3x8x128xf32, #tpu.memory_space<vmem>>, vector<1x8x128xf32>
    %50 = vector.shape_cast %49 : vector<1x8x128xf32> to vector<8x128xf32>
    %c2_61 = arith.constant 2 : index
    %c0_62 = arith.constant 0 : index
    %c0_63 = arith.constant 0 : index
    %51 = vector.load %arg6[%c2_61, %c0_62, %c0_63] : memref<3x8x128xf32, #tpu.memory_space<vmem>>, vector<1x8x128xf32>
    %52 = vector.shape_cast %51 : vector<1x8x128xf32> to vector<8x128xf32>
    %53 = arith.addf %50, %52 : vector<8x128xf32>
    %c1_64 = arith.constant 1 : index
    %c0_65 = arith.constant 0 : index
    %c0_66 = arith.constant 0 : index
    %54 = vector.load %arg6[%c1_64, %c0_65, %c0_66] : memref<3x8x128xf32, #tpu.memory_space<vmem>>, vector<1x7x128xf32>
    %55 = vector.shape_cast %54 : vector<1x7x128xf32> to vector<7x128xf32>
    %c15 = arith.constant 15 : index
    %c0_67 = arith.constant 0 : index
    %56 = tpu.strided_load %arg7[%c15, %c0_67] {strides = array<i32: 2, 1>} : memref<225x128xf32, #tpu.memory_space<vmem>>, vector<8x128xf32>
    tpu.strided_store %arg7[%c15, %c0_67], %53 {strides = array<i32: 2, 1>} : memref<225x128xf32, #tpu.memory_space<vmem>>, vector<8x128xf32>
    %c16 = arith.constant 16 : index
    %c0_68 = arith.constant 0 : index
    %57 = tpu.strided_load %arg7[%c16, %c0_68] {strides = array<i32: 2, 1>} : memref<225x128xf32, #tpu.memory_space<vmem>>, vector<7x128xf32>
    tpu.strided_store %arg7[%c16, %c0_68], %55 {strides = array<i32: 2, 1>} : memref<225x128xf32, #tpu.memory_space<vmem>>, vector<7x128xf32>
    %c7 = arith.constant 7 : index
    %c0_69 = arith.constant 0 : index
    %58 = vector.load %arg5[%c7, %c0_69] : memref<49x1152xf32, #tpu.memory_space<vmem>>, vector<7x128xf32>
    %c0_70 = arith.constant 0 : index
    %c768_71 = arith.constant 768 : index
    %59 = vector.load %arg5[%c0_70, %c768_71] : memref<49x1152xf32, #tpu.memory_space<vmem>>, vector<7x128xf32>
    %60 = arith.addf %58, %59 : vector<7x128xf32>
    %c0_72 = arith.constant 0 : index
    %c0_73 = arith.constant 0 : index
    %c0_74 = arith.constant 0 : index
    %61 = vector.load %arg6[%c0_72, %c0_73, %c0_74] : memref<3x8x128xf32, #tpu.memory_space<vmem>>, vector<1x7x128xf32>
    %62 = vector.shape_cast %61 : vector<1x7x128xf32> to vector<7x128xf32>
    %63 = vector.shape_cast %60 : vector<7x128xf32> to vector<1x7x128xf32>
    tpu.vector_store %arg6[%c0_72, %c0_73, %c0_74], %63 {strides = array<i32>} : memref<3x8x128xf32, #tpu.memory_space<vmem>>, vector<1x7x128xf32>,
    %c7_75 = arith.constant 7 : index
    %c128_76 = arith.constant 128 : index
    %64 = vector.load %arg5[%c7_75, %c128_76] : memref<49x1152xf32, #tpu.memory_space<vmem>>, vector<7x128xf32>
    %c0_77 = arith.constant 0 : index
    %c896 = arith.constant 896 : index
    %65 = vector.load %arg5[%c0_77, %c896] : memref<49x1152xf32, #tpu.memory_space<vmem>>, vector<7x128xf32>
    %66 = arith.addf %64, %65 : vector<7x128xf32>
    %c1_78 = arith.constant 1 : index
    %c0_79 = arith.constant 0 : index
    %c0_80 = arith.constant 0 : index
    %67 = vector.load %arg6[%c1_78, %c0_79, %c0_80] : memref<3x8x128xf32, #tpu.memory_space<vmem>>, vector<1x7x128xf32>
    %68 = vector.shape_cast %67 : vector<1x7x128xf32> to vector<7x128xf32>
    %69 = vector.shape_cast %66 : vector<7x128xf32> to vector<1x7x128xf32>
    tpu.vector_store %arg6[%c1_78, %c0_79, %c0_80], %69 {strides = array<i32>} : memref<3x8x128xf32, #tpu.memory_space<vmem>>, vector<1x7x128xf32>,
    %c7_81 = arith.constant 7 : index
    %c256_82 = arith.constant 256 : index
    %70 = vector.load %arg5[%c7_81, %c256_82] : memref<49x1152xf32, #tpu.memory_space<vmem>>, vector<7x128xf32>
    %c0_83 = arith.constant 0 : index
    %c1024 = arith.constant 1024 : index
    %71 = vector.load %arg5[%c0_83, %c1024] : memref<49x1152xf32, #tpu.memory_space<vmem>>, vector<7x128xf32>
    %72 = arith.addf %70, %71 : vector<7x128xf32>
    %c2_84 = arith.constant 2 : index
    %c1_85 = arith.constant 1 : index
    %c0_86 = arith.constant 0 : index
    %73 = vector.load %arg6[%c2_84, %c1_85, %c0_86] : memref<3x8x128xf32, #tpu.memory_space<vmem>>, vector<1x7x128xf32>
    %74 = vector.shape_cast %73 : vector<1x7x128xf32> to vector<7x128xf32>
    %75 = vector.shape_cast %72 : vector<7x128xf32> to vector<1x7x128xf32>
    tpu.vector_store %arg6[%c2_84, %c1_85, %c0_86], %75 {strides = array<i32>} : memref<3x8x128xf32, #tpu.memory_space<vmem>>, vector<1x7x128xf32>,
    %c0_87 = arith.constant 0 : index
    %c0_88 = arith.constant 0 : index
    %c0_89 = arith.constant 0 : index
    %76 = vector.load %arg6[%c0_87, %c0_88, %c0_89] : memref<3x8x128xf32, #tpu.memory_space<vmem>>, vector<1x8x128xf32>
    %77 = vector.shape_cast %76 : vector<1x8x128xf32> to vector<8x128xf32>
    %c2_90 = arith.constant 2 : index
    %c0_91 = arith.constant 0 : index
    %c0_92 = arith.constant 0 : index
    %78 = vector.load %arg6[%c2_90, %c0_91, %c0_92] : memref<3x8x128xf32, #tpu.memory_space<vmem>>, vector<1x8x128xf32>
    %79 = vector.shape_cast %78 : vector<1x8x128xf32> to vector<8x128xf32>
    %80 = arith.addf %77, %79 : vector<8x128xf32>
    %c1_93 = arith.constant 1 : index
    %c0_94 = arith.constant 0 : index
    %c0_95 = arith.constant 0 : index
    %81 = vector.load %arg6[%c1_93, %c0_94, %c0_95] : memref<3x8x128xf32, #tpu.memory_space<vmem>>, vector<1x7x128xf32>
    %82 = vector.shape_cast %81 : vector<1x7x128xf32> to vector<7x128xf32>
    %c30 = arith.constant 30 : index
    %c0_96 = arith.constant 0 : index
    %83 = tpu.strided_load %arg7[%c30, %c0_96] {strides = array<i32: 2, 1>} : memref<225x128xf32, #tpu.memory_space<vmem>>, vector<8x128xf32>
    tpu.strided_store %arg7[%c30, %c0_96], %80 {strides = array<i32: 2, 1>} : memref<225x128xf32, #tpu.memory_space<vmem>>, vector<8x128xf32>
    %c31 = arith.constant 31 : index
    %c0_97 = arith.constant 0 : index
    %84 = tpu.strided_load %arg7[%c31, %c0_97] {strides = array<i32: 2, 1>} : memref<225x128xf32, #tpu.memory_space<vmem>>, vector<7x128xf32>
    tpu.strided_store %arg7[%c31, %c0_97], %82 {strides = array<i32: 2, 1>} : memref<225x128xf32, #tpu.memory_space<vmem>>, vector<7x128xf32>
    %c7_98 = arith.constant 7 : index
    %c384_99 = arith.constant 384 : index
    %85 = vector.load %arg5[%c7_98, %c384_99] : memref<49x1152xf32, #tpu.memory_space<vmem>>, vector<7x128xf32>
    %c0_100 = arith.constant 0 : index
    %c0_101 = arith.constant 0 : index
    %c0_102 = arith.constant 0 : index
    %86 = vector.load %arg6[%c0_100, %c0_101, %c0_102] : memref<3x8x128xf32, #tpu.memory_space<vmem>>, vector<1x7x128xf32>
    %87 = vector.shape_cast %86 : vector<1x7x128xf32> to vector<7x128xf32>
    %88 = vector.shape_cast %85 : vector<7x128xf32> to vector<1x7x128xf32>
    tpu.vector_store %arg6[%c0_100, %c0_101, %c0_102], %88 {strides = array<i32>} : memref<3x8x128xf32, #tpu.memory_space<vmem>>, vector<1x7x128xf32>,
    %c7_103 = arith.constant 7 : index
    %c512_104 = arith.constant 512 : index
    %89 = vector.load %arg5[%c7_103, %c512_104] : memref<49x1152xf32, #tpu.memory_space<vmem>>, vector<7x128xf32>
    %c1_105 = arith.constant 1 : index
    %c0_106 = arith.constant 0 : index
    %c0_107 = arith.constant 0 : index
    %90 = vector.load %arg6[%c1_105, %c0_106, %c0_107] : memref<3x8x128xf32, #tpu.memory_space<vmem>>, vector<1x7x128xf32>
    %91 = vector.shape_cast %90 : vector<1x7x128xf32> to vector<7x128xf32>
    %92 = vector.shape_cast %89 : vector<7x128xf32> to vector<1x7x128xf32>
    tpu.vector_store %arg6[%c1_105, %c0_106, %c0_107], %92 {strides = array<i32>} : memref<3x8x128xf32, #tpu.memory_space<vmem>>, vector<1x7x128xf32>,
    %c7_108 = arith.constant 7 : index
    %c640_109 = arith.constant 640 : index
    %93 = vector.load %arg5[%c7_108, %c640_109] : memref<49x1152xf32, #tpu.memory_space<vmem>>, vector<7x128xf32>
    %c2_110 = arith.constant 2 : index
    %c1_111 = arith.constant 1 : index
    %c0_112 = arith.constant 0 : index
    %94 = vector.load %arg6[%c2_110, %c1_111, %c0_112] : memref<3x8x128xf32, #tpu.memory_space<vmem>>, vector<1x7x128xf32>
    %95 = vector.shape_cast %94 : vector<1x7x128xf32> to vector<7x128xf32>
    %96 = vector.shape_cast %93 : vector<7x128xf32> to vector<1x7x128xf32>
    tpu.vector_store %arg6[%c2_110, %c1_111, %c0_112], %96 {strides = array<i32>} : memref<3x8x128xf32, #tpu.memory_space<vmem>>, vector<1x7x128xf32>,
    %c0_113 = arith.constant 0 : index
    %c0_114 = arith.constant 0 : index
    %c0_115 = arith.constant 0 : index
    %97 = vector.load %arg6[%c0_113, %c0_114, %c0_115] : memref<3x8x128xf32, #tpu.memory_space<vmem>>, vector<1x8x128xf32>
    %98 = vector.shape_cast %97 : vector<1x8x128xf32> to vector<8x128xf32>
    %c2_116 = arith.constant 2 : index
    %c0_117 = arith.constant 0 : index
    %c0_118 = arith.constant 0 : index
    %99 = vector.load %arg6[%c2_116, %c0_117, %c0_118] : memref<3x8x128xf32, #tpu.memory_space<vmem>>, vector<1x8x128xf32>
    %100 = vector.shape_cast %99 : vector<1x8x128xf32> to vector<8x128xf32>
    %101 = arith.addf %98, %100 : vector<8x128xf32>
    %c1_119 = arith.constant 1 : index
    %c0_120 = arith.constant 0 : index
    %c0_121 = arith.constant 0 : index
    %102 = vector.load %arg6[%c1_119, %c0_120, %c0_121] : memref<3x8x128xf32, #tpu.memory_space<vmem>>, vector<1x7x128xf32>
    %103 = vector.shape_cast %102 : vector<1x7x128xf32> to vector<7x128xf32>
    %c45 = arith.constant 45 : index
    %c0_122 = arith.constant 0 : index
    %104 = tpu.strided_load %arg7[%c45, %c0_122] {strides = array<i32: 2, 1>} : memref<225x128xf32, #tpu.memory_space<vmem>>, vector<8x128xf32>
    tpu.strided_store %arg7[%c45, %c0_122], %101 {strides = array<i32: 2, 1>} : memref<225x128xf32, #tpu.memory_space<vmem>>, vector<8x128xf32>
    %c46 = arith.constant 46 : index
    %c0_123 = arith.constant 0 : index
    %105 = tpu.strided_load %arg7[%c46, %c0_123] {strides = array<i32: 2, 1>} : memref<225x128xf32, #tpu.memory_space<vmem>>, vector<7x128xf32>
    tpu.strided_store %arg7[%c46, %c0_123], %103 {strides = array<i32: 2, 1>} : memref<225x128xf32, #tpu.memory_space<vmem>>, vector<7x128xf32>
    %c14 = arith.constant 14 : index
    %c0_124 = arith.constant 0 : index
    %106 = vector.load %arg5[%c14, %c0_124] : memref<49x1152xf32, #tpu.memory_space<vmem>>, vector<7x128xf32>
    %c7_125 = arith.constant 7 : index
    %c768_126 = arith.constant 768 : index
    %107 = vector.load %arg5[%c7_125, %c768_126] : memref<49x1152xf32, #tpu.memory_space<vmem>>, vector<7x128xf32>
    %108 = arith.addf %106, %107 : vector<7x128xf32>
    %c0_127 = arith.constant 0 : index
    %c0_128 = arith.constant 0 : index
    %c0_129 = arith.constant 0 : index
    %109 = vector.load %arg6[%c0_127, %c0_128, %c0_129] : memref<3x8x128xf32, #tpu.memory_space<vmem>>, vector<1x7x128xf32>
    %110 = vector.shape_cast %109 : vector<1x7x128xf32> to vector<7x128xf32>
    %111 = vector.shape_cast %108 : vector<7x128xf32> to vector<1x7x128xf32>
    tpu.vector_store %arg6[%c0_127, %c0_128, %c0_129], %111 {strides = array<i32>} : memref<3x8x128xf32, #tpu.memory_space<vmem>>, vector<1x7x128xf32>,
    %c14_130 = arith.constant 14 : index
    %c128_131 = arith.constant 128 : index
    %112 = vector.load %arg5[%c14_130, %c128_131] : memref<49x1152xf32, #tpu.memory_space<vmem>>, vector<7x128xf32>
    %c7_132 = arith.constant 7 : index
    %c896_133 = arith.constant 896 : index
    %113 = vector.load %arg5[%c7_132, %c896_133] : memref<49x1152xf32, #tpu.memory_space<vmem>>, vector<7x128xf32>
    %114 = arith.addf %112, %113 : vector<7x128xf32>
    %c1_134 = arith.constant 1 : index
    %c0_135 = arith.constant 0 : index
    %c0_136 = arith.constant 0 : index
    %115 = vector.load %arg6[%c1_134, %c0_135, %c0_136] : memref<3x8x128xf32, #tpu.memory_space<vmem>>, vector<1x7x128xf32>
    %116 = vector.shape_cast %115 : vector<1x7x128xf32> to vector<7x128xf32>
    %117 = vector.shape_cast %114 : vector<7x128xf32> to vector<1x7x128xf32>
    tpu.vector_store %arg6[%c1_134, %c0_135, %c0_136], %117 {strides = array<i32>} : memref<3x8x128xf32, #tpu.memory_space<vmem>>, vector<1x7x128xf32>,
    %c14_137 = arith.constant 14 : index
    %c256_138 = arith.constant 256 : index
    %118 = vector.load %arg5[%c14_137, %c256_138] : memref<49x1152xf32, #tpu.memory_space<vmem>>, vector<7x128xf32>
    %c7_139 = arith.constant 7 : index
    %c1024_140 = arith.constant 1024 : index
    %119 = vector.load %arg5[%c7_139, %c1024_140] : memref<49x1152xf32, #tpu.memory_space<vmem>>, vector<7x128xf32>
    %120 = arith.addf %118, %119 : vector<7x128xf32>
    %c2_141 = arith.constant 2 : index
    %c1_142 = arith.constant 1 : index
    %c0_143 = arith.constant 0 : index
    %121 = vector.load %arg6[%c2_141, %c1_142, %c0_143] : memref<3x8x128xf32, #tpu.memory_space<vmem>>, vector<1x7x128xf32>
    %122 = vector.shape_cast %121 : vector<1x7x128xf32> to vector<7x128xf32>
    %123 = vector.shape_cast %120 : vector<7x128xf32> to vector<1x7x128xf32>
    tpu.vector_store %arg6[%c2_141, %c1_142, %c0_143], %123 {strides = array<i32>} : memref<3x8x128xf32, #tpu.memory_space<vmem>>, vector<1x7x128xf32>,
    %c0_144 = arith.constant 0 : index
    %c0_145 = arith.constant 0 : index
    %c0_146 = arith.constant 0 : index
    %124 = vector.load %arg6[%c0_144, %c0_145, %c0_146] : memref<3x8x128xf32, #tpu.memory_space<vmem>>, vector<1x8x128xf32>
    %125 = vector.shape_cast %124 : vector<1x8x128xf32> to vector<8x128xf32>
    %c2_147 = arith.constant 2 : index
    %c0_148 = arith.constant 0 : index
    %c0_149 = arith.constant 0 : index
    %126 = vector.load %arg6[%c2_147, %c0_148, %c0_149] : memref<3x8x128xf32, #tpu.memory_space<vmem>>, vector<1x8x128xf32>
    %127 = vector.shape_cast %126 : vector<1x8x128xf32> to vector<8x128xf32>
    %128 = arith.addf %125, %127 : vector<8x128xf32>
    %c1_150 = arith.constant 1 : index
    %c0_151 = arith.constant 0 : index
    %c0_152 = arith.constant 0 : index
    %129 = vector.load %arg6[%c1_150, %c0_151, %c0_152] : memref<3x8x128xf32, #tpu.memory_space<vmem>>, vector<1x7x128xf32>
    %130 = vector.shape_cast %129 : vector<1x7x128xf32> to vector<7x128xf32>
    %c60 = arith.constant 60 : index
    %c0_153 = arith.constant 0 : index
    %131 = tpu.strided_load %arg7[%c60, %c0_153] {strides = array<i32: 2, 1>} : memref<225x128xf32, #tpu.memory_space<vmem>>, vector<8x128xf32>
    tpu.strided_store %arg7[%c60, %c0_153], %128 {strides = array<i32: 2, 1>} : memref<225x128xf32, #tpu.memory_space<vmem>>, vector<8x128xf32>
    %c61 = arith.constant 61 : index
    %c0_154 = arith.constant 0 : index
    %132 = tpu.strided_load %arg7[%c61, %c0_154] {strides = array<i32: 2, 1>} : memref<225x128xf32, #tpu.memory_space<vmem>>, vector<7x128xf32>
    tpu.strided_store %arg7[%c61, %c0_154], %130 {strides = array<i32: 2, 1>} : memref<225x128xf32, #tpu.memory_space<vmem>>, vector<7x128xf32>
    %c14_155 = arith.constant 14 : index
    %c384_156 = arith.constant 384 : index
    %133 = vector.load %arg5[%c14_155, %c384_156] : memref<49x1152xf32, #tpu.memory_space<vmem>>, vector<7x128xf32>
    %c0_157 = arith.constant 0 : index
    %c0_158 = arith.constant 0 : index
    %c0_159 = arith.constant 0 : index
    %134 = vector.load %arg6[%c0_157, %c0_158, %c0_159] : memref<3x8x128xf32, #tpu.memory_space<vmem>>, vector<1x7x128xf32>
    %135 = vector.shape_cast %134 : vector<1x7x128xf32> to vector<7x128xf32>
    %136 = vector.shape_cast %133 : vector<7x128xf32> to vector<1x7x128xf32>
    tpu.vector_store %arg6[%c0_157, %c0_158, %c0_159], %136 {strides = array<i32>} : memref<3x8x128xf32, #tpu.memory_space<vmem>>, vector<1x7x128xf32>,
    %c14_160 = arith.constant 14 : index
    %c512_161 = arith.constant 512 : index
    %137 = vector.load %arg5[%c14_160, %c512_161] : memref<49x1152xf32, #tpu.memory_space<vmem>>, vector<7x128xf32>
    %c1_162 = arith.constant 1 : index
    %c0_163 = arith.constant 0 : index
    %c0_164 = arith.constant 0 : index
    %138 = vector.load %arg6[%c1_162, %c0_163, %c0_164] : memref<3x8x128xf32, #tpu.memory_space<vmem>>, vector<1x7x128xf32>
    %139 = vector.shape_cast %138 : vector<1x7x128xf32> to vector<7x128xf32>
    %140 = vector.shape_cast %137 : vector<7x128xf32> to vector<1x7x128xf32>
    tpu.vector_store %arg6[%c1_162, %c0_163, %c0_164], %140 {strides = array<i32>} : memref<3x8x128xf32, #tpu.memory_space<vmem>>, vector<1x7x128xf32>,
    %c14_165 = arith.constant 14 : index
    %c640_166 = arith.constant 640 : index
    %141 = vector.load %arg5[%c14_165, %c640_166] : memref<49x1152xf32, #tpu.memory_space<vmem>>, vector<7x128xf32>
    %c2_167 = arith.constant 2 : index
    %c1_168 = arith.constant 1 : index
    %c0_169 = arith.constant 0 : index
    %142 = vector.load %arg6[%c2_167, %c1_168, %c0_169] : memref<3x8x128xf32, #tpu.memory_space<vmem>>, vector<1x7x128xf32>
    %143 = vector.shape_cast %142 : vector<1x7x128xf32> to vector<7x128xf32>
    %144 = vector.shape_cast %141 : vector<7x128xf32> to vector<1x7x128xf32>
    tpu.vector_store %arg6[%c2_167, %c1_168, %c0_169], %144 {strides = array<i32>} : memref<3x8x128xf32, #tpu.memory_space<vmem>>, vector<1x7x128xf32>,
    %c0_170 = arith.constant 0 : index
    %c0_171 = arith.constant 0 : index
    %c0_172 = arith.constant 0 : index
    %145 = vector.load %arg6[%c0_170, %c0_171, %c0_172] : memref<3x8x128xf32, #tpu.memory_space<vmem>>, vector<1x8x128xf32>
    %146 = vector.shape_cast %145 : vector<1x8x128xf32> to vector<8x128xf32>
    %c2_173 = arith.constant 2 : index
    %c0_174 = arith.constant 0 : index
    %c0_175 = arith.constant 0 : index
    %147 = vector.load %arg6[%c2_173, %c0_174, %c0_175] : memref<3x8x128xf32, #tpu.memory_space<vmem>>, vector<1x8x128xf32>
    %148 = vector.shape_cast %147 : vector<1x8x128xf32> to vector<8x128xf32>
    %149 = arith.addf %146, %148 : vector<8x128xf32>
    %c1_176 = arith.constant 1 : index
    %c0_177 = arith.constant 0 : index
    %c0_178 = arith.constant 0 : index
    %150 = vector.load %arg6[%c1_176, %c0_177, %c0_178] : memref<3x8x128xf32, #tpu.memory_space<vmem>>, vector<1x7x128xf32>
    %151 = vector.shape_cast %150 : vector<1x7x128xf32> to vector<7x128xf32>
    %c75 = arith.constant 75 : index
    %c0_179 = arith.constant 0 : index
    %152 = tpu.strided_load %arg7[%c75, %c0_179] {strides = array<i32: 2, 1>} : memref<225x128xf32, #tpu.memory_space<vmem>>, vector<8x128xf32>
    tpu.strided_store %arg7[%c75, %c0_179], %149 {strides = array<i32: 2, 1>} : memref<225x128xf32, #tpu.memory_space<vmem>>, vector<8x128xf32>
    %c76 = arith.constant 76 : index
    %c0_180 = arith.constant 0 : index
    %153 = tpu.strided_load %arg7[%c76, %c0_180] {strides = array<i32: 2, 1>} : memref<225x128xf32, #tpu.memory_space<vmem>>, vector<7x128xf32>
    tpu.strided_store %arg7[%c76, %c0_180], %151 {strides = array<i32: 2, 1>} : memref<225x128xf32, #tpu.memory_space<vmem>>, vector<7x128xf32>
    %c21 = arith.constant 21 : index
    %c0_181 = arith.constant 0 : index
    %154 = vector.load %arg5[%c21, %c0_181] : memref<49x1152xf32, #tpu.memory_space<vmem>>, vector<7x128xf32>
    %c14_182 = arith.constant 14 : index
    %c768_183 = arith.constant 768 : index
    %155 = vector.load %arg5[%c14_182, %c768_183] : memref<49x1152xf32, #tpu.memory_space<vmem>>, vector<7x128xf32>
    %156 = arith.addf %154, %155 : vector<7x128xf32>
    %c0_184 = arith.constant 0 : index
    %c0_185 = arith.constant 0 : index
    %c0_186 = arith.constant 0 : index
    %157 = vector.load %arg6[%c0_184, %c0_185, %c0_186] : memref<3x8x128xf32, #tpu.memory_space<vmem>>, vector<1x7x128xf32>
    %158 = vector.shape_cast %157 : vector<1x7x128xf32> to vector<7x128xf32>
    %159 = vector.shape_cast %156 : vector<7x128xf32> to vector<1x7x128xf32>
    tpu.vector_store %arg6[%c0_184, %c0_185, %c0_186], %159 {strides = array<i32>} : memref<3x8x128xf32, #tpu.memory_space<vmem>>, vector<1x7x128xf32>,
    %c21_187 = arith.constant 21 : index
    %c128_188 = arith.constant 128 : index
    %160 = vector.load %arg5[%c21_187, %c128_188] : memref<49x1152xf32, #tpu.memory_space<vmem>>, vector<7x128xf32>
    %c14_189 = arith.constant 14 : index
    %c896_190 = arith.constant 896 : index
    %161 = vector.load %arg5[%c14_189, %c896_190] : memref<49x1152xf32, #tpu.memory_space<vmem>>, vector<7x128xf32>
    %162 = arith.addf %160, %161 : vector<7x128xf32>
    %c1_191 = arith.constant 1 : index
    %c0_192 = arith.constant 0 : index
    %c0_193 = arith.constant 0 : index
    %163 = vector.load %arg6[%c1_191, %c0_192, %c0_193] : memref<3x8x128xf32, #tpu.memory_space<vmem>>, vector<1x7x128xf32>
    %164 = vector.shape_cast %163 : vector<1x7x128xf32> to vector<7x128xf32>
    %165 = vector.shape_cast %162 : vector<7x128xf32> to vector<1x7x128xf32>
    tpu.vector_store %arg6[%c1_191, %c0_192, %c0_193], %165 {strides = array<i32>} : memref<3x8x128xf32, #tpu.memory_space<vmem>>, vector<1x7x128xf32>,
    %c21_194 = arith.constant 21 : index
    %c256_195 = arith.constant 256 : index
    %166 = vector.load %arg5[%c21_194, %c256_195] : memref<49x1152xf32, #tpu.memory_space<vmem>>, vector<7x128xf32>
    %c14_196 = arith.constant 14 : index
    %c1024_197 = arith.constant 1024 : index
    %167 = vector.load %arg5[%c14_196, %c1024_197] : memref<49x1152xf32, #tpu.memory_space<vmem>>, vector<7x128xf32>
    %168 = arith.addf %166, %167 : vector<7x128xf32>
    %c2_198 = arith.constant 2 : index
    %c1_199 = arith.constant 1 : index
    %c0_200 = arith.constant 0 : index
    %169 = vector.load %arg6[%c2_198, %c1_199, %c0_200] : memref<3x8x128xf32, #tpu.memory_space<vmem>>, vector<1x7x128xf32>
    %170 = vector.shape_cast %169 : vector<1x7x128xf32> to vector<7x128xf32>
    %171 = vector.shape_cast %168 : vector<7x128xf32> to vector<1x7x128xf32>
    tpu.vector_store %arg6[%c2_198, %c1_199, %c0_200], %171 {strides = array<i32>} : memref<3x8x128xf32, #tpu.memory_space<vmem>>, vector<1x7x128xf32>,
    %c0_201 = arith.constant 0 : index
    %c0_202 = arith.constant 0 : index
    %c0_203 = arith.constant 0 : index
    %172 = vector.load %arg6[%c0_201, %c0_202, %c0_203] : memref<3x8x128xf32, #tpu.memory_space<vmem>>, vector<1x8x128xf32>
    %173 = vector.shape_cast %172 : vector<1x8x128xf32> to vector<8x128xf32>
    %c2_204 = arith.constant 2 : index
    %c0_205 = arith.constant 0 : index
    %c0_206 = arith.constant 0 : index
    %174 = vector.load %arg6[%c2_204, %c0_205, %c0_206] : memref<3x8x128xf32, #tpu.memory_space<vmem>>, vector<1x8x128xf32>
    %175 = vector.shape_cast %174 : vector<1x8x128xf32> to vector<8x128xf32>
    %176 = arith.addf %173, %175 : vector<8x128xf32>
    %c1_207 = arith.constant 1 : index
    %c0_208 = arith.constant 0 : index
    %c0_209 = arith.constant 0 : index
    %177 = vector.load %arg6[%c1_207, %c0_208, %c0_209] : memref<3x8x128xf32, #tpu.memory_space<vmem>>, vector<1x7x128xf32>
    %178 = vector.shape_cast %177 : vector<1x7x128xf32> to vector<7x128xf32>
    %c90 = arith.constant 90 : index
    %c0_210 = arith.constant 0 : index
    %179 = tpu.strided_load %arg7[%c90, %c0_210] {strides = array<i32: 2, 1>} : memref<225x128xf32, #tpu.memory_space<vmem>>, vector<8x128xf32>
    tpu.strided_store %arg7[%c90, %c0_210], %176 {strides = array<i32: 2, 1>} : memref<225x128xf32, #tpu.memory_space<vmem>>, vector<8x128xf32>
    %c91 = arith.constant 91 : index
    %c0_211 = arith.constant 0 : index
    %180 = tpu.strided_load %arg7[%c91, %c0_211] {strides = array<i32: 2, 1>} : memref<225x128xf32, #tpu.memory_space<vmem>>, vector<7x128xf32>
    tpu.strided_store %arg7[%c91, %c0_211], %178 {strides = array<i32: 2, 1>} : memref<225x128xf32, #tpu.memory_space<vmem>>, vector<7x128xf32>
    %c21_212 = arith.constant 21 : index
    %c384_213 = arith.constant 384 : index
    %181 = vector.load %arg5[%c21_212, %c384_213] : memref<49x1152xf32, #tpu.memory_space<vmem>>, vector<7x128xf32>
    %c0_214 = arith.constant 0 : index
    %c0_215 = arith.constant 0 : index
    %c0_216 = arith.constant 0 : index
    %182 = vector.load %arg6[%c0_214, %c0_215, %c0_216] : memref<3x8x128xf32, #tpu.memory_space<vmem>>, vector<1x7x128xf32>
    %183 = vector.shape_cast %182 : vector<1x7x128xf32> to vector<7x128xf32>
    %184 = vector.shape_cast %181 : vector<7x128xf32> to vector<1x7x128xf32>
    tpu.vector_store %arg6[%c0_214, %c0_215, %c0_216], %184 {strides = array<i32>} : memref<3x8x128xf32, #tpu.memory_space<vmem>>, vector<1x7x128xf32>,
    %c21_217 = arith.constant 21 : index
    %c512_218 = arith.constant 512 : index
    %185 = vector.load %arg5[%c21_217, %c512_218] : memref<49x1152xf32, #tpu.memory_space<vmem>>, vector<7x128xf32>
    %c1_219 = arith.constant 1 : index
    %c0_220 = arith.constant 0 : index
    %c0_221 = arith.constant 0 : index
    %186 = vector.load %arg6[%c1_219, %c0_220, %c0_221] : memref<3x8x128xf32, #tpu.memory_space<vmem>>, vector<1x7x128xf32>
    %187 = vector.shape_cast %186 : vector<1x7x128xf32> to vector<7x128xf32>
    %188 = vector.shape_cast %185 : vector<7x128xf32> to vector<1x7x128xf32>
    tpu.vector_store %arg6[%c1_219, %c0_220, %c0_221], %188 {strides = array<i32>} : memref<3x8x128xf32, #tpu.memory_space<vmem>>, vector<1x7x128xf32>,
    %c21_222 = arith.constant 21 : index
    %c640_223 = arith.constant 640 : index
    %189 = vector.load %arg5[%c21_222, %c640_223] : memref<49x1152xf32, #tpu.memory_space<vmem>>, vector<7x128xf32>
    %c2_224 = arith.constant 2 : index
    %c1_225 = arith.constant 1 : index
    %c0_226 = arith.constant 0 : index
    %190 = vector.load %arg6[%c2_224, %c1_225, %c0_226] : memref<3x8x128xf32, #tpu.memory_space<vmem>>, vector<1x7x128xf32>
    %191 = vector.shape_cast %190 : vector<1x7x128xf32> to vector<7x128xf32>
    %192 = vector.shape_cast %189 : vector<7x128xf32> to vector<1x7x128xf32>
    tpu.vector_store %arg6[%c2_224, %c1_225, %c0_226], %192 {strides = array<i32>} : memref<3x8x128xf32, #tpu.memory_space<vmem>>, vector<1x7x128xf32>,
    %c0_227 = arith.constant 0 : index
    %c0_228 = arith.constant 0 : index
    %c0_229 = arith.constant 0 : index
    %193 = vector.load %arg6[%c0_227, %c0_228, %c0_229] : memref<3x8x128xf32, #tpu.memory_space<vmem>>, vector<1x8x128xf32>
    %194 = vector.shape_cast %193 : vector<1x8x128xf32> to vector<8x128xf32>
    %c2_230 = arith.constant 2 : index
    %c0_231 = arith.constant 0 : index
    %c0_232 = arith.constant 0 : index
    %195 = vector.load %arg6[%c2_230, %c0_231, %c0_232] : memref<3x8x128xf32, #tpu.memory_space<vmem>>, vector<1x8x128xf32>
    %196 = vector.shape_cast %195 : vector<1x8x128xf32> to vector<8x128xf32>
    %197 = arith.addf %194, %196 : vector<8x128xf32>
    %c1_233 = arith.constant 1 : index
    %c0_234 = arith.constant 0 : index
    %c0_235 = arith.constant 0 : index
    %198 = vector.load %arg6[%c1_233, %c0_234, %c0_235] : memref<3x8x128xf32, #tpu.memory_space<vmem>>, vector<1x7x128xf32>
    %199 = vector.shape_cast %198 : vector<1x7x128xf32> to vector<7x128xf32>
    %c105 = arith.constant 105 : index
    %c0_236 = arith.constant 0 : index
    %200 = tpu.strided_load %arg7[%c105, %c0_236] {strides = array<i32: 2, 1>} : memref<225x128xf32, #tpu.memory_space<vmem>>, vector<8x128xf32>
    tpu.strided_store %arg7[%c105, %c0_236], %197 {strides = array<i32: 2, 1>} : memref<225x128xf32, #tpu.memory_space<vmem>>, vector<8x128xf32>
    %c106 = arith.constant 106 : index
    %c0_237 = arith.constant 0 : index
    %201 = tpu.strided_load %arg7[%c106, %c0_237] {strides = array<i32: 2, 1>} : memref<225x128xf32, #tpu.memory_space<vmem>>, vector<7x128xf32>
    tpu.strided_store %arg7[%c106, %c0_237], %199 {strides = array<i32: 2, 1>} : memref<225x128xf32, #tpu.memory_space<vmem>>, vector<7x128xf32>
    %c28 = arith.constant 28 : index
    %c0_238 = arith.constant 0 : index
    %202 = vector.load %arg5[%c28, %c0_238] : memref<49x1152xf32, #tpu.memory_space<vmem>>, vector<7x128xf32>
    %c21_239 = arith.constant 21 : index
    %c768_240 = arith.constant 768 : index
    %203 = vector.load %arg5[%c21_239, %c768_240] : memref<49x1152xf32, #tpu.memory_space<vmem>>, vector<7x128xf32>
    %204 = arith.addf %202, %203 : vector<7x128xf32>
    %c0_241 = arith.constant 0 : index
    %c0_242 = arith.constant 0 : index
    %c0_243 = arith.constant 0 : index
    %205 = vector.load %arg6[%c0_241, %c0_242, %c0_243] : memref<3x8x128xf32, #tpu.memory_space<vmem>>, vector<1x7x128xf32>
    %206 = vector.shape_cast %205 : vector<1x7x128xf32> to vector<7x128xf32>
    %207 = vector.shape_cast %204 : vector<7x128xf32> to vector<1x7x128xf32>
    tpu.vector_store %arg6[%c0_241, %c0_242, %c0_243], %207 {strides = array<i32>} : memref<3x8x128xf32, #tpu.memory_space<vmem>>, vector<1x7x128xf32>,
    %c28_244 = arith.constant 28 : index
    %c128_245 = arith.constant 128 : index
    %208 = vector.load %arg5[%c28_244, %c128_245] : memref<49x1152xf32, #tpu.memory_space<vmem>>, vector<7x128xf32>
    %c21_246 = arith.constant 21 : index
    %c896_247 = arith.constant 896 : index
    %209 = vector.load %arg5[%c21_246, %c896_247] : memref<49x1152xf32, #tpu.memory_space<vmem>>, vector<7x128xf32>
    %210 = arith.addf %208, %209 : vector<7x128xf32>
    %c1_248 = arith.constant 1 : index
    %c0_249 = arith.constant 0 : index
    %c0_250 = arith.constant 0 : index
    %211 = vector.load %arg6[%c1_248, %c0_249, %c0_250] : memref<3x8x128xf32, #tpu.memory_space<vmem>>, vector<1x7x128xf32>
    %212 = vector.shape_cast %211 : vector<1x7x128xf32> to vector<7x128xf32>
    %213 = vector.shape_cast %210 : vector<7x128xf32> to vector<1x7x128xf32>
    tpu.vector_store %arg6[%c1_248, %c0_249, %c0_250], %213 {strides = array<i32>} : memref<3x8x128xf32, #tpu.memory_space<vmem>>, vector<1x7x128xf32>,
    %c28_251 = arith.constant 28 : index
    %c256_252 = arith.constant 256 : index
    %214 = vector.load %arg5[%c28_251, %c256_252] : memref<49x1152xf32, #tpu.memory_space<vmem>>, vector<7x128xf32>
    %c21_253 = arith.constant 21 : index
    %c1024_254 = arith.constant 1024 : index
    %215 = vector.load %arg5[%c21_253, %c1024_254] : memref<49x1152xf32, #tpu.memory_space<vmem>>, vector<7x128xf32>
    %216 = arith.addf %214, %215 : vector<7x128xf32>
    %c2_255 = arith.constant 2 : index
    %c1_256 = arith.constant 1 : index
    %c0_257 = arith.constant 0 : index
    %217 = vector.load %arg6[%c2_255, %c1_256, %c0_257] : memref<3x8x128xf32, #tpu.memory_space<vmem>>, vector<1x7x128xf32>
    %218 = vector.shape_cast %217 : vector<1x7x128xf32> to vector<7x128xf32>
    %219 = vector.shape_cast %216 : vector<7x128xf32> to vector<1x7x128xf32>
    tpu.vector_store %arg6[%c2_255, %c1_256, %c0_257], %219 {strides = array<i32>} : memref<3x8x128xf32, #tpu.memory_space<vmem>>, vector<1x7x128xf32>,
    %c0_258 = arith.constant 0 : index
    %c0_259 = arith.constant 0 : index
    %c0_260 = arith.constant 0 : index
    %220 = vector.load %arg6[%c0_258, %c0_259, %c0_260] : memref<3x8x128xf32, #tpu.memory_space<vmem>>, vector<1x8x128xf32>
    %221 = vector.shape_cast %220 : vector<1x8x128xf32> to vector<8x128xf32>
    %c2_261 = arith.constant 2 : index
    %c0_262 = arith.constant 0 : index
    %c0_263 = arith.constant 0 : index
    %222 = vector.load %arg6[%c2_261, %c0_262, %c0_263] : memref<3x8x128xf32, #tpu.memory_space<vmem>>, vector<1x8x128xf32>
    %223 = vector.shape_cast %222 : vector<1x8x128xf32> to vector<8x128xf32>
    %224 = arith.addf %221, %223 : vector<8x128xf32>
    %c1_264 = arith.constant 1 : index
    %c0_265 = arith.constant 0 : index
    %c0_266 = arith.constant 0 : index
    %225 = vector.load %arg6[%c1_264, %c0_265, %c0_266] : memref<3x8x128xf32, #tpu.memory_space<vmem>>, vector<1x7x128xf32>
    %226 = vector.shape_cast %225 : vector<1x7x128xf32> to vector<7x128xf32>
    %c120 = arith.constant 120 : index
    %c0_267 = arith.constant 0 : index
    %227 = tpu.strided_load %arg7[%c120, %c0_267] {strides = array<i32: 2, 1>} : memref<225x128xf32, #tpu.memory_space<vmem>>, vector<8x128xf32>
    tpu.strided_store %arg7[%c120, %c0_267], %224 {strides = array<i32: 2, 1>} : memref<225x128xf32, #tpu.memory_space<vmem>>, vector<8x128xf32>
    %c121 = arith.constant 121 : index
    %c0_268 = arith.constant 0 : index
    %228 = tpu.strided_load %arg7[%c121, %c0_268] {strides = array<i32: 2, 1>} : memref<225x128xf32, #tpu.memory_space<vmem>>, vector<7x128xf32>
    tpu.strided_store %arg7[%c121, %c0_268], %226 {strides = array<i32: 2, 1>} : memref<225x128xf32, #tpu.memory_space<vmem>>, vector<7x128xf32>
    %c28_269 = arith.constant 28 : index
    %c384_270 = arith.constant 384 : index
    %229 = vector.load %arg5[%c28_269, %c384_270] : memref<49x1152xf32, #tpu.memory_space<vmem>>, vector<7x128xf32>
    %c0_271 = arith.constant 0 : index
    %c0_272 = arith.constant 0 : index
    %c0_273 = arith.constant 0 : index
    %230 = vector.load %arg6[%c0_271, %c0_272, %c0_273] : memref<3x8x128xf32, #tpu.memory_space<vmem>>, vector<1x7x128xf32>
    %231 = vector.shape_cast %230 : vector<1x7x128xf32> to vector<7x128xf32>
    %232 = vector.shape_cast %229 : vector<7x128xf32> to vector<1x7x128xf32>
    tpu.vector_store %arg6[%c0_271, %c0_272, %c0_273], %232 {strides = array<i32>} : memref<3x8x128xf32, #tpu.memory_space<vmem>>, vector<1x7x128xf32>,
    %c28_274 = arith.constant 28 : index
    %c512_275 = arith.constant 512 : index
    %233 = vector.load %arg5[%c28_274, %c512_275] : memref<49x1152xf32, #tpu.memory_space<vmem>>, vector<7x128xf32>
    %c1_276 = arith.constant 1 : index
    %c0_277 = arith.constant 0 : index
    %c0_278 = arith.constant 0 : index
    %234 = vector.load %arg6[%c1_276, %c0_277, %c0_278] : memref<3x8x128xf32, #tpu.memory_space<vmem>>, vector<1x7x128xf32>
    %235 = vector.shape_cast %234 : vector<1x7x128xf32> to vector<7x128xf32>
    %236 = vector.shape_cast %233 : vector<7x128xf32> to vector<1x7x128xf32>
    tpu.vector_store %arg6[%c1_276, %c0_277, %c0_278], %236 {strides = array<i32>} : memref<3x8x128xf32, #tpu.memory_space<vmem>>, vector<1x7x128xf32>,
    %c28_279 = arith.constant 28 : index
    %c640_280 = arith.constant 640 : index
    %237 = vector.load %arg5[%c28_279, %c640_280] : memref<49x1152xf32, #tpu.memory_space<vmem>>, vector<7x128xf32>
    %c2_281 = arith.constant 2 : index
    %c1_282 = arith.constant 1 : index
    %c0_283 = arith.constant 0 : index
    %238 = vector.load %arg6[%c2_281, %c1_282, %c0_283] : memref<3x8x128xf32, #tpu.memory_space<vmem>>, vector<1x7x128xf32>
    %239 = vector.shape_cast %238 : vector<1x7x128xf32> to vector<7x128xf32>
    %240 = vector.shape_cast %237 : vector<7x128xf32> to vector<1x7x128xf32>
    tpu.vector_store %arg6[%c2_281, %c1_282, %c0_283], %240 {strides = array<i32>} : memref<3x8x128xf32, #tpu.memory_space<vmem>>, vector<1x7x128xf32>,
    %c0_284 = arith.constant 0 : index
    %c0_285 = arith.constant 0 : index
    %c0_286 = arith.constant 0 : index
    %241 = vector.load %arg6[%c0_284, %c0_285, %c0_286] : memref<3x8x128xf32, #tpu.memory_space<vmem>>, vector<1x8x128xf32>
    %242 = vector.shape_cast %241 : vector<1x8x128xf32> to vector<8x128xf32>
    %c2_287 = arith.constant 2 : index
    %c0_288 = arith.constant 0 : index
    %c0_289 = arith.constant 0 : index
    %243 = vector.load %arg6[%c2_287, %c0_288, %c0_289] : memref<3x8x128xf32, #tpu.memory_space<vmem>>, vector<1x8x128xf32>
    %244 = vector.shape_cast %243 : vector<1x8x128xf32> to vector<8x128xf32>
    %245 = arith.addf %242, %244 : vector<8x128xf32>
    %c1_290 = arith.constant 1 : index
    %c0_291 = arith.constant 0 : index
    %c0_292 = arith.constant 0 : index
    %246 = vector.load %arg6[%c1_290, %c0_291, %c0_292] : memref<3x8x128xf32, #tpu.memory_space<vmem>>, vector<1x7x128xf32>
    %247 = vector.shape_cast %246 : vector<1x7x128xf32> to vector<7x128xf32>
    %c135 = arith.constant 135 : index
    %c0_293 = arith.constant 0 : index
    %248 = tpu.strided_load %arg7[%c135, %c0_293] {strides = array<i32: 2, 1>} : memref<225x128xf32, #tpu.memory_space<vmem>>, vector<8x128xf32>
    tpu.strided_store %arg7[%c135, %c0_293], %245 {strides = array<i32: 2, 1>} : memref<225x128xf32, #tpu.memory_space<vmem>>, vector<8x128xf32>
    %c136 = arith.constant 136 : index
    %c0_294 = arith.constant 0 : index
    %249 = tpu.strided_load %arg7[%c136, %c0_294] {strides = array<i32: 2, 1>} : memref<225x128xf32, #tpu.memory_space<vmem>>, vector<7x128xf32>
    tpu.strided_store %arg7[%c136, %c0_294], %247 {strides = array<i32: 2, 1>} : memref<225x128xf32, #tpu.memory_space<vmem>>, vector<7x128xf32>
    %c35 = arith.constant 35 : index
    %c0_295 = arith.constant 0 : index
    %250 = vector.load %arg5[%c35, %c0_295] : memref<49x1152xf32, #tpu.memory_space<vmem>>, vector<7x128xf32>
    %c28_296 = arith.constant 28 : index
    %c768_297 = arith.constant 768 : index
    %251 = vector.load %arg5[%c28_296, %c768_297] : memref<49x1152xf32, #tpu.memory_space<vmem>>, vector<7x128xf32>
    %252 = arith.addf %250, %251 : vector<7x128xf32>
    %c0_298 = arith.constant 0 : index
    %c0_299 = arith.constant 0 : index
    %c0_300 = arith.constant 0 : index
    %253 = vector.load %arg6[%c0_298, %c0_299, %c0_300] : memref<3x8x128xf32, #tpu.memory_space<vmem>>, vector<1x7x128xf32>
    %254 = vector.shape_cast %253 : vector<1x7x128xf32> to vector<7x128xf32>
    %255 = vector.shape_cast %252 : vector<7x128xf32> to vector<1x7x128xf32>
    tpu.vector_store %arg6[%c0_298, %c0_299, %c0_300], %255 {strides = array<i32>} : memref<3x8x128xf32, #tpu.memory_space<vmem>>, vector<1x7x128xf32>,
    %c35_301 = arith.constant 35 : index
    %c128_302 = arith.constant 128 : index
    %256 = vector.load %arg5[%c35_301, %c128_302] : memref<49x1152xf32, #tpu.memory_space<vmem>>, vector<7x128xf32>
    %c28_303 = arith.constant 28 : index
    %c896_304 = arith.constant 896 : index
    %257 = vector.load %arg5[%c28_303, %c896_304] : memref<49x1152xf32, #tpu.memory_space<vmem>>, vector<7x128xf32>
    %258 = arith.addf %256, %257 : vector<7x128xf32>
    %c1_305 = arith.constant 1 : index
    %c0_306 = arith.constant 0 : index
    %c0_307 = arith.constant 0 : index
    %259 = vector.load %arg6[%c1_305, %c0_306, %c0_307] : memref<3x8x128xf32, #tpu.memory_space<vmem>>, vector<1x7x128xf32>
    %260 = vector.shape_cast %259 : vector<1x7x128xf32> to vector<7x128xf32>
    %261 = vector.shape_cast %258 : vector<7x128xf32> to vector<1x7x128xf32>
    tpu.vector_store %arg6[%c1_305, %c0_306, %c0_307], %261 {strides = array<i32>} : memref<3x8x128xf32, #tpu.memory_space<vmem>>, vector<1x7x128xf32>,
    %c35_308 = arith.constant 35 : index
    %c256_309 = arith.constant 256 : index
    %262 = vector.load %arg5[%c35_308, %c256_309] : memref<49x1152xf32, #tpu.memory_space<vmem>>, vector<7x128xf32>
    %c28_310 = arith.constant 28 : index
    %c1024_311 = arith.constant 1024 : index
    %263 = vector.load %arg5[%c28_310, %c1024_311] : memref<49x1152xf32, #tpu.memory_space<vmem>>, vector<7x128xf32>
    %264 = arith.addf %262, %263 : vector<7x128xf32>
    %c2_312 = arith.constant 2 : index
    %c1_313 = arith.constant 1 : index
    %c0_314 = arith.constant 0 : index
    %265 = vector.load %arg6[%c2_312, %c1_313, %c0_314] : memref<3x8x128xf32, #tpu.memory_space<vmem>>, vector<1x7x128xf32>
    %266 = vector.shape_cast %265 : vector<1x7x128xf32> to vector<7x128xf32>
    %267 = vector.shape_cast %264 : vector<7x128xf32> to vector<1x7x128xf32>
    tpu.vector_store %arg6[%c2_312, %c1_313, %c0_314], %267 {strides = array<i32>} : memref<3x8x128xf32, #tpu.memory_space<vmem>>, vector<1x7x128xf32>,
    %c0_315 = arith.constant 0 : index
    %c0_316 = arith.constant 0 : index
    %c0_317 = arith.constant 0 : index
    %268 = vector.load %arg6[%c0_315, %c0_316, %c0_317] : memref<3x8x128xf32, #tpu.memory_space<vmem>>, vector<1x8x128xf32>
    %269 = vector.shape_cast %268 : vector<1x8x128xf32> to vector<8x128xf32>
    %c2_318 = arith.constant 2 : index
    %c0_319 = arith.constant 0 : index
    %c0_320 = arith.constant 0 : index
    %270 = vector.load %arg6[%c2_318, %c0_319, %c0_320] : memref<3x8x128xf32, #tpu.memory_space<vmem>>, vector<1x8x128xf32>
    %271 = vector.shape_cast %270 : vector<1x8x128xf32> to vector<8x128xf32>
    %272 = arith.addf %269, %271 : vector<8x128xf32>
    %c1_321 = arith.constant 1 : index
    %c0_322 = arith.constant 0 : index
    %c0_323 = arith.constant 0 : index
    %273 = vector.load %arg6[%c1_321, %c0_322, %c0_323] : memref<3x8x128xf32, #tpu.memory_space<vmem>>, vector<1x7x128xf32>
    %274 = vector.shape_cast %273 : vector<1x7x128xf32> to vector<7x128xf32>
    %c150 = arith.constant 150 : index
    %c0_324 = arith.constant 0 : index
    %275 = tpu.strided_load %arg7[%c150, %c0_324] {strides = array<i32: 2, 1>} : memref<225x128xf32, #tpu.memory_space<vmem>>, vector<8x128xf32>
    tpu.strided_store %arg7[%c150, %c0_324], %272 {strides = array<i32: 2, 1>} : memref<225x128xf32, #tpu.memory_space<vmem>>, vector<8x128xf32>
    %c151 = arith.constant 151 : index
    %c0_325 = arith.constant 0 : index
    %276 = tpu.strided_load %arg7[%c151, %c0_325] {strides = array<i32: 2, 1>} : memref<225x128xf32, #tpu.memory_space<vmem>>, vector<7x128xf32>
    tpu.strided_store %arg7[%c151, %c0_325], %274 {strides = array<i32: 2, 1>} : memref<225x128xf32, #tpu.memory_space<vmem>>, vector<7x128xf32>
    %c35_326 = arith.constant 35 : index
    %c384_327 = arith.constant 384 : index
    %277 = vector.load %arg5[%c35_326, %c384_327] : memref<49x1152xf32, #tpu.memory_space<vmem>>, vector<7x128xf32>
    %c0_328 = arith.constant 0 : index
    %c0_329 = arith.constant 0 : index
    %c0_330 = arith.constant 0 : index
    %278 = vector.load %arg6[%c0_328, %c0_329, %c0_330] : memref<3x8x128xf32, #tpu.memory_space<vmem>>, vector<1x7x128xf32>
    %279 = vector.shape_cast %278 : vector<1x7x128xf32> to vector<7x128xf32>
    %280 = vector.shape_cast %277 : vector<7x128xf32> to vector<1x7x128xf32>
    tpu.vector_store %arg6[%c0_328, %c0_329, %c0_330], %280 {strides = array<i32>} : memref<3x8x128xf32, #tpu.memory_space<vmem>>, vector<1x7x128xf32>,
    %c35_331 = arith.constant 35 : index
    %c512_332 = arith.constant 512 : index
    %281 = vector.load %arg5[%c35_331, %c512_332] : memref<49x1152xf32, #tpu.memory_space<vmem>>, vector<7x128xf32>
    %c1_333 = arith.constant 1 : index
    %c0_334 = arith.constant 0 : index
    %c0_335 = arith.constant 0 : index
    %282 = vector.load %arg6[%c1_333, %c0_334, %c0_335] : memref<3x8x128xf32, #tpu.memory_space<vmem>>, vector<1x7x128xf32>
    %283 = vector.shape_cast %282 : vector<1x7x128xf32> to vector<7x128xf32>
    %284 = vector.shape_cast %281 : vector<7x128xf32> to vector<1x7x128xf32>
    tpu.vector_store %arg6[%c1_333, %c0_334, %c0_335], %284 {strides = array<i32>} : memref<3x8x128xf32, #tpu.memory_space<vmem>>, vector<1x7x128xf32>,
    %c35_336 = arith.constant 35 : index
    %c640_337 = arith.constant 640 : index
    %285 = vector.load %arg5[%c35_336, %c640_337] : memref<49x1152xf32, #tpu.memory_space<vmem>>, vector<7x128xf32>
    %c2_338 = arith.constant 2 : index
    %c1_339 = arith.constant 1 : index
    %c0_340 = arith.constant 0 : index
    %286 = vector.load %arg6[%c2_338, %c1_339, %c0_340] : memref<3x8x128xf32, #tpu.memory_space<vmem>>, vector<1x7x128xf32>
    %287 = vector.shape_cast %286 : vector<1x7x128xf32> to vector<7x128xf32>
    %288 = vector.shape_cast %285 : vector<7x128xf32> to vector<1x7x128xf32>
    tpu.vector_store %arg6[%c2_338, %c1_339, %c0_340], %288 {strides = array<i32>} : memref<3x8x128xf32, #tpu.memory_space<vmem>>, vector<1x7x128xf32>,
    %c0_341 = arith.constant 0 : index
    %c0_342 = arith.constant 0 : index
    %c0_343 = arith.constant 0 : index
    %289 = vector.load %arg6[%c0_341, %c0_342, %c0_343] : memref<3x8x128xf32, #tpu.memory_space<vmem>>, vector<1x8x128xf32>
    %290 = vector.shape_cast %289 : vector<1x8x128xf32> to vector<8x128xf32>
    %c2_344 = arith.constant 2 : index
    %c0_345 = arith.constant 0 : index
    %c0_346 = arith.constant 0 : index
    %291 = vector.load %arg6[%c2_344, %c0_345, %c0_346] : memref<3x8x128xf32, #tpu.memory_space<vmem>>, vector<1x8x128xf32>
    %292 = vector.shape_cast %291 : vector<1x8x128xf32> to vector<8x128xf32>
    %293 = arith.addf %290, %292 : vector<8x128xf32>
    %c1_347 = arith.constant 1 : index
    %c0_348 = arith.constant 0 : index
    %c0_349 = arith.constant 0 : index
    %294 = vector.load %arg6[%c1_347, %c0_348, %c0_349] : memref<3x8x128xf32, #tpu.memory_space<vmem>>, vector<1x7x128xf32>
    %295 = vector.shape_cast %294 : vector<1x7x128xf32> to vector<7x128xf32>
    %c165 = arith.constant 165 : index
    %c0_350 = arith.constant 0 : index
    %296 = tpu.strided_load %arg7[%c165, %c0_350] {strides = array<i32: 2, 1>} : memref<225x128xf32, #tpu.memory_space<vmem>>, vector<8x128xf32>
    tpu.strided_store %arg7[%c165, %c0_350], %293 {strides = array<i32: 2, 1>} : memref<225x128xf32, #tpu.memory_space<vmem>>, vector<8x128xf32>
    %c166 = arith.constant 166 : index
    %c0_351 = arith.constant 0 : index
    %297 = tpu.strided_load %arg7[%c166, %c0_351] {strides = array<i32: 2, 1>} : memref<225x128xf32, #tpu.memory_space<vmem>>, vector<7x128xf32>
    tpu.strided_store %arg7[%c166, %c0_351], %295 {strides = array<i32: 2, 1>} : memref<225x128xf32, #tpu.memory_space<vmem>>, vector<7x128xf32>
    %c42 = arith.constant 42 : index
    %c0_352 = arith.constant 0 : index
    %298 = vector.load %arg5[%c42, %c0_352] : memref<49x1152xf32, #tpu.memory_space<vmem>>, vector<7x128xf32>
    %c35_353 = arith.constant 35 : index
    %c768_354 = arith.constant 768 : index
    %299 = vector.load %arg5[%c35_353, %c768_354] : memref<49x1152xf32, #tpu.memory_space<vmem>>, vector<7x128xf32>
    %300 = arith.addf %298, %299 : vector<7x128xf32>
    %c0_355 = arith.constant 0 : index
    %c0_356 = arith.constant 0 : index
    %c0_357 = arith.constant 0 : index
    %301 = vector.load %arg6[%c0_355, %c0_356, %c0_357] : memref<3x8x128xf32, #tpu.memory_space<vmem>>, vector<1x7x128xf32>
    %302 = vector.shape_cast %301 : vector<1x7x128xf32> to vector<7x128xf32>
    %303 = vector.shape_cast %300 : vector<7x128xf32> to vector<1x7x128xf32>
    tpu.vector_store %arg6[%c0_355, %c0_356, %c0_357], %303 {strides = array<i32>} : memref<3x8x128xf32, #tpu.memory_space<vmem>>, vector<1x7x128xf32>,
    %c42_358 = arith.constant 42 : index
    %c128_359 = arith.constant 128 : index
    %304 = vector.load %arg5[%c42_358, %c128_359] : memref<49x1152xf32, #tpu.memory_space<vmem>>, vector<7x128xf32>
    %c35_360 = arith.constant 35 : index
    %c896_361 = arith.constant 896 : index
    %305 = vector.load %arg5[%c35_360, %c896_361] : memref<49x1152xf32, #tpu.memory_space<vmem>>, vector<7x128xf32>
    %306 = arith.addf %304, %305 : vector<7x128xf32>
    %c1_362 = arith.constant 1 : index
    %c0_363 = arith.constant 0 : index
    %c0_364 = arith.constant 0 : index
    %307 = vector.load %arg6[%c1_362, %c0_363, %c0_364] : memref<3x8x128xf32, #tpu.memory_space<vmem>>, vector<1x7x128xf32>
    %308 = vector.shape_cast %307 : vector<1x7x128xf32> to vector<7x128xf32>
    %309 = vector.shape_cast %306 : vector<7x128xf32> to vector<1x7x128xf32>
    tpu.vector_store %arg6[%c1_362, %c0_363, %c0_364], %309 {strides = array<i32>} : memref<3x8x128xf32, #tpu.memory_space<vmem>>, vector<1x7x128xf32>,
    %c42_365 = arith.constant 42 : index
    %c256_366 = arith.constant 256 : index
    %310 = vector.load %arg5[%c42_365, %c256_366] : memref<49x1152xf32, #tpu.memory_space<vmem>>, vector<7x128xf32>
    %c35_367 = arith.constant 35 : index
    %c1024_368 = arith.constant 1024 : index
    %311 = vector.load %arg5[%c35_367, %c1024_368] : memref<49x1152xf32, #tpu.memory_space<vmem>>, vector<7x128xf32>
    %312 = arith.addf %310, %311 : vector<7x128xf32>
    %c2_369 = arith.constant 2 : index
    %c1_370 = arith.constant 1 : index
    %c0_371 = arith.constant 0 : index
    %313 = vector.load %arg6[%c2_369, %c1_370, %c0_371] : memref<3x8x128xf32, #tpu.memory_space<vmem>>, vector<1x7x128xf32>
    %314 = vector.shape_cast %313 : vector<1x7x128xf32> to vector<7x128xf32>
    %315 = vector.shape_cast %312 : vector<7x128xf32> to vector<1x7x128xf32>
    tpu.vector_store %arg6[%c2_369, %c1_370, %c0_371], %315 {strides = array<i32>} : memref<3x8x128xf32, #tpu.memory_space<vmem>>, vector<1x7x128xf32>,
    %c0_372 = arith.constant 0 : index
    %c0_373 = arith.constant 0 : index
    %c0_374 = arith.constant 0 : index
    %316 = vector.load %arg6[%c0_372, %c0_373, %c0_374] : memref<3x8x128xf32, #tpu.memory_space<vmem>>, vector<1x8x128xf32>
    %317 = vector.shape_cast %316 : vector<1x8x128xf32> to vector<8x128xf32>
    %c2_375 = arith.constant 2 : index
    %c0_376 = arith.constant 0 : index
    %c0_377 = arith.constant 0 : index
    %318 = vector.load %arg6[%c2_375, %c0_376, %c0_377] : memref<3x8x128xf32, #tpu.memory_space<vmem>>, vector<1x8x128xf32>
    %319 = vector.shape_cast %318 : vector<1x8x128xf32> to vector<8x128xf32>
    %320 = arith.addf %317, %319 : vector<8x128xf32>
    %c1_378 = arith.constant 1 : index
    %c0_379 = arith.constant 0 : index
    %c0_380 = arith.constant 0 : index
    %321 = vector.load %arg6[%c1_378, %c0_379, %c0_380] : memref<3x8x128xf32, #tpu.memory_space<vmem>>, vector<1x7x128xf32>
    %322 = vector.shape_cast %321 : vector<1x7x128xf32> to vector<7x128xf32>
    %c180 = arith.constant 180 : index
    %c0_381 = arith.constant 0 : index
    %323 = tpu.strided_load %arg7[%c180, %c0_381] {strides = array<i32: 2, 1>} : memref<225x128xf32, #tpu.memory_space<vmem>>, vector<8x128xf32>
    tpu.strided_store %arg7[%c180, %c0_381], %320 {strides = array<i32: 2, 1>} : memref<225x128xf32, #tpu.memory_space<vmem>>, vector<8x128xf32>
    %c181 = arith.constant 181 : index
    %c0_382 = arith.constant 0 : index
    %324 = tpu.strided_load %arg7[%c181, %c0_382] {strides = array<i32: 2, 1>} : memref<225x128xf32, #tpu.memory_space<vmem>>, vector<7x128xf32>
    tpu.strided_store %arg7[%c181, %c0_382], %322 {strides = array<i32: 2, 1>} : memref<225x128xf32, #tpu.memory_space<vmem>>, vector<7x128xf32>
    %c42_383 = arith.constant 42 : index
    %c384_384 = arith.constant 384 : index
    %325 = vector.load %arg5[%c42_383, %c384_384] : memref<49x1152xf32, #tpu.memory_space<vmem>>, vector<7x128xf32>
    %c0_385 = arith.constant 0 : index
    %c0_386 = arith.constant 0 : index
    %c0_387 = arith.constant 0 : index
    %326 = vector.load %arg6[%c0_385, %c0_386, %c0_387] : memref<3x8x128xf32, #tpu.memory_space<vmem>>, vector<1x7x128xf32>
    %327 = vector.shape_cast %326 : vector<1x7x128xf32> to vector<7x128xf32>
    %328 = vector.shape_cast %325 : vector<7x128xf32> to vector<1x7x128xf32>
    tpu.vector_store %arg6[%c0_385, %c0_386, %c0_387], %328 {strides = array<i32>} : memref<3x8x128xf32, #tpu.memory_space<vmem>>, vector<1x7x128xf32>,
    %c42_388 = arith.constant 42 : index
    %c512_389 = arith.constant 512 : index
    %329 = vector.load %arg5[%c42_388, %c512_389] : memref<49x1152xf32, #tpu.memory_space<vmem>>, vector<7x128xf32>
    %c1_390 = arith.constant 1 : index
    %c0_391 = arith.constant 0 : index
    %c0_392 = arith.constant 0 : index
    %330 = vector.load %arg6[%c1_390, %c0_391, %c0_392] : memref<3x8x128xf32, #tpu.memory_space<vmem>>, vector<1x7x128xf32>
    %331 = vector.shape_cast %330 : vector<1x7x128xf32> to vector<7x128xf32>
    %332 = vector.shape_cast %329 : vector<7x128xf32> to vector<1x7x128xf32>
    tpu.vector_store %arg6[%c1_390, %c0_391, %c0_392], %332 {strides = array<i32>} : memref<3x8x128xf32, #tpu.memory_space<vmem>>, vector<1x7x128xf32>,
    %c42_393 = arith.constant 42 : index
    %c640_394 = arith.constant 640 : index
    %333 = vector.load %arg5[%c42_393, %c640_394] : memref<49x1152xf32, #tpu.memory_space<vmem>>, vector<7x128xf32>
    %c2_395 = arith.constant 2 : index
    %c1_396 = arith.constant 1 : index
    %c0_397 = arith.constant 0 : index
    %334 = vector.load %arg6[%c2_395, %c1_396, %c0_397] : memref<3x8x128xf32, #tpu.memory_space<vmem>>, vector<1x7x128xf32>
    %335 = vector.shape_cast %334 : vector<1x7x128xf32> to vector<7x128xf32>
    %336 = vector.shape_cast %333 : vector<7x128xf32> to vector<1x7x128xf32>
    tpu.vector_store %arg6[%c2_395, %c1_396, %c0_397], %336 {strides = array<i32>} : memref<3x8x128xf32, #tpu.memory_space<vmem>>, vector<1x7x128xf32>,
    %c0_398 = arith.constant 0 : index
    %c0_399 = arith.constant 0 : index
    %c0_400 = arith.constant 0 : index
    %337 = vector.load %arg6[%c0_398, %c0_399, %c0_400] : memref<3x8x128xf32, #tpu.memory_space<vmem>>, vector<1x8x128xf32>
    %338 = vector.shape_cast %337 : vector<1x8x128xf32> to vector<8x128xf32>
    %c2_401 = arith.constant 2 : index
    %c0_402 = arith.constant 0 : index
    %c0_403 = arith.constant 0 : index
    %339 = vector.load %arg6[%c2_401, %c0_402, %c0_403] : memref<3x8x128xf32, #tpu.memory_space<vmem>>, vector<1x8x128xf32>
    %340 = vector.shape_cast %339 : vector<1x8x128xf32> to vector<8x128xf32>
    %341 = arith.addf %338, %340 : vector<8x128xf32>
    %c1_404 = arith.constant 1 : index
    %c0_405 = arith.constant 0 : index
    %c0_406 = arith.constant 0 : index
    %342 = vector.load %arg6[%c1_404, %c0_405, %c0_406] : memref<3x8x128xf32, #tpu.memory_space<vmem>>, vector<1x7x128xf32>
    %343 = vector.shape_cast %342 : vector<1x7x128xf32> to vector<7x128xf32>
    %c195 = arith.constant 195 : index
    %c0_407 = arith.constant 0 : index
    %344 = tpu.strided_load %arg7[%c195, %c0_407] {strides = array<i32: 2, 1>} : memref<225x128xf32, #tpu.memory_space<vmem>>, vector<8x128xf32>
    tpu.strided_store %arg7[%c195, %c0_407], %341 {strides = array<i32: 2, 1>} : memref<225x128xf32, #tpu.memory_space<vmem>>, vector<8x128xf32>
    %c196 = arith.constant 196 : index
    %c0_408 = arith.constant 0 : index
    %345 = tpu.strided_load %arg7[%c196, %c0_408] {strides = array<i32: 2, 1>} : memref<225x128xf32, #tpu.memory_space<vmem>>, vector<7x128xf32>
    tpu.strided_store %arg7[%c196, %c0_408], %343 {strides = array<i32: 2, 1>} : memref<225x128xf32, #tpu.memory_space<vmem>>, vector<7x128xf32>
    %c42_409 = arith.constant 42 : index
    %c768_410 = arith.constant 768 : index
    %346 = vector.load %arg5[%c42_409, %c768_410] : memref<49x1152xf32, #tpu.memory_space<vmem>>, vector<7x128xf32>
    %c0_411 = arith.constant 0 : index
    %c0_412 = arith.constant 0 : index
    %c0_413 = arith.constant 0 : index
    %347 = vector.load %arg6[%c0_411, %c0_412, %c0_413] : memref<3x8x128xf32, #tpu.memory_space<vmem>>, vector<1x7x128xf32>
    %348 = vector.shape_cast %347 : vector<1x7x128xf32> to vector<7x128xf32>
    %349 = vector.shape_cast %346 : vector<7x128xf32> to vector<1x7x128xf32>
    tpu.vector_store %arg6[%c0_411, %c0_412, %c0_413], %349 {strides = array<i32>} : memref<3x8x128xf32, #tpu.memory_space<vmem>>, vector<1x7x128xf32>,
    %c42_414 = arith.constant 42 : index
    %c896_415 = arith.constant 896 : index
    %350 = vector.load %arg5[%c42_414, %c896_415] : memref<49x1152xf32, #tpu.memory_space<vmem>>, vector<7x128xf32>
    %c1_416 = arith.constant 1 : index
    %c0_417 = arith.constant 0 : index
    %c0_418 = arith.constant 0 : index
    %351 = vector.load %arg6[%c1_416, %c0_417, %c0_418] : memref<3x8x128xf32, #tpu.memory_space<vmem>>, vector<1x7x128xf32>
    %352 = vector.shape_cast %351 : vector<1x7x128xf32> to vector<7x128xf32>
    %353 = vector.shape_cast %350 : vector<7x128xf32> to vector<1x7x128xf32>
    tpu.vector_store %arg6[%c1_416, %c0_417, %c0_418], %353 {strides = array<i32>} : memref<3x8x128xf32, #tpu.memory_space<vmem>>, vector<1x7x128xf32>,
    %c42_419 = arith.constant 42 : index
    %c1024_420 = arith.constant 1024 : index
    %354 = vector.load %arg5[%c42_419, %c1024_420] : memref<49x1152xf32, #tpu.memory_space<vmem>>, vector<7x128xf32>
    %c2_421 = arith.constant 2 : index
    %c1_422 = arith.constant 1 : index
    %c0_423 = arith.constant 0 : index
    %355 = vector.load %arg6[%c2_421, %c1_422, %c0_423] : memref<3x8x128xf32, #tpu.memory_space<vmem>>, vector<1x7x128xf32>
    %356 = vector.shape_cast %355 : vector<1x7x128xf32> to vector<7x128xf32>
    %357 = vector.shape_cast %354 : vector<7x128xf32> to vector<1x7x128xf32>
    tpu.vector_store %arg6[%c2_421, %c1_422, %c0_423], %357 {strides = array<i32>} : memref<3x8x128xf32, #tpu.memory_space<vmem>>, vector<1x7x128xf32>,
    %c0_424 = arith.constant 0 : index
    %c0_425 = arith.constant 0 : index
    %c0_426 = arith.constant 0 : index
    %358 = vector.load %arg6[%c0_424, %c0_425, %c0_426] : memref<3x8x128xf32, #tpu.memory_space<vmem>>, vector<1x8x128xf32>
    %359 = vector.shape_cast %358 : vector<1x8x128xf32> to vector<8x128xf32>
    %c2_427 = arith.constant 2 : index
    %c0_428 = arith.constant 0 : index
    %c0_429 = arith.constant 0 : index
    %360 = vector.load %arg6[%c2_427, %c0_428, %c0_429] : memref<3x8x128xf32, #tpu.memory_space<vmem>>, vector<1x8x128xf32>
    %361 = vector.shape_cast %360 : vector<1x8x128xf32> to vector<8x128xf32>
    %362 = arith.addf %359, %361 : vector<8x128xf32>
    %c1_430 = arith.constant 1 : index
    %c0_431 = arith.constant 0 : index
    %c0_432 = arith.constant 0 : index
    %363 = vector.load %arg6[%c1_430, %c0_431, %c0_432] : memref<3x8x128xf32, #tpu.memory_space<vmem>>, vector<1x7x128xf32>
    %364 = vector.shape_cast %363 : vector<1x7x128xf32> to vector<7x128xf32>
    %c210 = arith.constant 210 : index
    %c0_433 = arith.constant 0 : index
    %365 = tpu.strided_load %arg7[%c210, %c0_433] {strides = array<i32: 2, 1>} : memref<225x128xf32, #tpu.memory_space<vmem>>, vector<8x128xf32>
    tpu.strided_store %arg7[%c210, %c0_433], %362 {strides = array<i32: 2, 1>} : memref<225x128xf32, #tpu.memory_space<vmem>>, vector<8x128xf32>
    %c211 = arith.constant 211 : index
    %c0_434 = arith.constant 0 : index
    %366 = tpu.strided_load %arg7[%c211, %c0_434] {strides = array<i32: 2, 1>} : memref<225x128xf32, #tpu.memory_space<vmem>>, vector<7x128xf32>
    tpu.strided_store %arg7[%c211, %c0_434], %364 {strides = array<i32: 2, 1>} : memref<225x128xf32, #tpu.memory_space<vmem>>, vector<7x128xf32>
    %c0_435 = arith.constant 0 : index
    %c0_436 = arith.constant 0 : index
    %367 = vector.load %arg7[%c0_435, %c0_436] : memref<225x128xf32, #tpu.memory_space<vmem>>, vector<225x128xf32>
    %cst_437 = arith.constant dense<0.000000e+00> : vector<128xf32>
    %368 = vector.multi_reduction <add>, %367, %cst_437 [0] : vector<225x128xf32> to vector<128xf32>
    %369 = vector.shape_cast %368 : vector<128xf32> to vector<1x128xf32>
    %370 = arith.mulf %367, %367 : vector<225x128xf32>
    %cst_438 = arith.constant dense<0.000000e+00> : vector<128xf32>
    %371 = vector.multi_reduction <add>, %370, %cst_438 [0] : vector<225x128xf32> to vector<128xf32>
    %372 = vector.shape_cast %371 : vector<128xf32> to vector<1x128xf32>
    %cst_439 = arith.constant 0.00444444455 : f32
    %373 = vector.broadcast %cst_439 : f32 to vector<1x128xf32>
    %374 = arith.mulf %369, %373 : vector<1x128xf32>
    %cst_440 = arith.constant 0.00444444455 : f32
    %375 = vector.broadcast %cst_440 : f32 to vector<1x128xf32>
    %376 = arith.mulf %372, %375 : vector<1x128xf32>
    %377 = arith.mulf %374, %374 : vector<1x128xf32>
    %378 = arith.subf %376, %377 : vector<1x128xf32>
    %cst_441 = arith.constant 9.99999974E-6 : f32
    %379 = vector.broadcast %cst_441 : f32 to vector<1x128xf32>
    %380 = arith.addf %378, %379 : vector<1x128xf32>
    %381 = math.rsqrt %380 : vector<1x128xf32>
    %382 = vector.broadcast %374 : vector<1x128xf32> to vector<225x128xf32>
    %383 = arith.subf %367, %382 : vector<225x128xf32>
    %384 = vector.broadcast %381 : vector<1x128xf32> to vector<225x128xf32>
    %385 = arith.mulf %383, %384 : vector<225x128xf32>
    %cst_442 = arith.constant 0.000000e+00 : f32
    %386 = vector.broadcast %cst_442 : f32 to vector<225x128xf32>
    %387 = arith.maximumf %385, %386 : vector<225x128xf32>
    %388 = arith.truncf %387 : vector<225x128xf32> to vector<225x128xbf16>
    %c0_443 = arith.constant 0 : index
    %c0_444 = arith.constant 0 : index
    %c0_445 = arith.constant 0 : index
    %389 = vector.load %arg4[%c0_443, %c0_444, %c0_445] : memref<1x225x256xbf16, #tpu.memory_space<vmem>>, vector<1x225x128xbf16>
    %390 = vector.shape_cast %389 : vector<1x225x128xbf16> to vector<225x128xbf16>
    %391 = vector.shape_cast %388 : vector<225x128xbf16> to vector<1x225x128xbf16>
    tpu.vector_store %arg4[%c0_443, %c0_444, %c0_445], %391 {strides = array<i32>} : memref<1x225x256xbf16, #tpu.memory_space<vmem>>, vector<1x225x128xbf16>,
    %c0_446 = arith.constant 0 : index
    %c0_447 = arith.constant 0 : index
    %c0_448 = arith.constant 0 : index
    %392 = vector.load %arg3[%c0_446, %c0_447, %c0_448] : memref<1x225x128xbf16, #tpu.memory_space<vmem>>, vector<1x225x128xbf16>
    %393 = vector.shape_cast %392 : vector<1x225x128xbf16> to vector<225x128xbf16>
    %c0_449 = arith.constant 0 : index
    %c0_450 = arith.constant 0 : index
    %c128_451 = arith.constant 128 : index
    %394 = vector.load %arg4[%c0_449, %c0_450, %c128_451] : memref<1x225x256xbf16, #tpu.memory_space<vmem>>, vector<1x225x128xbf16>
    %395 = vector.shape_cast %394 : vector<1x225x128xbf16> to vector<225x128xbf16>
    %396 = vector.shape_cast %393 : vector<225x128xbf16> to vector<1x225x128xbf16>
    tpu.vector_store %arg4[%c0_449, %c0_450, %c128_451], %396 {strides = array<i32>} : memref<1x225x256xbf16, #tpu.memory_space<vmem>>, vector<1x225x128xbf16>,
    return
  }
  func.func @transform_0(%arg0: i32) -> (i32, i32, i32) {
    %c0_i32 = arith.constant 0 : i32
    %c0_i32_0 = arith.constant 0 : i32
    %c0_i32_1 = arith.constant 0 : i32
    return %arg0, %c0_i32, %c0_i32_0 : i32, i32, i32
  }
  func.func @transform_1(%arg0: i32) -> (i32, i32, i32) {
    %c0_i32 = arith.constant 0 : i32
    %c0_i32_0 = arith.constant 0 : i32
    %c0_i32_1 = arith.constant 0 : i32
    %c0_i32_2 = arith.constant 0 : i32
    return %c0_i32, %c0_i32_0, %c0_i32_1 : i32, i32, i32
  }
  func.func @transform_2(%arg0: i32) -> (i32, i32, i32) {
    %c0_i32 = arith.constant 0 : i32
    %c0_i32_0 = arith.constant 0 : i32
    %c0_i32_1 = arith.constant 0 : i32
    return %arg0, %c0_i32, %c0_i32_0 : i32, i32, i32
  }
  func.func @transform_3(%arg0: i32) -> (i32, i32, i32) {
    %c0_i32 = arith.constant 0 : i32
    %c0_i32_0 = arith.constant 0 : i32
    %c0_i32_1 = arith.constant 0 : i32
    return %arg0, %c0_i32, %c0_i32_0 : i32, i32, i32
  }
}

</mosaic_0001>

<llo_original>
// kernel: unet_up_forward.1
$region0: #{unet_up_forward.1}
  #allocation0 [shape = 'u32[]', space=smem, size = 0x4, offset = 0x4, fixed_abs, tag = 'smem constant byte address 0x4 - core index']
  #allocation1 [shape = 'u32[144,128]{1,0:T(1,128)}', space=vmem, size = 0x12000, scoped, tag = 'internal scratch']
  #allocation2 [shape = 'f32[49,1152]{1,0:T(8,128)}', space=vmem, size = 0x3f000, scoped, tag = 'scratch operand']
  #allocation3 [shape = 'f32[3,8,128]{2,1,0:T(8,128)}', space=vmem, size = 0x3000, scoped, tag = 'scratch operand']
  #allocation4 [shape = 'f32[225,128]{1,0:T(8,128)}', space=vmem, size = 0x1d000, scoped, tag = 'scratch operand']
  %s0 = inlined_call_operand.vmem [shape: bf16[2,49,128], index: 0, kind: input, shape index: {}]
  %s1 = inlined_call_operand.vmem [shape: bf16[3,128,384], index: 1, kind: input, shape index: {}]
  %s2 = inlined_call_operand.vmem [shape: bf16[2,225,128], index: 2, kind: input, shape index: {}]
  %s3 = inlined_call_operand.vmem [shape: bf16[2,225,256], index: 3, kind: output, shape index: {}]
  %s4 = sld [smem:[#allocation0]]
  $region45: #{unet_up_forward.1} parent=0
    _
  %s6 = ssub.s32 1, %s4
  %s7 = scalar_select 0, %s6, %s4
  loop: start=0, step=1, limit=4
  $region2: #{unet_up_forward.1} parent=0 // loop_pre_header
    _
  $region3: #{unet_up_forward.1} parent=0 // loop_header
    %s9 = sphi 0, %s13
    %p10 = scmp.ge.s32.totalorder %s9, 4
    %s19 = sphi 0, %s21
    %s22 = sphi 0, %s19
    %s23 = sphi 0, %s22
    %s39 = sphi 0, %s23
    %s43 = sphi 0, %s43
    %s45 = sphi 0, %s43
    %s46 = sphi 0, %s45
    %s60 = sphi 0, %s46
    %s66 = sphi 0, %s68
    %s69 = sphi 0, %s66
    %s70 = sphi 0, %s69
    %s86 = sphi 0, %s70
    %s92 = sphi 0, %s94
    %s95 = sphi 0, %s92
    %s96 = sphi 0, %s95
    %s112 = sphi 0, %s96
  $region4: #{unet_up_forward.1} parent=0 // loop_header_branch
    %12 = sbr.rel (%p10) target = $region8
  $region5: #{unet_up_forward.1} parent=0 // loop_body
    %s14 = ssub.s32 %s9, 1
    %s15 = ssub.s32 %s9, 2
    %s16 = sadd.s32 %s9, 1
    %s17 = ssub.s32 %s9, %s16
    %p18 = scmp.eq.s32.totalorder %s17, 0
    %s20 = sadd.s32 %s19, 1
    %s21 = scalar_select %p18, %s19, %s20
    %p24 = pneg %p18
    %p25 = scmp.eq.s32.totalorder %s9, 1
    %p26 = por %p24, %p25
    %p27 = scmp.ne.s32.totalorder %s19, %s22
    %p28 = scmp.eq.s32.totalorder %s9, 0
    %p29 = por %p27, %p28
    %p30 = scmp.ne.s32.totalorder %s19, %s22
    %p31 = scmp.eq.s32.totalorder %s14, 1
    %p32 = por %p30, %p31
    %p33 = scmp.ne.s32.totalorder %s22, %s23
    %p34 = scmp.eq.s32.totalorder %s14, 0
    %p35 = por %p33, %p34
    %p36 = scmp.ne.s32.totalorder %s22, %s23
    %p37 = scmp.eq.s32.totalorder %s15, 1
    %p38 = por %p36, %p37
    %p40 = scmp.ne.s32.totalorder %s23, %s39
    %p41 = scmp.eq.s32.totalorder %s15, 0
    %p42 = por %p40, %p41
    %s44 = sadd.s32 %s43, 1
    %p47 = scmp.eq.s32.totalorder %s9, 1
    %p48 = scmp.ne.s32.totalorder %s43, %s45
    %p49 = scmp.eq.s32.totalorder %s9, 0
    %p50 = por %p48, %p49
    %p51 = scmp.ne.s32.totalorder %s43, %s45
    %p52 = scmp.eq.s32.totalorder %s14, 1
    %p53 = por %p51, %p52
    %p54 = scmp.ne.s32.totalorder %s45, %s46
    %p55 = scmp.eq.s32.totalorder %s14, 0
    %p56 = por %p54, %p55
    %p57 = scmp.ne.s32.totalorder %s45, %s46
    %p58 = scmp.eq.s32.totalorder %s15, 1
    %p59 = por %p57, %p58
    %p61 = scmp.ne.s32.totalorder %s46, %s60
    %p62 = scmp.eq.s32.totalorder %s15, 0
    %p63 = por %p61, %p62
    %s64 = ssub.s32 %s9, %s16
    %p65 = scmp.eq.s32.totalorder %s64, 0
    %s67 = sadd.s32 %s66, 1
    %s68 = scalar_select %p65, %s66, %s67
    %p71 = pneg %p65
    %p72 = scmp.eq.s32.totalorder %s9, 1
    %p73 = por %p71, %p72
    %p74 = scmp.ne.s32.totalorder %s66, %s69
    %p75 = scmp.eq.s32.totalorder %s9, 0
    %p76 = por %p74, %p75
    %p77 = scmp.ne.s32.totalorder %s66, %s69
    %p78 = scmp.eq.s32.totalorder %s14, 1
    %p79 = por %p77, %p78
    %p80 = scmp.ne.s32.totalorder %s69, %s70
    %p81 = scmp.eq.s32.totalorder %s14, 0
    %p82 = por %p80, %p81
    %p83 = scmp.ne.s32.totalorder %s69, %s70
    %p84 = scmp.eq.s32.totalorder %s15, 1
    %p85 = por %p83, %p84
    %p87 = scmp.ne.s32.totalorder %s70, %s86
    %p88 = scmp.eq.s32.totalorder %s15, 0
    %p89 = por %p87, %p88
    %s90 = ssub.s32 %s9, %s16
    %p91 = scmp.eq.s32.totalorder %s90, 0
    %s93 = sadd.s32 %s92, 1
    %s94 = scalar_select %p91, %s92, %s93
    %p97 = pneg %p91
    %p98 = scmp.eq.s32.totalorder %s9, 1
    %p99 = por %p97, %p98
    %p100 = scmp.ne.s32.totalorder %s92, %s95
    %p101 = scmp.eq.s32.totalorder %s9, 0
    %p102 = por %p100, %p101
    %p103 = scmp.ne.s32.totalorder %s92, %s95
    %p104 = scmp.eq.s32.totalorder %s14, 1
    %p105 = por %p103, %p104
    %p106 = scmp.ne.s32.totalorder %s95, %s96
    %p107 = scmp.eq.s32.totalorder %s14, 0
    %p108 = por %p106, %p107
    %p109 = scmp.ne.s32.totalorder %s95, %s96
    %p110 = scmp.eq.s32.totalorder %s15, 1
    %p111 = por %p109, %p110
    %p113 = scmp.ne.s32.totalorder %s96, %s112
    %p114 = scmp.eq.s32.totalorder %s15, 0
    %p115 = por %p113, %p114
    %p116 = scmp.le.s32.totalorder 1, %s9
    %p117 = scmp.lt.s32.totalorder %s9, 3
    %p118 = pnand %p116, %p117
    %p119 = pneg %p118
    // Predicated region
    $region9: #{unet_up_forward.1} parent=5 // pred_check
      _
    $region10: #{unet_up_forward.1} parent=5 // pred_check_branch
      %121 = sbr.rel (%p118) target = $region12
    $region11: #{unet_up_forward.1} parent=5 // pred_region
      %s122 = ssub.s32 %s9, 1
      // Predicated region
      $region13: #{unet_up_forward.1} parent=11 // pred_check
        %p123 = pneg %p56
      $region14: #{unet_up_forward.1} parent=11 // pred_check_branch
        %125 = sbr.rel (%p123) target = $region16
      $region15: #{unet_up_forward.1} parent=11 // pred_region
        _
      $region16: #{unet_up_forward.1} parent=11 // pred_fallthru
        _
    $region12: #{unet_up_forward.1} parent=5 // pred_fallthru
      _
    %p126 = scmp.lt.s32.totalorder %s9, 2
    // Predicated region
    $region17: #{unet_up_forward.1} parent=5 // pred_check
      %p127 = pneg %p126
    $region18: #{unet_up_forward.1} parent=5 // pred_check_branch
      %129 = sbr.rel (%p127) target = $region20
    $region19: #{unet_up_forward.1} parent=5 // pred_region
      // Predicated region
      $region21: #{unet_up_forward.1} parent=19 // pred_check
        %p130 = pneg %p29
      $region22: #{unet_up_forward.1} parent=19 // pred_check_branch
        %132 = sbr.rel (%p130) target = $region24
      $region23: #{unet_up_forward.1} parent=19 // pred_region
        %p133 = scmp.lt.s32.totalorder %s9, 1
        %s134 = scalar_select %p133, %s9, 1
        %s135 = smul.addr %s134, 7
        %s136 = smul.addr %s135, 4
        %s137 = scalar_lea.vmem %s0, %s136
      $region24: #{unet_up_forward.1} parent=19 // pred_fallthru
        _
      // Predicated region
      $region25: #{unet_up_forward.1} parent=19 // pred_check
        %p138 = pneg %p76
      $region26: #{unet_up_forward.1} parent=19 // pred_check_branch
        %140 = sbr.rel (%p138) target = $region28
      $region27: #{unet_up_forward.1} parent=19 // pred_region
        %p141 = scmp.lt.s32.totalorder %s9, 1
        %s142 = scalar_select %p141, %s9, 1
        %s143 = smul.addr %s142, 29
        %s144 = smul.addr %s143, 4
        %s145 = scalar_lea.vmem %s2, %s144
      $region28: #{unet_up_forward.1} parent=19 // pred_fallthru
        _
    $region20: #{unet_up_forward.1} parent=5 // pred_fallthru
      _
    %p146 = scmp.le.s32.totalorder 1, %s9
    %p147 = scmp.lt.s32.totalorder %s9, 3
    %p148 = pnand %p146, %p147
    %p149 = pneg %p148
    // Predicated region
    $region29: #{unet_up_forward.1} parent=5 // pred_check
      _
    $region30: #{unet_up_forward.1} parent=5 // pred_check_branch
      %151 = sbr.rel (%p148) target = $region32
    $region31: #{unet_up_forward.1} parent=5 // pred_region
      %s152 = ssub.s32 %s9, 1
      %p153 = scmp.lt.s32.totalorder %s14, 1
      %s154 = scalar_select %p153, %s14, 1
      %s155 = smul.addr %s154, 7
      %s156 = smul.addr %s155, 4
      %s157 = scalar_lea.vmem %s0, %s156
      %p158 = pneg %p35
      %p159 = pneg %p32
      %p160 = pneg %p56
      %p161 = pneg %p53
      %p162 = scmp.lt.s32.totalorder %s14, 1
      %s163 = scalar_select %p162, %s14, 1
      %s164 = smul.addr %s163, 29
      %s165 = smul.addr %s164, 4
      %s166 = scalar_lea.vmem %s2, %s165
      %p167 = pneg %p82
      %p168 = pneg %p79
      %p169 = pneg %p108
      %p170 = pneg %p105
      %p171 = scmp.lt.s32.totalorder %s14, 1
      %s172 = scalar_select %p171, %s14, 1
      %s173 = smul.addr %s172, 58
      %s174 = smul.addr %s173, 4
      %s175 = scalar_lea.vmem %s3, %s174
      %p176 = scmp.lt.s32.totalorder %s14, 1
      %s177 = scalar_select %p176, %s14, 1
      %s178 = smul.addr %s177, 7
      %s179 = smul.addr %s178, 4
      %s180 = scalar_lea.vmem %s0, %s179
      %p181 = scmp.lt.s32.totalorder %s14, 1
      %s182 = scalar_select %p181, %s14, 1
      %s183 = smul.addr %s182, 29
      %s184 = smul.addr %s183, 4
      %s185 = scalar_lea.vmem %s2, %s184
      %p186 = scmp.lt.s32.totalorder %s14, 1
      %s187 = scalar_select %p186, %s14, 1
      %s188 = smul.addr %s187, 58
      %s189 = smul.addr %s188, 4
      %s190 = scalar_lea.vmem %s3, %s189
      %v192 = vld [vmem:[%s180] sm:$0xf]
      %v193 = vld [vmem:[%s180 + $0x4] sm:$0xf]
      %v194 = vld [vmem:[%s180 + $0x8] sm:$0xf]
      %v195 = vld [vmem:[%s180 + $0xc] sm:$0xf]
      %v196 = vld [vmem:[%s180 + $0x10] sm:$0xf]
      %v197 = vld [vmem:[%s180 + $0x14] sm:$0xf]
      %v198 = vld [vmem:[%s180 + $0x18] sm:$0x1]
      %v199 = vld [vmem:[%s1] sm:$0xff]
      %v200 = vld [vmem:[%s1 + $0x8] sm:$0xf]
      %v201 = vld [vmem:[%s1 + $0xc] sm:$0xff]
      %v202 = vld [vmem:[%s1 + $0x14] sm:$0xf]
      %v203 = vld [vmem:[%s1 + $0x18] sm:$0xff]
      %v204 = vld [vmem:[%s1 + $0x20] sm:$0xf]
      %v205 = vld [vmem:[%s1 + $0x24] sm:$0xff]
      %v206 = vld [vmem:[%s1 + $0x2c] sm:$0xf]
      %v207 = vld [vmem:[%s1 + $0x30] sm:$0xff]
      %v208 = vld [vmem:[%s1 + $0x38] sm:$0xf]
      %v209 = vld [vmem:[%s1 + $0x3c] sm:$0xff]
      %v210 = vld [vmem:[%s1 + $0x44] sm:$0xf]
      %v211 = vld [vmem:[%s1 + $0x48] sm:$0xff]
      %v212 = vld [vmem:[%s1 + $0x50] sm:$0xf]
      %v213 = vld [vmem:[%s1 + $0x54] sm:$0xff]
      %v214 = vld [vmem:[%s1 + $0x5c] sm:$0xf]
      %v215 = vld [vmem:[%s1 + $0x60] sm:$0xff]
      %v216 = vld [vmem:[%s1 + $0x68] sm:$0xf]
      %v217 = vld [vmem:[%s1 + $0x6c] sm:$0xff]
      %v218 = vld [vmem:[%s1 + $0x74] sm:$0xf]
      %v219 = vld [vmem:[%s1 + $0x78] sm:$0xff]
      %v220 = vld [vmem:[%s1 + $0x80] sm:$0xf]
      %v221 = vld [vmem:[%s1 + $0x84] sm:$0xff]
      %v222 = vld [vmem:[%s1 + $0x8c] sm:$0xf]
      %v223 = vld [vmem:[%s1 + $0x90] sm:$0xff]
      %v224 = vld [vmem:[%s1 + $0x98] sm:$0xf]
      %v225 = vld [vmem:[%s1 + $0x9c] sm:$0xff]
      %v226 = vld [vmem:[%s1 + $0xa4] sm:$0xf]
      %v227 = vld [vmem:[%s1 + $0xa8] sm:$0xff]
      %v228 = vld [vmem:[%s1 + $0xb0] sm:$0xf]
      %v229 = vld [vmem:[%s1 + $0xb4] sm:$0xff]
      %v230 = vld [vmem:[%s1 + $0xbc] sm:$0xf]
      %v238 = vunpack.c.l.b16 %v192
      %v239 = vunpack.c.l.b16 %v193
      %v240 = vunpack.c.l.b16 %v194
      %v241 = vunpack.c.l.b16 %v195
      %v242 = vunpack.c.l.b16 %v196
      %v243 = vunpack.c.l.b16 %v197
      %v244 = vunpack.c.l.b16 %v198
      %v245 = vpack.c.b16 %v239, %v238
      %v246 = vpack.c.b16 %v241, %v240
      %v247 = vpack.c.b16 %v243, %v242
      %v248 = vpack.c.b16 %v244, %v244
      %v285 = vunpack.c.l.b16 %v199
      %v286 = vunpack.c.h.b16 %v199
      %v287 = vunpack.c.l.b16 %v200
      %v288 = vunpack.c.l.b16 %v201
      %v289 = vunpack.c.h.b16 %v201
      %v290 = vunpack.c.l.b16 %v202
      %v291 = vunpack.c.l.b16 %v203
      %v292 = vunpack.c.h.b16 %v203
      %v293 = vunpack.c.l.b16 %v204
      %v294 = vunpack.c.l.b16 %v205
      %v295 = vunpack.c.h.b16 %v205
      %v296 = vunpack.c.l.b16 %v206
      %v297 = vunpack.c.l.b16 %v207
      %v298 = vunpack.c.h.b16 %v207
      %v299 = vunpack.c.l.b16 %v208
      %v300 = vunpack.c.l.b16 %v209
      %v301 = vunpack.c.h.b16 %v209
      %v302 = vunpack.c.l.b16 %v210
      %v303 = vunpack.c.l.b16 %v211
      %v304 = vunpack.c.h.b16 %v211
      %v305 = vunpack.c.l.b16 %v212
      %v306 = vunpack.c.l.b16 %v213
      %v307 = vunpack.c.h.b16 %v213
      %v308 = vunpack.c.l.b16 %v214
      %v309 = vunpack.c.l.b16 %v215
      %v310 = vunpack.c.h.b16 %v215
      %v311 = vunpack.c.l.b16 %v216
      %v312 = vunpack.c.l.b16 %v217
      %v313 = vunpack.c.h.b16 %v217
      %v314 = vunpack.c.l.b16 %v218
      %v315 = vunpack.c.l.b16 %v219
      %v316 = vunpack.c.h.b16 %v219
      %v317 = vunpack.c.l.b16 %v220
      %v318 = vunpack.c.l.b16 %v221
      %v319 = vunpack.c.h.b16 %v221
      %v320 = vunpack.c.l.b16 %v222
      %v321 = vunpack.c.l.b16 %v223
      %v322 = vunpack.c.h.b16 %v223
      %v323 = vunpack.c.l.b16 %v224
      %v324 = vunpack.c.l.b16 %v225
      %v325 = vunpack.c.h.b16 %v225
      %v326 = vunpack.c.l.b16 %v226
      %v327 = vunpack.c.l.b16 %v227
      %v328 = vunpack.c.h.b16 %v227
      %v329 = vunpack.c.l.b16 %v228
      %v330 = vunpack.c.l.b16 %v229
      %v331 = vunpack.c.h.b16 %v229
      %v332 = vunpack.c.l.b16 %v230
      %v333 = vpack.c.b16 %v288, %v285
      %v334 = vpack.c.b16 %v289, %v286
      %v335 = vpack.c.b16 %v290, %v287
      %v336 = vpack.c.b16 %v294, %v291
      %v337 = vpack.c.b16 %v295, %v292
      %v338 = vpack.c.b16 %v296, %v293
      %v339 = vpack.c.b16 %v300, %v297
      %v340 = vpack.c.b16 %v301, %v298
      %v341 = vpack.c.b16 %v302, %v299
      %v342 = vpack.c.b16 %v306, %v303
      %v343 = vpack.c.b16 %v307, %v304
      %v344 = vpack.c.b16 %v308, %v305
      %v345 = vpack.c.b16 %v312, %v309
      %v346 = vpack.c.b16 %v313, %v310
      %v347 = vpack.c.b16 %v314, %v311
      %v348 = vpack.c.b16 %v318, %v315
      %v349 = vpack.c.b16 %v319, %v316
      %v350 = vpack.c.b16 %v320, %v317
      %v351 = vpack.c.b16 %v324, %v321
      %v352 = vpack.c.b16 %v325, %v322
      %v353 = vpack.c.b16 %v326, %v323
      %v354 = vpack.c.b16 %v330, %v327
      %v355 = vpack.c.b16 %v331, %v328
      %v356 = vpack.c.b16 %v332, %v329
      %381 = vmatprep.subr.bf16.mxu0 %v334
      %382 = vmatpush1.bf16.msra.mxu0 %v333
      %383 = vmatprep.subr.bf16.mxu0 %v337
      %384 = vmatpush1.bf16.msra.mxu0 %v336
      %385 = vmatprep.subr.bf16.mxu0 %v340
      %386 = vmatpush1.bf16.msra.mxu0 %v339
      %387 = vmatprep.subr.bf16.mxu0 %v343
      %388 = vmatpush1.bf16.msra.mxu0 %v342
      %389 = vmatprep.subr.bf16.mxu0 %v346
      %390 = vmatpush1.bf16.msra.mxu0 %v345
      %391 = vmatprep.subr.bf16.mxu0 %v349
      %392 = vmatpush1.bf16.msra.mxu0 %v348
      %393 = vmatprep.subr.bf16.mxu0 %v352
      %394 = vmatpush1.bf16.msra.mxu0 %v351
      %395 = vmatprep.subr.bf16.mxu0 %v355
      %396 = vmatpush1.bf16.msra.mxu0 %v354
      %397 = vmatprep.subr.bf16.mxu0 0
      %398 = vmatpush1.bf16.msra.mxu0 0
      %399 = vmatprep.subr.bf16.mxu0 0
      %400 = vmatpush1.bf16.msra.mxu0 0
      %401 = vmatprep.subr.bf16.mxu0 0
      %402 = vmatpush1.bf16.msra.mxu0 0
      %403 = vmatprep.subr.bf16.mxu0 0
      %404 = vmatpush1.bf16.msra.mxu0 0
      %405 = vmatprep.subr.bf16.mxu0 0
      %406 = vmatpush1.bf16.msra.mxu0 0
      %407 = vmatprep.subr.bf16.mxu0 0
      %408 = vmatpush1.bf16.msra.mxu0 0
      %409 = vmatprep.subr.bf16.mxu0 0
      %410 = vmatpush1.bf16.msra.mxu0 0
      %411 = vmatprep.subr.bf16.mxu0 0
      %412 = vmatpush1.bf16.msra.mxu0 0
      %413 = vmatprep.mubr.bf16.mxu0 0
      %414 = vmatmul.mubr.bf16.gmra.mrb[0].mxu0 %v245
      %v415 = vpop.f32.mrb[0].mxu0
      %v416 = vadd.f32 0.0, %v415
      %v417 = vpop.f32.mrb[0].mxu0
      %v418 = vadd.f32 0.0, %v417
      %v419 = vpop.f32.mrb[0].mxu0
      %v420 = vadd.f32 0.0, %v419
      %v421 = vpop.f32.mrb[0].mxu0
      %v422 = vadd.f32 0.0, %v421
      %423 = vmatprep.mubr.bf16.mxu0 0
      %424 = vmatmul.mubr.bf16.gmra.mrb[0].mxu0 %v246
      %v425 = vpop.f32.mrb[0].mxu0
      %v426 = vadd.f32 0.0, %v425
      %v427 = vpop.f32.mrb[0].mxu0
      %v428 = vadd.f32 0.0, %v427
      %v429 = vpop.f32.mrb[0].mxu0
      %v430 = vadd.f32 0.0, %v429
      %v431 = vpop.f32.mrb[0].mxu0
      %v432 = vadd.f32 0.0, %v431
      %433 = vmatprep.mubr.bf16.mxu0 0
      %434 = vmatmul.mubr.bf16.gmra.mrb[0].mxu0 %v247
      %v435 = vpop.f32.mrb[0].mxu0
      %v436 = vadd.f32 0.0, %v435
      %v437 = vpop.f32.mrb[0].mxu0
      %v438 = vadd.f32 0.0, %v437
      %v439 = vpop.f32.mrb[0].mxu0
      %v440 = vadd.f32 0.0, %v439
      %v441 = vpop.f32.mrb[0].mxu0
      %v442 = vadd.f32 0.0, %v441
      %443 = vmatprep.mubr.bf16.mxu0 0
      %444 = vmatmul.mubr.bf16.gmra.mrb[0].mxu0 %v248
      %v445 = vpop.f32.mrb[0].mxu0
      %v446 = vadd.f32 0.0, %v445
      %v447 = vpop.f32.mrb[0].mxu0
      %v448 = vadd.f32 0.0, %v447
      %v449 = vpop.f32.mrb[0].mxu0
      %v450 = vpop.f32.mrb[0].mxu0
      %451 = vdwg.mxu0
      %452 = vmatprep.subr.bf16.mxu0 0
      %453 = vmatpush1.bf16.msra.mxu0 %v335
      %454 = vmatprep.subr.bf16.mxu0 0
      %455 = vmatpush1.bf16.msra.mxu0 %v338
      %456 = vmatprep.subr.bf16.mxu0 0
      %457 = vmatpush1.bf16.msra.mxu0 %v341
      %458 = vmatprep.subr.bf16.mxu0 0
      %459 = vmatpush1.bf16.msra.mxu0 %v344
      %460 = vmatprep.subr.bf16.mxu0 0
      %461 = vmatpush1.bf16.msra.mxu0 %v347
      %462 = vmatprep.subr.bf16.mxu0 0
      %463 = vmatpush1.bf16.msra.mxu0 %v350
      %464 = vmatprep.subr.bf16.mxu0 0
      %465 = vmatpush1.bf16.msra.mxu0 %v353
      %466 = vmatprep.subr.bf16.mxu0 0
      %467 = vmatpush1.bf16.msra.mxu0 %v356
      %468 = vmatprep.subr.bf16.mxu0 0
      %469 = vmatpush1.bf16.msra.mxu0 0
      %470 = vmatprep.subr.bf16.mxu0 0
      %471 = vmatpush1.bf16.msra.mxu0 0
      %472 = vmatprep.subr.bf16.mxu0 0
      %473 = vmatpush1.bf16.msra.mxu0 0
      %474 = vmatprep.subr.bf16.mxu0 0
      %475 = vmatpush1.bf16.msra.mxu0 0
      %476 = vmatprep.subr.bf16.mxu0 0
      %477 = vmatpush1.bf16.msra.mxu0 0
      %478 = vmatprep.subr.bf16.mxu0 0
      %479 = vmatpush1.bf16.msra.mxu0 0
      %480 = vmatprep.subr.bf16.mxu0 0
      %481 = vmatpush1.bf16.msra.mxu0 0
      %482 = vmatprep.subr.bf16.mxu0 0
      %483 = vmatpush1.bf16.msra.mxu0 0
      %484 = vmatprep.mubr.bf16.mxu0 0
      %485 = vmatmul.mubr.bf16.gmra.mrb[0].mxu0 %v245
      %v486 = vpop.f32.mrb[0].mxu0
      %v487 = vadd.f32 0.0, %v486
      %v488 = vpop.f32.mrb[0].mxu0
      %v489 = vpop.f32.mrb[0].mxu0
      %v490 = vadd.f32 0.0, %v489
      %v491 = vpop.f32.mrb[0].mxu0
      %492 = vmatprep.mubr.bf16.mxu0 0
      %493 = vmatmul.mubr.bf16.gmra.mrb[0].mxu0 %v246
      %v494 = vpop.f32.mrb[0].mxu0
      %v495 = vadd.f32 0.0, %v494
      %v496 = vpop.f32.mrb[0].mxu0
      %v497 = vpop.f32.mrb[0].mxu0
      %v498 = vadd.f32 0.0, %v497
      %v499 = vpop.f32.mrb[0].mxu0
      %500 = vmatprep.mubr.bf16.mxu0 0
      %501 = vmatmul.mubr.bf16.gmra.mrb[0].mxu0 %v247
      %v502 = vpop.f32.mrb[0].mxu0
      %v503 = vadd.f32 0.0, %v502
      %v504 = vpop.f32.mrb[0].mxu0
      %v505 = vpop.f32.mrb[0].mxu0
      %v506 = vadd.f32 0.0, %v505
      %v507 = vpop.f32.mrb[0].mxu0
      %508 = vmatprep.mubr.bf16.mxu0 0
      %509 = vmatmul.mubr.bf16.gmra.mrb[0].mxu0 %v248
      %v510 = vpop.f32.mrb[0].mxu0
      %v511 = vadd.f32 0.0, %v510
      %v512 = vpop.f32.mrb[0].mxu0
      %v513 = vpop.f32.mrb[0].mxu0
      %v514 = vpop.f32.mrb[0].mxu0
      %515 = vdwg.mxu0
      %516 = vst [vmem:[#allocation2] sm:$0xff] %v416
      %517 = vst [vmem:[#allocation2 + $0x8] sm:$0xff] %v418
      %518 = vst [vmem:[#allocation2 + $0x10] sm:$0xff] %v487
      %519 = vst [vmem:[#allocation2 + $0x48] sm:$0xff] %v420
      %520 = vst [vmem:[#allocation2 + $0x50] sm:$0xff] %v422
      %521 = vst [vmem:[#allocation2 + $0x58] sm:$0xff] %v490
      %522 = vst [vmem:[#allocation2 + $0x90] sm:$0xff] %v426
      %523 = vst [vmem:[#allocation2 + $0x98] sm:$0xff] %v428
      %524 = vst [vmem:[#allocation2 + $0xa0] sm:$0xff] %v495
      %525 = vst [vmem:[#allocation2 + $0xd8] sm:$0xff] %v430
      %526 = vst [vmem:[#allocation2 + $0xe0] sm:$0xff] %v432
      %527 = vst [vmem:[#allocation2 + $0xe8] sm:$0xff] %v498
      %528 = vst [vmem:[#allocation2 + $0x120] sm:$0xff] %v436
      %529 = vst [vmem:[#allocation2 + $0x128] sm:$0xff] %v438
      %530 = vst [vmem:[#allocation2 + $0x130] sm:$0xff] %v503
      %531 = vst [vmem:[#allocation2 + $0x168] sm:$0xff] %v440
      %532 = vst [vmem:[#allocation2 + $0x170] sm:$0xff] %v442
      %533 = vst [vmem:[#allocation2 + $0x178] sm:$0xff] %v506
      %534 = vst [vmem:[#allocation2 + $0x1b0] sm:$0x1] %v446
      %535 = vst [vmem:[#allocation2 + $0x1b8] sm:$0x1] %v448
      %536 = vst [vmem:[#allocation2 + $0x1c0] sm:$0x1] %v511
      %s537 = scalar_lea.vmem %s1, 192
      %v538 = vld [vmem:[%s537] sm:$0xff]
      %v539 = vld [vmem:[%s537 + $0x8] sm:$0xf]
      %v540 = vld [vmem:[%s537 + $0xc] sm:$0xff]
      %v541 = vld [vmem:[%s537 + $0x14] sm:$0xf]
      %v542 = vld [vmem:[%s537 + $0x18] sm:$0xff]
      %v543 = vld [vmem:[%s537 + $0x20] sm:$0xf]
      %v544 = vld [vmem:[%s537 + $0x24] sm:$0xff]
      %v545 = vld [vmem:[%s537 + $0x2c] sm:$0xf]
      %v546 = vld [vmem:[%s537 + $0x30] sm:$0xff]
      %v547 = vld [vmem:[%s537 + $0x38] sm:$0xf]
      %v548 = vld [vmem:[%s537 + $0x3c] sm:$0xff]
      %v549 = vld [vmem:[%s537 + $0x44] sm:$0xf]
      %v550 = vld [vmem:[%s537 + $0x48] sm:$0xff]
      %v551 = vld [vmem:[%s537 + $0x50] sm:$0xf]
      %v552 = vld [vmem:[%s537 + $0x54] sm:$0xff]
      %v553 = vld [vmem:[%s537 + $0x5c] sm:$0xf]
      %v554 = vld [vmem:[%s537 + $0x60] sm:$0xff]
      %v555 = vld [vmem:[%s537 + $0x68] sm:$0xf]
      %v556 = vld [vmem:[%s537 + $0x6c] sm:$0xff]
      %v557 = vld [vmem:[%s537 + $0x74] sm:$0xf]
      %v558 = vld [vmem:[%s537 + $0x78] sm:$0xff]
      %v559 = vld [vmem:[%s537 + $0x80] sm:$0xf]
      %v560 = vld [vmem:[%s537 + $0x84] sm:$0xff]
      %v561 = vld [vmem:[%s537 + $0x8c] sm:$0xf]
      %v562 = vld [vmem:[%s537 + $0x90] sm:$0xff]
      %v563 = vld [vmem:[%s537 + $0x98] sm:$0xf]
      %v564 = vld [vmem:[%s537 + $0x9c] sm:$0xff]
      %v565 = vld [vmem:[%s537 + $0xa4] sm:$0xf]
      %v566 = vld [vmem:[%s537 + $0xa8] sm:$0xff]
      %v567 = vld [vmem:[%s537 + $0xb0] sm:$0xf]
      %v568 = vld [vmem:[%s537 + $0xb4] sm:$0xff]
      %v569 = vld [vmem:[%s537 + $0xbc] sm:$0xf]
      %v602 = vunpack.c.l.b16 %v538
      %v603 = vunpack.c.h.b16 %v538
      %v604 = vunpack.c.l.b16 %v539
      %v605 = vunpack.c.l.b16 %v540
      %v606 = vunpack.c.h.b16 %v540
      %v607 = vunpack.c.l.b16 %v541
      %v608 = vunpack.c.l.b16 %v542
      %v609 = vunpack.c.h.b16 %v542
      %v610 = vunpack.c.l.b16 %v543
      %v611 = vunpack.c.l.b16 %v544
      %v612 = vunpack.c.h.b16 %v544
      %v613 = vunpack.c.l.b16 %v545
      %v614 = vunpack.c.l.b16 %v546
      %v615 = vunpack.c.h.b16 %v546
      %v616 = vunpack.c.l.b16 %v547
      %v617 = vunpack.c.l.b16 %v548
      %v618 = vunpack.c.h.b16 %v548
      %v619 = vunpack.c.l.b16 %v549
      %v620 = vunpack.c.l.b16 %v550
      %v621 = vunpack.c.h.b16 %v550
      %v622 = vunpack.c.l.b16 %v551
      %v623 = vunpack.c.l.b16 %v552
      %v624 = vunpack.c.h.b16 %v552
      %v625 = vunpack.c.l.b16 %v553
      %v626 = vunpack.c.l.b16 %v554
      %v627 = vunpack.c.h.b16 %v554
      %v628 = vunpack.c.l.b16 %v555
      %v629 = vunpack.c.l.b16 %v556
      %v630 = vunpack.c.h.b16 %v556
      %v631 = vunpack.c.l.b16 %v557
      %v632 = vunpack.c.l.b16 %v558
      %v633 = vunpack.c.h.b16 %v558
      %v634 = vunpack.c.l.b16 %v559
      %v635 = vunpack.c.l.b16 %v560
      %v636 = vunpack.c.h.b16 %v560
      %v637 = vunpack.c.l.b16 %v561
      %v638 = vunpack.c.l.b16 %v562
      %v639 = vunpack.c.h.b16 %v562
      %v640 = vunpack.c.l.b16 %v563
      %v641 = vunpack.c.l.b16 %v564
      %v642 = vunpack.c.h.b16 %v564
      %v643 = vunpack.c.l.b16 %v565
      %v644 = vunpack.c.l.b16 %v566
      %v645 = vunpack.c.h.b16 %v566
      %v646 = vunpack.c.l.b16 %v567
      %v647 = vunpack.c.l.b16 %v568
      %v648 = vunpack.c.h.b16 %v568
      %v649 = vunpack.c.l.b16 %v569
      %v650 = vpack.c.b16 %v605, %v602
      %v651 = vpack.c.b16 %v606, %v603
      %v652 = vpack.c.b16 %v607, %v604
      %v653 = vpack.c.b16 %v611, %v608
      %v654 = vpack.c.b16 %v612, %v609
      %v655 = vpack.c.b16 %v613, %v610
      %v656 = vpack.c.b16 %v617, %v614
      %v657 = vpack.c.b16 %v618, %v615
      %v658 = vpack.c.b16 %v619, %v616
      %v659 = vpack.c.b16 %v623, %v620
      %v660 = vpack.c.b16 %v624, %v621
      %v661 = vpack.c.b16 %v625, %v622
      %v662 = vpack.c.b16 %v629, %v626
      %v663 = vpack.c.b16 %v630, %v627
      %v664 = vpack.c.b16 %v631, %v628
      %v665 = vpack.c.b16 %v635, %v632
      %v666 = vpack.c.b16 %v636, %v633
      %v667 = vpack.c.b16 %v637, %v634
      %v668 = vpack.c.b16 %v641, %v638
      %v669 = vpack.c.b16 %v642, %v639
      %v670 = vpack.c.b16 %v643, %v640
      %v671 = vpack.c.b16 %v647, %v644
      %v672 = vpack.c.b16 %v648, %v645
      %v673 = vpack.c.b16 %v649, %v646
      %698 = vmatprep.subr.bf16.mxu0 %v651
      %699 = vmatpush1.bf16.msra.mxu0 %v650
      %700 = vmatprep.subr.bf16.mxu0 %v654
      %701 = vmatpush1.bf16.msra.mxu0 %v653
      %702 = vmatprep.subr.bf16.mxu0 %v657
      %703 = vmatpush1.bf16.msra.mxu0 %v656
      %704 = vmatprep.subr.bf16.mxu0 %v660
      %705 = vmatpush1.bf16.msra.mxu0 %v659
      %706 = vmatprep.subr.bf16.mxu0 %v663
      %707 = vmatpush1.bf16.msra.mxu0 %v662
      %708 = vmatprep.subr.bf16.mxu0 %v666
      %709 = vmatpush1.bf16.msra.mxu0 %v665
      %710 = vmatprep.subr.bf16.mxu0 %v669
      %711 = vmatpush1.bf16.msra.mxu0 %v668
      %712 = vmatprep.subr.bf16.mxu0 %v672
      %713 = vmatpush1.bf16.msra.mxu0 %v671
      %714 = vmatprep.subr.bf16.mxu0 0
      %715 = vmatpush1.bf16.msra.mxu0 0
      %716 = vmatprep.subr.bf16.mxu0 0
      %717 = vmatpush1.bf16.msra.mxu0 0
      %718 = vmatprep.subr.bf16.mxu0 0
      %719 = vmatpush1.bf16.msra.mxu0 0
      %720 = vmatprep.subr.bf16.mxu0 0
      %721 = vmatpush1.bf16.msra.mxu0 0
      %722 = vmatprep.subr.bf16.mxu0 0
      %723 = vmatpush1.bf16.msra.mxu0 0
      %724 = vmatprep.subr.bf16.mxu0 0
      %725 = vmatpush1.bf16.msra.mxu0 0
      %726 = vmatprep.subr.bf16.mxu0 0
      %727 = vmatpush1.bf16.msra.mxu0 0
      %728 = vmatprep.subr.bf16.mxu0 0
      %729 = vmatpush1.bf16.msra.mxu0 0
      %730 = vmatprep.mubr.bf16.mxu0 0
      %731 = vmatmul.mubr.bf16.gmra.mrb[0].mxu0 %v245
      %v732 = vpop.f32.mrb[0].mxu0
      %v733 = vadd.f32 0.0, %v732
      %v734 = vpop.f32.mrb[0].mxu0
      %v735 = vadd.f32 0.0, %v734
      %v736 = vpop.f32.mrb[0].mxu0
      %v737 = vadd.f32 0.0, %v736
      %v738 = vpop.f32.mrb[0].mxu0
      %v739 = vadd.f32 0.0, %v738
      %740 = vmatprep.mubr.bf16.mxu0 0
      %741 = vmatmul.mubr.bf16.gmra.mrb[0].mxu0 %v246
      %v742 = vpop.f32.mrb[0].mxu0
      %v743 = vadd.f32 0.0, %v742
      %v744 = vpop.f32.mrb[0].mxu0
      %v745 = vadd.f32 0.0, %v744
      %v746 = vpop.f32.mrb[0].mxu0
      %v747 = vadd.f32 0.0, %v746
      %v748 = vpop.f32.mrb[0].mxu0
      %v749 = vadd.f32 0.0, %v748
      %750 = vmatprep.mubr.bf16.mxu0 0
      %751 = vmatmul.mubr.bf16.gmra.mrb[0].mxu0 %v247
      %v752 = vpop.f32.mrb[0].mxu0
      %v753 = vadd.f32 0.0, %v752
      %v754 = vpop.f32.mrb[0].mxu0
      %v755 = vadd.f32 0.0, %v754
      %v756 = vpop.f32.mrb[0].mxu0
      %v757 = vadd.f32 0.0, %v756
      %v758 = vpop.f32.mrb[0].mxu0
      %v759 = vadd.f32 0.0, %v758
      %760 = vmatprep.mubr.bf16.mxu0 0
      %761 = vmatmul.mubr.bf16.gmra.mrb[0].mxu0 %v248
      %v762 = vpop.f32.mrb[0].mxu0
      %v763 = vadd.f32 0.0, %v762
      %v764 = vpop.f32.mrb[0].mxu0
      %v765 = vadd.f32 0.0, %v764
      %v766 = vpop.f32.mrb[0].mxu0
      %v767 = vpop.f32.mrb[0].mxu0
      %768 = vdwg.mxu0
      %769 = vmatprep.subr.bf16.mxu0 0
      %770 = vmatpush1.bf16.msra.mxu0 %v652
      %771 = vmatprep.subr.bf16.mxu0 0
      %772 = vmatpush1.bf16.msra.mxu0 %v655
      %773 = vmatprep.subr.bf16.mxu0 0
      %774 = vmatpush1.bf16.msra.mxu0 %v658
      %775 = vmatprep.subr.bf16.mxu0 0
      %776 = vmatpush1.bf16.msra.mxu0 %v661
      %777 = vmatprep.subr.bf16.mxu0 0
      %778 = vmatpush1.bf16.msra.mxu0 %v664
      %779 = vmatprep.subr.bf16.mxu0 0
      %780 = vmatpush1.bf16.msra.mxu0 %v667
      %781 = vmatprep.subr.bf16.mxu0 0
      %782 = vmatpush1.bf16.msra.mxu0 %v670
      %783 = vmatprep.subr.bf16.mxu0 0
      %784 = vmatpush1.bf16.msra.mxu0 %v673
      %785 = vmatprep.subr.bf16.mxu0 0
      %786 = vmatpush1.bf16.msra.mxu0 0
      %787 = vmatprep.subr.bf16.mxu0 0
      %788 = vmatpush1.bf16.msra.mxu0 0
      %789 = vmatprep.subr.bf16.mxu0 0
      %790 = vmatpush1.bf16.msra.mxu0 0
      %791 = vmatprep.subr.bf16.mxu0 0
      %792 = vmatpush1.bf16.msra.mxu0 0
      %793 = vmatprep.subr.bf16.mxu0 0
      %794 = vmatpush1.bf16.msra.mxu0 0
      %795 = vmatprep.subr.bf16.mxu0 0
      %796 = vmatpush1.bf16.msra.mxu0 0
      %797 = vmatprep.subr.bf16.mxu0 0
      %798 = vmatpush1.bf16.msra.mxu0 0
      %799 = vmatprep.subr.bf16.mxu0 0
      %800 = vmatpush1.bf16.msra.mxu0 0
      %801 = vmatprep.mubr.bf16.mxu0 0
      %802 = vmatmul.mubr.bf16.gmra.mrb[0].mxu0 %v245
      %v803 = vpop.f32.mrb[0].mxu0
      %v804 = vadd.f32 0.0, %v803
      %v805 = vpop.f32.mrb[0].mxu0
      %v806 = vpop.f32.mrb[0].mxu0
      %v807 = vadd.f32 0.0, %v806
      %v808 = vpop.f32.mrb[0].mxu0
      %809 = vmatprep.mubr.bf16.mxu0 0
      %810 = vmatmul.mubr.bf16.gmra.mrb[0].mxu0 %v246
      %v811 = vpop.f32.mrb[0].mxu0
      %v812 = vadd.f32 0.0, %v811
      %v813 = vpop.f32.mrb[0].mxu0
      %v814 = vpop.f32.mrb[0].mxu0
      %v815 = vadd.f32 0.0, %v814
      %v816 = vpop.f32.mrb[0].mxu0
      %817 = vmatprep.mubr.bf16.mxu0 0
      %818 = vmatmul.mubr.bf16.gmra.mrb[0].mxu0 %v247
      %v819 = vpop.f32.mrb[0].mxu0
      %v820 = vadd.f32 0.0, %v819
      %v821 = vpop.f32.mrb[0].mxu0
      %v822 = vpop.f32.mrb[0].mxu0
      %v823 = vadd.f32 0.0, %v822
      %v824 = vpop.f32.mrb[0].mxu0
      %825 = vmatprep.mubr.bf16.mxu0 0
      %826 = vmatmul.mubr.bf16.gmra.mrb[0].mxu0 %v248
      %v827 = vpop.f32.mrb[0].mxu0
      %v828 = vadd.f32 0.0, %v827
      %v829 = vpop.f32.mrb[0].mxu0
      %v830 = vpop.f32.mrb[0].mxu0
      %v831 = vpop.f32.mrb[0].mxu0
      %832 = vdwg.mxu0
      %833 = vst [vmem:[#allocation2 + $0x18] sm:$0xff] %v733
      %834 = vst [vmem:[#allocation2 + $0x20] sm:$0xff] %v735
      %835 = vst [vmem:[#allocation2 + $0x28] sm:$0xff] %v804
      %836 = vst [vmem:[#allocation2 + $0x60] sm:$0xff] %v737
      %837 = vst [vmem:[#allocation2 + $0x68] sm:$0xff] %v739
      %838 = vst [vmem:[#allocation2 + $0x70] sm:$0xff] %v807
      %839 = vst [vmem:[#allocation2 + $0xa8] sm:$0xff] %v743
      %840 = vst [vmem:[#allocation2 + $0xb0] sm:$0xff] %v745
      %841 = vst [vmem:[#allocation2 + $0xb8] sm:$0xff] %v812
      %842 = vst [vmem:[#allocation2 + $0xf0] sm:$0xff] %v747
      %843 = vst [vmem:[#allocation2 + $0xf8] sm:$0xff] %v749
      %844 = vst [vmem:[#allocation2 + $0x100] sm:$0xff] %v815
      %845 = vst [vmem:[#allocation2 + $0x138] sm:$0xff] %v753
      %846 = vst [vmem:[#allocation2 + $0x140] sm:$0xff] %v755
      %847 = vst [vmem:[#allocation2 + $0x148] sm:$0xff] %v820
      %848 = vst [vmem:[#allocation2 + $0x180] sm:$0xff] %v757
      %849 = vst [vmem:[#allocation2 + $0x188] sm:$0xff] %v759
      %850 = vst [vmem:[#allocation2 + $0x190] sm:$0xff] %v823
      %851 = vst [vmem:[#allocation2 + $0x1c8] sm:$0x1] %v763
      %852 = vst [vmem:[#allocation2 + $0x1d0] sm:$0x1] %v765
      %853 = vst [vmem:[#allocation2 + $0x1d8] sm:$0x1] %v828
      %s854 = scalar_lea.vmem %s1, 384
      %v855 = vld [vmem:[%s854] sm:$0xff]
      %v856 = vld [vmem:[%s854 + $0x8] sm:$0xf]
      %v857 = vld [vmem:[%s854 + $0xc] sm:$0xff]
      %v858 = vld [vmem:[%s854 + $0x14] sm:$0xf]
      %v859 = vld [vmem:[%s854 + $0x18] sm:$0xff]
      %v860 = vld [vmem:[%s854 + $0x20] sm:$0xf]
      %v861 = vld [vmem:[%s854 + $0x24] sm:$0xff]
      %v862 = vld [vmem:[%s854 + $0x2c] sm:$0xf]
      %v863 = vld [vmem:[%s854 + $0x30] sm:$0xff]
      %v864 = vld [vmem:[%s854 + $0x38] sm:$0xf]
      %v865 = vld [vmem:[%s854 + $0x3c] sm:$0xff]
      %v866 = vld [vmem:[%s854 + $0x44] sm:$0xf]
      %v867 = vld [vmem:[%s854 + $0x48] sm:$0xff]
      %v868 = vld [vmem:[%s854 + $0x50] sm:$0xf]
      %v869 = vld [vmem:[%s854 + $0x54] sm:$0xff]
      %v870 = vld [vmem:[%s854 + $0x5c] sm:$0xf]
      %v871 = vld [vmem:[%s854 + $0x60] sm:$0xff]
      %v872 = vld [vmem:[%s854 + $0x68] sm:$0xf]
      %v873 = vld [vmem:[%s854 + $0x6c] sm:$0xff]
      %v874 = vld [vmem:[%s854 + $0x74] sm:$0xf]
      %v875 = vld [vmem:[%s854 + $0x78] sm:$0xff]
      %v876 = vld [vmem:[%s854 + $0x80] sm:$0xf]
      %v877 = vld [vmem:[%s854 + $0x84] sm:$0xff]
      %v878 = vld [vmem:[%s854 + $0x8c] sm:$0xf]
      %v879 = vld [vmem:[%s854 + $0x90] sm:$0xff]
      %v880 = vld [vmem:[%s854 + $0x98] sm:$0xf]
      %v881 = vld [vmem:[%s854 + $0x9c] sm:$0xff]
      %v882 = vld [vmem:[%s854 + $0xa4] sm:$0xf]
      %v883 = vld [vmem:[%s854 + $0xa8] sm:$0xff]
      %v884 = vld [vmem:[%s854 + $0xb0] sm:$0xf]
      %v885 = vld [vmem:[%s854 + $0xb4] sm:$0xff]
      %v886 = vld [vmem:[%s854 + $0xbc] sm:$0xf]
      %v919 = vunpack.c.l.b16 %v855
      %v920 = vunpack.c.h.b16 %v855
      %v921 = vunpack.c.l.b16 %v856
      %v922 = vunpack.c.l.b16 %v857
      %v923 = vunpack.c.h.b16 %v857
      %v924 = vunpack.c.l.b16 %v858
      %v925 = vunpack.c.l.b16 %v859
      %v926 = vunpack.c.h.b16 %v859
      %v927 = vunpack.c.l.b16 %v860
      %v928 = vunpack.c.l.b16 %v861
      %v929 = vunpack.c.h.b16 %v861
      %v930 = vunpack.c.l.b16 %v862
      %v931 = vunpack.c.l.b16 %v863
      %v932 = vunpack.c.h.b16 %v863
      %v933 = vunpack.c.l.b16 %v864
      %v934 = vunpack.c.l.b16 %v865
      %v935 = vunpack.c.h.b16 %v865
      %v936 = vunpack.c.l.b16 %v866
      %v937 = vunpack.c.l.b16 %v867
      %v938 = vunpack.c.h.b16 %v867
      %v939 = vunpack.c.l.b16 %v868
      %v940 = vunpack.c.l.b16 %v869
      %v941 = vunpack.c.h.b16 %v869
      %v942 = vunpack.c.l.b16 %v870
      %v943 = vunpack.c.l.b16 %v871
      %v944 = vunpack.c.h.b16 %v871
      %v945 = vunpack.c.l.b16 %v872
      %v946 = vunpack.c.l.b16 %v873
      %v947 = vunpack.c.h.b16 %v873
      %v948 = vunpack.c.l.b16 %v874
      %v949 = vunpack.c.l.b16 %v875
      %v950 = vunpack.c.h.b16 %v875
      %v951 = vunpack.c.l.b16 %v876
      %v952 = vunpack.c.l.b16 %v877
      %v953 = vunpack.c.h.b16 %v877
      %v954 = vunpack.c.l.b16 %v878
      %v955 = vunpack.c.l.b16 %v879
      %v956 = vunpack.c.h.b16 %v879
      %v957 = vunpack.c.l.b16 %v880
      %v958 = vunpack.c.l.b16 %v881
      %v959 = vunpack.c.h.b16 %v881
      %v960 = vunpack.c.l.b16 %v882
      %v961 = vunpack.c.l.b16 %v883
      %v962 = vunpack.c.h.b16 %v883
      %v963 = vunpack.c.l.b16 %v884
      %v964 = vunpack.c.l.b16 %v885
      %v965 = vunpack.c.h.b16 %v885
      %v966 = vunpack.c.l.b16 %v886
      %v967 = vpack.c.b16 %v922, %v919
      %v968 = vpack.c.b16 %v923, %v920
      %v969 = vpack.c.b16 %v924, %v921
      %v970 = vpack.c.b16 %v928, %v925
      %v971 = vpack.c.b16 %v929, %v926
      %v972 = vpack.c.b16 %v930, %v927
      %v973 = vpack.c.b16 %v934, %v931
      %v974 = vpack.c.b16 %v935, %v932
      %v975 = vpack.c.b16 %v936, %v933
      %v976 = vpack.c.b16 %v940, %v937
      %v977 = vpack.c.b16 %v941, %v938
      %v978 = vpack.c.b16 %v942, %v939
      %v979 = vpack.c.b16 %v946, %v943
      %v980 = vpack.c.b16 %v947, %v944
      %v981 = vpack.c.b16 %v948, %v945
      %v982 = vpack.c.b16 %v952, %v949
      %v983 = vpack.c.b16 %v953, %v950
      %v984 = vpack.c.b16 %v954, %v951
      %v985 = vpack.c.b16 %v958, %v955
      %v986 = vpack.c.b16 %v959, %v956
      %v987 = vpack.c.b16 %v960, %v957
      %v988 = vpack.c.b16 %v964, %v961
      %v989 = vpack.c.b16 %v965, %v962
      %v990 = vpack.c.b16 %v966, %v963
      %1015 = vmatprep.subr.bf16.mxu0 %v968
      %1016 = vmatpush1.bf16.msra.mxu0 %v967
      %1017 = vmatprep.subr.bf16.mxu0 %v971
      %1018 = vmatpush1.bf16.msra.mxu0 %v970
      %1019 = vmatprep.subr.bf16.mxu0 %v974
      %1020 = vmatpush1.bf16.msra.mxu0 %v973
      %1021 = vmatprep.subr.bf16.mxu0 %v977
      %1022 = vmatpush1.bf16.msra.mxu0 %v976
      %1023 = vmatprep.subr.bf16.mxu0 %v980
      %1024 = vmatpush1.bf16.msra.mxu0 %v979
      %1025 = vmatprep.subr.bf16.mxu0 %v983
      %1026 = vmatpush1.bf16.msra.mxu0 %v982
      %1027 = vmatprep.subr.bf16.mxu0 %v986
      %1028 = vmatpush1.bf16.msra.mxu0 %v985
      %1029 = vmatprep.subr.bf16.mxu0 %v989
      %1030 = vmatpush1.bf16.msra.mxu0 %v988
      %1031 = vmatprep.subr.bf16.mxu0 0
      %1032 = vmatpush1.bf16.msra.mxu0 0
      %1033 = vmatprep.subr.bf16.mxu0 0
      %1034 = vmatpush1.bf16.msra.mxu0 0
      %1035 = vmatprep.subr.bf16.mxu0 0
      %1036 = vmatpush1.bf16.msra.mxu0 0
      %1037 = vmatprep.subr.bf16.mxu0 0
      %1038 = vmatpush1.bf16.msra.mxu0 0
      %1039 = vmatprep.subr.bf16.mxu0 0
      %1040 = vmatpush1.bf16.msra.mxu0 0
      %1041 = vmatprep.subr.bf16.mxu0 0
      %1042 = vmatpush1.bf16.msra.mxu0 0
      %1043 = vmatprep.subr.bf16.mxu0 0
      %1044 = vmatpush1.bf16.msra.mxu0 0
      %1045 = vmatprep.subr.bf16.mxu0 0
      %1046 = vmatpush1.bf16.msra.mxu0 0
      %1047 = vmatprep.mubr.bf16.mxu0 0
      %1048 = vmatmul.mubr.bf16.gmra.mrb[0].mxu0 %v245
      %v1049 = vpop.f32.mrb[0].mxu0
      %v1050 = vadd.f32 0.0, %v1049
      %v1051 = vpop.f32.mrb[0].mxu0
      %v1052 = vadd.f32 0.0, %v1051
      %v1053 = vpop.f32.mrb[0].mxu0
      %v1054 = vadd.f32 0.0, %v1053
      %v1055 = vpop.f32.mrb[0].mxu0
      %v1056 = vadd.f32 0.0, %v1055
      %1057 = vmatprep.mubr.bf16.mxu0 0
      %1058 = vmatmul.mubr.bf16.gmra.mrb[0].mxu0 %v246
      %v1059 = vpop.f32.mrb[0].mxu0
      %v1060 = vadd.f32 0.0, %v1059
      %v1061 = vpop.f32.mrb[0].mxu0
      %v1062 = vadd.f32 0.0, %v1061
      %v1063 = vpop.f32.mrb[0].mxu0
      %v1064 = vadd.f32 0.0, %v1063
      %v1065 = vpop.f32.mrb[0].mxu0
      %v1066 = vadd.f32 0.0, %v1065
      %1067 = vmatprep.mubr.bf16.mxu0 0
      %1068 = vmatmul.mubr.bf16.gmra.mrb[0].mxu0 %v247
      %v1069 = vpop.f32.mrb[0].mxu0
      %v1070 = vadd.f32 0.0, %v1069
      %v1071 = vpop.f32.mrb[0].mxu0
      %v1072 = vadd.f32 0.0, %v1071
      %v1073 = vpop.f32.mrb[0].mxu0
      %v1074 = vadd.f32 0.0, %v1073
      %v1075 = vpop.f32.mrb[0].mxu0
      %v1076 = vadd.f32 0.0, %v1075
      %1077 = vmatprep.mubr.bf16.mxu0 0
      %1078 = vmatmul.mubr.bf16.gmra.mrb[0].mxu0 %v248
      %v1079 = vpop.f32.mrb[0].mxu0
      %v1080 = vadd.f32 0.0, %v1079
      %v1081 = vpop.f32.mrb[0].mxu0
      %v1082 = vadd.f32 0.0, %v1081
      %v1083 = vpop.f32.mrb[0].mxu0
      %v1084 = vpop.f32.mrb[0].mxu0
      %1085 = vdwg.mxu0
      %1086 = vmatprep.subr.bf16.mxu0 0
      %1087 = vmatpush1.bf16.msra.mxu0 %v969
      %1088 = vmatprep.subr.bf16.mxu0 0
      %1089 = vmatpush1.bf16.msra.mxu0 %v972
      %1090 = vmatprep.subr.bf16.mxu0 0
      %1091 = vmatpush1.bf16.msra.mxu0 %v975
      %1092 = vmatprep.subr.bf16.mxu0 0
      %1093 = vmatpush1.bf16.msra.mxu0 %v978
      %1094 = vmatprep.subr.bf16.mxu0 0
      %1095 = vmatpush1.bf16.msra.mxu0 %v981
      %1096 = vmatprep.subr.bf16.mxu0 0
      %1097 = vmatpush1.bf16.msra.mxu0 %v984
      %1098 = vmatprep.subr.bf16.mxu0 0
      %1099 = vmatpush1.bf16.msra.mxu0 %v987
      %1100 = vmatprep.subr.bf16.mxu0 0
      %1101 = vmatpush1.bf16.msra.mxu0 %v990
      %1102 = vmatprep.subr.bf16.mxu0 0
      %1103 = vmatpush1.bf16.msra.mxu0 0
      %1104 = vmatprep.subr.bf16.mxu0 0
      %1105 = vmatpush1.bf16.msra.mxu0 0
      %1106 = vmatprep.subr.bf16.mxu0 0
      %1107 = vmatpush1.bf16.msra.mxu0 0
      %1108 = vmatprep.subr.bf16.mxu0 0
      %1109 = vmatpush1.bf16.msra.mxu0 0
      %1110 = vmatprep.subr.bf16.mxu0 0
      %1111 = vmatpush1.bf16.msra.mxu0 0
      %1112 = vmatprep.subr.bf16.mxu0 0
      %1113 = vmatpush1.bf16.msra.mxu0 0
      %1114 = vmatprep.subr.bf16.mxu0 0
      %1115 = vmatpush1.bf16.msra.mxu0 0
      %1116 = vmatprep.subr.bf16.mxu0 0
      %1117 = vmatpush1.bf16.msra.mxu0 0
      %1118 = vmatprep.mubr.bf16.mxu0 0
      %1119 = vmatmul.mubr.bf16.gmra.mrb[0].mxu0 %v245
      %v1120 = vpop.f32.mrb[0].mxu0
      %v1121 = vadd.f32 0.0, %v1120
      %v1122 = vpop.f32.mrb[0].mxu0
      %v1123 = vpop.f32.mrb[0].mxu0
      %v1124 = vadd.f32 0.0, %v1123
      %v1125 = vpop.f32.mrb[0].mxu0
      %1126 = vmatprep.mubr.bf16.mxu0 0
      %1127 = vmatmul.mubr.bf16.gmra.mrb[0].mxu0 %v246
      %v1128 = vpop.f32.mrb[0].mxu0
      %v1129 = vadd.f32 0.0, %v1128
      %v1130 = vpop.f32.mrb[0].mxu0
      %v1131 = vpop.f32.mrb[0].mxu0
      %v1132 = vadd.f32 0.0, %v1131
      %v1133 = vpop.f32.mrb[0].mxu0
      %1134 = vmatprep.mubr.bf16.mxu0 0
      %1135 = vmatmul.mubr.bf16.gmra.mrb[0].mxu0 %v247
      %v1136 = vpop.f32.mrb[0].mxu0
      %v1137 = vadd.f32 0.0, %v1136
      %v1138 = vpop.f32.mrb[0].mxu0
      %v1139 = vpop.f32.mrb[0].mxu0
      %v1140 = vadd.f32 0.0, %v1139
      %v1141 = vpop.f32.mrb[0].mxu0
      %1142 = vmatprep.mubr.bf16.mxu0 0
      %1143 = vmatmul.mubr.bf16.gmra.mrb[0].mxu0 %v248
      %v1144 = vpop.f32.mrb[0].mxu0
      %v1145 = vadd.f32 0.0, %v1144
      %v1146 = vpop.f32.mrb[0].mxu0
      %v1147 = vpop.f32.mrb[0].mxu0
      %v1148 = vpop.f32.mrb[0].mxu0
      %1149 = vdwg.mxu0
      %1150 = vst [vmem:[#allocation2 + $0x30] sm:$0xff] %v1050
      %1151 = vst [vmem:[#allocation2 + $0x38] sm:$0xff] %v1052
      %1152 = vst [vmem:[#allocation2 + $0x40] sm:$0xff] %v1121
      %1153 = vst [vmem:[#allocation2 + $0x78] sm:$0xff] %v1054
      %1154 = vst [vmem:[#allocation2 + $0x80] sm:$0xff] %v1056
      %1155 = vst [vmem:[#allocation2 + $0x88] sm:$0xff] %v1124
      %1156 = vst [vmem:[#allocation2 + $0xc0] sm:$0xff] %v1060
      %1157 = vst [vmem:[#allocation2 + $0xc8] sm:$0xff] %v1062
      %1158 = vst [vmem:[#allocation2 + $0xd0] sm:$0xff] %v1129
      %1159 = vst [vmem:[#allocation2 + $0x108] sm:$0xff] %v1064
      %1160 = vst [vmem:[#allocation2 + $0x110] sm:$0xff] %v1066
      %1161 = vst [vmem:[#allocation2 + $0x118] sm:$0xff] %v1132
      %1162 = vst [vmem:[#allocation2 + $0x150] sm:$0xff] %v1070
      %1163 = vst [vmem:[#allocation2 + $0x158] sm:$0xff] %v1072
      %1164 = vst [vmem:[#allocation2 + $0x160] sm:$0xff] %v1137
      %1165 = vst [vmem:[#allocation2 + $0x198] sm:$0xff] %v1074
      %1166 = vst [vmem:[#allocation2 + $0x1a0] sm:$0xff] %v1076
      %1167 = vst [vmem:[#allocation2 + $0x1a8] sm:$0xff] %v1140
      %1168 = vst [vmem:[#allocation2 + $0x1e0] sm:$0x1] %v1080
      %1169 = vst [vmem:[#allocation2 + $0x1e8] sm:$0x1] %v1082
      %1170 = vst [vmem:[#allocation2 + $0x1f0] sm:$0x1] %v1145
      %1171 = vst [vmem:[#allocation3] sm:$0xff] 0.0
      %1172 = vst [vmem:[#allocation3 + $0x8] sm:$0xff] 0.0
      %1173 = vst [vmem:[#allocation3 + $0x10] sm:$0xff] 0.0
      %v1174 = vld [vmem:[#allocation2] sm:$0x7f]
      %1175 = vst [vmem:[#allocation3] sm:$0x7f] %v1174
      %v1176 = vld [vmem:[#allocation2 + $0x8] sm:$0x7f]
      %s1177 = scalar_lea.vmem [#allocation3], 8
      %1178 = vst [vmem:[%s1177] sm:$0x7f] %v1176
      %v1179 = vld [vmem:[#allocation2 + $0x10] sm:$0x7f]
      %s1180 = scalar_lea.vmem [#allocation3], 16
      %1181 = vst [vmem:[%s1180 + $0x1] sm:$0x7f] %v1179
      %v1182 = vld [vmem:[#allocation3] sm:$0xff]
      %v1183 = vld [vmem:[%s1180] sm:$0xff]
      %v1184 = vadd.f32 %v1182, %v1183
      %v1185 = vld [vmem:[%s1177] sm:$0x7f]
      %1186 = vst [vmem:[#allocation4] ss:$2 sm:$0xff] %v1184
      %s1187 = scalar_lea.vmem [#allocation4], 1
      %1188 = vst [vmem:[%s1187] ss:$2 sm:$0x7f] %v1185
      %v1189 = vld [vmem:[#allocation2 + $0x18] sm:$0x7f]
      %1190 = vst [vmem:[#allocation3] sm:$0x7f] %v1189
      %v1191 = vld [vmem:[#allocation2 + $0x20] sm:$0x7f]
      %1192 = vst [vmem:[%s1177] sm:$0x7f] %v1191
      %v1193 = vld [vmem:[#allocation2 + $0x28] sm:$0x7f]
      %1194 = vst [vmem:[%s1180 + $0x1] sm:$0x7f] %v1193
      %v1195 = vld [vmem:[#allocation3] sm:$0xff]
      %v1196 = vld [vmem:[%s1180] sm:$0xff]
      %v1197 = vadd.f32 %v1195, %v1196
      %v1198 = vld [vmem:[%s1177] sm:$0x7f]
      %s1199 = scalar_lea.vmem [#allocation4], 15
      %1200 = vst [vmem:[%s1199] ss:$2 sm:$0xff] %v1197
      %s1201 = scalar_lea.vmem [#allocation4], 16
      %1202 = vst [vmem:[%s1201] ss:$2 sm:$0x7f] %v1198
      %v1203 = vld [vmem:[#allocation2] sm:$0x80]
      %v1204 = vld [vmem:[#allocation2 + $0x48] sm:$0x3f]
      %v1205 = vld [vmem:[#allocation2 + $0x30] sm:$0x7f]
      %v1207 = vrot.slane %v1205, 1
      %v1209 = vadd.f32 %v1203, %v1207
      %v1210 = vadd.f32 %v1204, %v1207
      %1211 = vst [vmem:[#allocation3 - $0x7] sm:$0x80] %v1209
      %1212 = vst [vmem:[#allocation3 + $0x1] sm:$0x3f] %v1210
      %v1213 = vld [vmem:[#allocation2 + $0x8] sm:$0x80]
      %v1214 = vld [vmem:[#allocation2 + $0x50] sm:$0x3f]
      %v1215 = vld [vmem:[#allocation2 + $0x38] sm:$0x7f]
      %v1217 = vrot.slane %v1215, 1
      %v1219 = vadd.f32 %v1213, %v1217
      %v1220 = vadd.f32 %v1214, %v1217
      %1221 = vst [vmem:[%s1177 - $0x7] sm:$0x80] %v1219
      %1222 = vst [vmem:[%s1177 + $0x1] sm:$0x3f] %v1220
      %v1223 = vld [vmem:[#allocation2 + $0x10] sm:$0x80]
      %v1224 = vld [vmem:[#allocation2 + $0x58] sm:$0x3f]
      %v1225 = vld [vmem:[#allocation2 + $0x40] sm:$0x7f]
      %v1227 = vrot.slane %v1225, 1
      %v1229 = vadd.f32 %v1223, %v1227
      %v1230 = vadd.f32 %v1224, %v1227
      %1231 = vst [vmem:[%s1180 - $0x6] sm:$0x80] %v1229
      %1232 = vst [vmem:[%s1180 + $0x2] sm:$0x3f] %v1230
      %v1233 = vld [vmem:[#allocation3] sm:$0xff]
      %v1234 = vld [vmem:[%s1180] sm:$0xff]
      %v1235 = vadd.f32 %v1233, %v1234
      %v1236 = vld [vmem:[%s1177] sm:$0x7f]
      %s1237 = scalar_lea.vmem [#allocation4], 30
      %1238 = vst [vmem:[%s1237] ss:$2 sm:$0xff] %v1235
      %s1239 = scalar_lea.vmem [#allocation4], 31
      %1240 = vst [vmem:[%s1239] ss:$2 sm:$0x7f] %v1236
      %v1241 = vld [vmem:[#allocation2 + $0x18] sm:$0x80]
      %v1242 = vld [vmem:[#allocation2 + $0x60] sm:$0x3f]
      %1243 = vst [vmem:[#allocation3 - $0x7] sm:$0x80] %v1241
      %1244 = vst [vmem:[#allocation3 + $0x1] sm:$0x3f] %v1242
      %v1245 = vld [vmem:[#allocation2 + $0x20] sm:$0x80]
      %v1246 = vld [vmem:[#allocation2 + $0x68] sm:$0x3f]
      %1247 = vst [vmem:[%s1177 - $0x7] sm:$0x80] %v1245
      %1248 = vst [vmem:[%s1177 + $0x1] sm:$0x3f] %v1246
      %v1249 = vld [vmem:[#allocation2 + $0x28] sm:$0x80]
      %v1250 = vld [vmem:[#allocation2 + $0x70] sm:$0x3f]
      %1251 = vst [vmem:[%s1180 - $0x6] sm:$0x80] %v1249
      %1252 = vst [vmem:[%s1180 + $0x2] sm:$0x3f] %v1250
      %v1253 = vld [vmem:[#allocation3] sm:$0xff]
      %v1254 = vld [vmem:[%s1180] sm:$0xff]
      %v1255 = vadd.f32 %v1253, %v1254
      %v1256 = vld [vmem:[%s1177] sm:$0x7f]
      %s1257 = scalar_lea.vmem [#allocation4], 45
      %1258 = vst [vmem:[%s1257] ss:$2 sm:$0xff] %v1255
      %s1259 = scalar_lea.vmem [#allocation4], 46
      %1260 = vst [vmem:[%s1259] ss:$2 sm:$0x7f] %v1256
      %v1261 = vld [vmem:[#allocation2 + $0x48] sm:$0xc0]
      %v1262 = vld [vmem:[#allocation2 + $0x90] sm:$0x1f]
      %v1263 = vld [vmem:[#allocation2 + $0x30] sm:$0x80]
      %v1264 = vld [vmem:[#allocation2 + $0x78] sm:$0x3f]
      %vm1267 = vcmask 1046528
      %v1268 = vrot.slane %v1263, 1
      %v1269 = vrot.slane %v1264, 1
      %v1270 = vsel %vm1267, %v1268, %v1269
      %v1273 = vadd.f32 %v1261, %v1270
      %v1274 = vadd.f32 %v1262, %v1269
      %1275 = vst [vmem:[#allocation3 - $0x6] sm:$0xc0] %v1273
      %1276 = vst [vmem:[#allocation3 + $0x2] sm:$0x1f] %v1274
      %v1277 = vld [vmem:[#allocation2 + $0x50] sm:$0xc0]
      %v1278 = vld [vmem:[#allocation2 + $0x98] sm:$0x1f]
      %v1279 = vld [vmem:[#allocation2 + $0x38] sm:$0x80]
      %v1280 = vld [vmem:[#allocation2 + $0x80] sm:$0x3f]
      %v1283 = vrot.slane %v1279, 1
      %v1284 = vrot.slane %v1280, 1
      %v1285 = vsel %vm1267, %v1283, %v1284
      %v1288 = vadd.f32 %v1277, %v1285
      %v1289 = vadd.f32 %v1278, %v1284
      %1290 = vst [vmem:[%s1177 - $0x6] sm:$0xc0] %v1288
      %1291 = vst [vmem:[%s1177 + $0x2] sm:$0x1f] %v1289
      %v1292 = vld [vmem:[#allocation2 + $0x58] sm:$0xc0]
      %v1293 = vld [vmem:[#allocation2 + $0xa0] sm:$0x1f]
      %v1294 = vld [vmem:[#allocation2 + $0x40] sm:$0x80]
      %v1295 = vld [vmem:[#allocation2 + $0x88] sm:$0x3f]
      %v1298 = vrot.slane %v1294, 1
      %v1299 = vrot.slane %v1295, 1
      %v1300 = vsel %vm1267, %v1298, %v1299
      %v1303 = vadd.f32 %v1292, %v1300
      %v1304 = vadd.f32 %v1293, %v1299
      %1305 = vst [vmem:[%s1180 - $0x5] sm:$0xc0] %v1303
      %1306 = vst [vmem:[%s1180 + $0x3] sm:$0x1f] %v1304
      %v1307 = vld [vmem:[#allocation3] sm:$0xff]
      %v1308 = vld [vmem:[%s1180] sm:$0xff]
      %v1309 = vadd.f32 %v1307, %v1308
      %v1310 = vld [vmem:[%s1177] sm:$0x7f]
      %s1311 = scalar_lea.vmem [#allocation4], 60
      %1312 = vst [vmem:[%s1311] ss:$2 sm:$0xff] %v1309
      %s1313 = scalar_lea.vmem [#allocation4], 61
      %1314 = vst [vmem:[%s1313] ss:$2 sm:$0x7f] %v1310
      %v1315 = vld [vmem:[#allocation2 + $0x60] sm:$0xc0]
      %v1316 = vld [vmem:[#allocation2 + $0xa8] sm:$0x1f]
      %1317 = vst [vmem:[#allocation3 - $0x6] sm:$0xc0] %v1315
      %1318 = vst [vmem:[#allocation3 + $0x2] sm:$0x1f] %v1316
      %v1319 = vld [vmem:[#allocation2 + $0x68] sm:$0xc0]
      %v1320 = vld [vmem:[#allocation2 + $0xb0] sm:$0x1f]
      %1321 = vst [vmem:[%s1177 - $0x6] sm:$0xc0] %v1319
      %1322 = vst [vmem:[%s1177 + $0x2] sm:$0x1f] %v1320
      %v1323 = vld [vmem:[#allocation2 + $0x70] sm:$0xc0]
      %v1324 = vld [vmem:[#allocation2 + $0xb8] sm:$0x1f]
      %1325 = vst [vmem:[%s1180 - $0x5] sm:$0xc0] %v1323
      %1326 = vst [vmem:[%s1180 + $0x3] sm:$0x1f] %v1324
      %v1327 = vld [vmem:[#allocation3] sm:$0xff]
      %v1328 = vld [vmem:[%s1180] sm:$0xff]
      %v1329 = vadd.f32 %v1327, %v1328
      %v1330 = vld [vmem:[%s1177] sm:$0x7f]
      %s1331 = scalar_lea.vmem [#allocation4], 75
      %1332 = vst [vmem:[%s1331] ss:$2 sm:$0xff] %v1329
      %s1333 = scalar_lea.vmem [#allocation4], 76
      %1334 = vst [vmem:[%s1333] ss:$2 sm:$0x7f] %v1330
      %v1335 = vld [vmem:[#allocation2 + $0x90] sm:$0xe0]
      %v1336 = vld [vmem:[#allocation2 + $0xd8] sm:$0xf]
      %v1337 = vld [vmem:[#allocation2 + $0x78] sm:$0xc0]
      %v1338 = vld [vmem:[#allocation2 + $0xc0] sm:$0x1f]
      %v1341 = vrot.slane %v1337, 1
      %v1342 = vrot.slane %v1338, 1
      %v1343 = vsel %vm1267, %v1341, %v1342
      %v1346 = vadd.f32 %v1335, %v1343
      %v1347 = vadd.f32 %v1336, %v1342
      %1348 = vst [vmem:[#allocation3 - $0x5] sm:$0xe0] %v1346
      %1349 = vst [vmem:[#allocation3 + $0x3] sm:$0xf] %v1347
      %v1350 = vld [vmem:[#allocation2 + $0x98] sm:$0xe0]
      %v1351 = vld [vmem:[#allocation2 + $0xe0] sm:$0xf]
      %v1352 = vld [vmem:[#allocation2 + $0x80] sm:$0xc0]
      %v1353 = vld [vmem:[#allocation2 + $0xc8] sm:$0x1f]
      %v1356 = vrot.slane %v1352, 1
      %v1357 = vrot.slane %v1353, 1
      %v1358 = vsel %vm1267, %v1356, %v1357
      %v1361 = vadd.f32 %v1350, %v1358
      %v1362 = vadd.f32 %v1351, %v1357
      %1363 = vst [vmem:[%s1177 - $0x5] sm:$0xe0] %v1361
      %1364 = vst [vmem:[%s1177 + $0x3] sm:$0xf] %v1362
      %v1365 = vld [vmem:[#allocation2 + $0xa0] sm:$0xe0]
      %v1366 = vld [vmem:[#allocation2 + $0xe8] sm:$0xf]
      %v1367 = vld [vmem:[#allocation2 + $0x88] sm:$0xc0]
      %v1368 = vld [vmem:[#allocation2 + $0xd0] sm:$0x1f]
      %v1371 = vrot.slane %v1367, 1
      %v1372 = vrot.slane %v1368, 1
      %v1373 = vsel %vm1267, %v1371, %v1372
      %v1376 = vadd.f32 %v1365, %v1373
      %v1377 = vadd.f32 %v1366, %v1372
      %1378 = vst [vmem:[%s1180 - $0x4] sm:$0xe0] %v1376
      %1379 = vst [vmem:[%s1180 + $0x4] sm:$0xf] %v1377
      %v1380 = vld [vmem:[#allocation3] sm:$0xff]
      %v1381 = vld [vmem:[%s1180] sm:$0xff]
      %v1382 = vadd.f32 %v1380, %v1381
      %v1383 = vld [vmem:[%s1177] sm:$0x7f]
      %s1384 = scalar_lea.vmem [#allocation4], 90
      %1385 = vst [vmem:[%s1384] ss:$2 sm:$0xff] %v1382
      %s1386 = scalar_lea.vmem [#allocation4], 91
      %1387 = vst [vmem:[%s1386] ss:$2 sm:$0x7f] %v1383
      %v1388 = vld [vmem:[#allocation2 + $0xa8] sm:$0xe0]
      %v1389 = vld [vmem:[#allocation2 + $0xf0] sm:$0xf]
      %1390 = vst [vmem:[#allocation3 - $0x5] sm:$0xe0] %v1388
      %1391 = vst [vmem:[#allocation3 + $0x3] sm:$0xf] %v1389
      %v1392 = vld [vmem:[#allocation2 + $0xb0] sm:$0xe0]
      %v1393 = vld [vmem:[#allocation2 + $0xf8] sm:$0xf]
      %1394 = vst [vmem:[%s1177 - $0x5] sm:$0xe0] %v1392
      %1395 = vst [vmem:[%s1177 + $0x3] sm:$0xf] %v1393
      %v1396 = vld [vmem:[#allocation2 + $0xb8] sm:$0xe0]
      %v1397 = vld [vmem:[#allocation2 + $0x100] sm:$0xf]
      %1398 = vst [vmem:[%s1180 - $0x4] sm:$0xe0] %v1396
      %1399 = vst [vmem:[%s1180 + $0x4] sm:$0xf] %v1397
      %v1400 = vld [vmem:[#allocation3] sm:$0xff]
      %v1401 = vld [vmem:[%s1180] sm:$0xff]
      %v1402 = vadd.f32 %v1400, %v1401
      %v1403 = vld [vmem:[%s1177] sm:$0x7f]
      %s1404 = scalar_lea.vmem [#allocation4], 105
      %1405 = vst [vmem:[%s1404] ss:$2 sm:$0xff] %v1402
      %s1406 = scalar_lea.vmem [#allocation4], 106
      %1407 = vst [vmem:[%s1406] ss:$2 sm:$0x7f] %v1403
      %v1408 = vld [vmem:[#allocation2 + $0xd8] sm:$0xf0]
      %v1409 = vld [vmem:[#allocation2 + $0x120] sm:$0x7]
      %v1410 = vld [vmem:[#allocation2 + $0xc0] sm:$0xe0]
      %v1411 = vld [vmem:[#allocation2 + $0x108] sm:$0xf]
      %v1414 = vrot.slane %v1410, 1
      %v1415 = vrot.slane %v1411, 1
      %v1416 = vsel %vm1267, %v1414, %v1415
      %v1419 = vadd.f32 %v1408, %v1416
      %v1420 = vadd.f32 %v1409, %v1415
      %1421 = vst [vmem:[#allocation3 - $0x4] sm:$0xf0] %v1419
      %1422 = vst [vmem:[#allocation3 + $0x4] sm:$0x7] %v1420
      %v1423 = vld [vmem:[#allocation2 + $0xe0] sm:$0xf0]
      %v1424 = vld [vmem:[#allocation2 + $0x128] sm:$0x7]
      %v1425 = vld [vmem:[#allocation2 + $0xc8] sm:$0xe0]
      %v1426 = vld [vmem:[#allocation2 + $0x110] sm:$0xf]
      %v1429 = vrot.slane %v1425, 1
      %v1430 = vrot.slane %v1426, 1
      %v1431 = vsel %vm1267, %v1429, %v1430
      %v1434 = vadd.f32 %v1423, %v1431
      %v1435 = vadd.f32 %v1424, %v1430
      %1436 = vst [vmem:[%s1177 - $0x4] sm:$0xf0] %v1434
      %1437 = vst [vmem:[%s1177 + $0x4] sm:$0x7] %v1435
      %v1438 = vld [vmem:[#allocation2 + $0xe8] sm:$0xf0]
      %v1439 = vld [vmem:[#allocation2 + $0x130] sm:$0x7]
      %v1440 = vld [vmem:[#allocation2 + $0xd0] sm:$0xe0]
      %v1441 = vld [vmem:[#allocation2 + $0x118] sm:$0xf]
      %v1444 = vrot.slane %v1440, 1
      %v1445 = vrot.slane %v1441, 1
      %v1446 = vsel %vm1267, %v1444, %v1445
      %v1449 = vadd.f32 %v1438, %v1446
      %v1450 = vadd.f32 %v1439, %v1445
      %1451 = vst [vmem:[%s1180 - $0x3] sm:$0xf0] %v1449
      %1452 = vst [vmem:[%s1180 + $0x5] sm:$0x7] %v1450
      %v1453 = vld [vmem:[#allocation3] sm:$0xff]
      %v1454 = vld [vmem:[%s1180] sm:$0xff]
      %v1455 = vadd.f32 %v1453, %v1454
      %v1456 = vld [vmem:[%s1177] sm:$0x7f]
      %s1457 = scalar_lea.vmem [#allocation4], 120
      %1458 = vst [vmem:[%s1457] ss:$2 sm:$0xff] %v1455
      %s1459 = scalar_lea.vmem [#allocation4], 121
      %1460 = vst [vmem:[%s1459] ss:$2 sm:$0x7f] %v1456
      %v1461 = vld [vmem:[#allocation2 + $0xf0] sm:$0xf0]
      %v1462 = vld [vmem:[#allocation2 + $0x138] sm:$0x7]
      %1463 = vst [vmem:[#allocation3 - $0x4] sm:$0xf0] %v1461
      %1464 = vst [vmem:[#allocation3 + $0x4] sm:$0x7] %v1462
      %v1465 = vld [vmem:[#allocation2 + $0xf8] sm:$0xf0]
      %v1466 = vld [vmem:[#allocation2 + $0x140] sm:$0x7]
      %1467 = vst [vmem:[%s1177 - $0x4] sm:$0xf0] %v1465
      %1468 = vst [vmem:[%s1177 + $0x4] sm:$0x7] %v1466
      %v1469 = vld [vmem:[#allocation2 + $0x100] sm:$0xf0]
      %v1470 = vld [vmem:[#allocation2 + $0x148] sm:$0x7]
      %1471 = vst [vmem:[%s1180 - $0x3] sm:$0xf0] %v1469
      %1472 = vst [vmem:[%s1180 + $0x5] sm:$0x7] %v1470
      %v1473 = vld [vmem:[#allocation3] sm:$0xff]
      %v1474 = vld [vmem:[%s1180] sm:$0xff]
      %v1475 = vadd.f32 %v1473, %v1474
      %v1476 = vld [vmem:[%s1177] sm:$0x7f]
      %s1477 = scalar_lea.vmem [#allocation4], 135
      %1478 = vst [vmem:[%s1477] ss:$2 sm:$0xff] %v1475
      %s1479 = scalar_lea.vmem [#allocation4], 136
      %1480 = vst [vmem:[%s1479] ss:$2 sm:$0x7f] %v1476
      %v1481 = vld [vmem:[#allocation2 + $0x120] sm:$0xf8]
      %v1482 = vld [vmem:[#allocation2 + $0x168] sm:$0x3]
      %v1483 = vld [vmem:[#allocation2 + $0x108] sm:$0xf0]
      %v1484 = vld [vmem:[#allocation2 + $0x150] sm:$0x7]
      %v1487 = vrot.slane %v1483, 1
      %v1488 = vrot.slane %v1484, 1
      %v1489 = vsel %vm1267, %v1487, %v1488
      %v1492 = vadd.f32 %v1481, %v1489
      %v1493 = vadd.f32 %v1482, %v1488
      %1494 = vst [vmem:[#allocation3 - $0x3] sm:$0xf8] %v1492
      %1495 = vst [vmem:[#allocation3 + $0x5] sm:$0x3] %v1493
      %v1496 = vld [vmem:[#allocation2 + $0x128] sm:$0xf8]
      %v1497 = vld [vmem:[#allocation2 + $0x170] sm:$0x3]
      %v1498 = vld [vmem:[#allocation2 + $0x110] sm:$0xf0]
      %v1499 = vld [vmem:[#allocation2 + $0x158] sm:$0x7]
      %v1502 = vrot.slane %v1498, 1
      %v1503 = vrot.slane %v1499, 1
      %v1504 = vsel %vm1267, %v1502, %v1503
      %v1507 = vadd.f32 %v1496, %v1504
      %v1508 = vadd.f32 %v1497, %v1503
      %1509 = vst [vmem:[%s1177 - $0x3] sm:$0xf8] %v1507
      %1510 = vst [vmem:[%s1177 + $0x5] sm:$0x3] %v1508
      %v1511 = vld [vmem:[#allocation2 + $0x130] sm:$0xf8]
      %v1512 = vld [vmem:[#allocation2 + $0x178] sm:$0x3]
      %v1513 = vld [vmem:[#allocation2 + $0x118] sm:$0xf0]
      %v1514 = vld [vmem:[#allocation2 + $0x160] sm:$0x7]
      %v1517 = vrot.slane %v1513, 1
      %v1518 = vrot.slane %v1514, 1
      %v1519 = vsel %vm1267, %v1517, %v1518
      %v1522 = vadd.f32 %v1511, %v1519
      %v1523 = vadd.f32 %v1512, %v1518
      %1524 = vst [vmem:[%s1180 - $0x2] sm:$0xf8] %v1522
      %1525 = vst [vmem:[%s1180 + $0x6] sm:$0x3] %v1523
      %v1526 = vld [vmem:[#allocation3] sm:$0xff]
      %v1527 = vld [vmem:[%s1180] sm:$0xff]
      %v1528 = vadd.f32 %v1526, %v1527
      %v1529 = vld [vmem:[%s1177] sm:$0x7f]
      %s1530 = scalar_lea.vmem [#allocation4], 150
      %1531 = vst [vmem:[%s1530] ss:$2 sm:$0xff] %v1528
      %s1532 = scalar_lea.vmem [#allocation4], 151
      %1533 = vst [vmem:[%s1532] ss:$2 sm:$0x7f] %v1529
      %v1534 = vld [vmem:[#allocation2 + $0x138] sm:$0xf8]
      %v1535 = vld [vmem:[#allocation2 + $0x180] sm:$0x3]
      %1536 = vst [vmem:[#allocation3 - $0x3] sm:$0xf8] %v1534
      %1537 = vst [vmem:[#allocation3 + $0x5] sm:$0x3] %v1535
      %v1538 = vld [vmem:[#allocation2 + $0x140] sm:$0xf8]
      %v1539 = vld [vmem:[#allocation2 + $0x188] sm:$0x3]
      %1540 = vst [vmem:[%s1177 - $0x3] sm:$0xf8] %v1538
      %1541 = vst [vmem:[%s1177 + $0x5] sm:$0x3] %v1539
      %v1542 = vld [vmem:[#allocation2 + $0x148] sm:$0xf8]
      %v1543 = vld [vmem:[#allocation2 + $0x190] sm:$0x3]
      %1544 = vst [vmem:[%s1180 - $0x2] sm:$0xf8] %v1542
      %1545 = vst [vmem:[%s1180 + $0x6] sm:$0x3] %v1543
      %v1546 = vld [vmem:[#allocation3] sm:$0xff]
      %v1547 = vld [vmem:[%s1180] sm:$0xff]
      %v1548 = vadd.f32 %v1546, %v1547
      %v1549 = vld [vmem:[%s1177] sm:$0x7f]
      %s1550 = scalar_lea.vmem [#allocation4], 165
      %1551 = vst [vmem:[%s1550] ss:$2 sm:$0xff] %v1548
      %s1552 = scalar_lea.vmem [#allocation4], 166
      %1553 = vst [vmem:[%s1552] ss:$2 sm:$0x7f] %v1549
      %v1554 = vld [vmem:[#allocation2 + $0x168] sm:$0xfc]
      %v1555 = vld [vmem:[#allocation2 + $0x1b0] sm:$0x1]
      %v1556 = vld [vmem:[#allocation2 + $0x150] sm:$0xf8]
      %v1557 = vld [vmem:[#allocation2 + $0x198] sm:$0x3]
      %v1560 = vrot.slane %v1556, 1
      %v1561 = vrot.slane %v1557, 1
      %v1562 = vsel %vm1267, %v1560, %v1561
      %v1565 = vadd.f32 %v1554, %v1562
      %v1566 = vadd.f32 %v1555, %v1561
      %1567 = vst [vmem:[#allocation3 - $0x2] sm:$0xfc] %v1565
      %1568 = vst [vmem:[#allocation3 + $0x6] sm:$0x1] %v1566
      %v1569 = vld [vmem:[#allocation2 + $0x170] sm:$0xfc]
      %v1570 = vld [vmem:[#allocation2 + $0x1b8] sm:$0x1]
      %v1571 = vld [vmem:[#allocation2 + $0x158] sm:$0xf8]
      %v1572 = vld [vmem:[#allocation2 + $0x1a0] sm:$0x3]
      %v1575 = vrot.slane %v1571, 1
      %v1576 = vrot.slane %v1572, 1
      %v1577 = vsel %vm1267, %v1575, %v1576
      %v1580 = vadd.f32 %v1569, %v1577
      %v1581 = vadd.f32 %v1570, %v1576
      %1582 = vst [vmem:[%s1177 - $0x2] sm:$0xfc] %v1580
      %1583 = vst [vmem:[%s1177 + $0x6] sm:$0x1] %v1581
      %v1584 = vld [vmem:[#allocation2 + $0x178] sm:$0xfc]
      %v1585 = vld [vmem:[#allocation2 + $0x1c0] sm:$0x1]
      %v1586 = vld [vmem:[#allocation2 + $0x160] sm:$0xf8]
      %v1587 = vld [vmem:[#allocation2 + $0x1a8] sm:$0x3]
      %v1590 = vrot.slane %v1586, 1
      %v1591 = vrot.slane %v1587, 1
      %v1592 = vsel %vm1267, %v1590, %v1591
      %v1595 = vadd.f32 %v1584, %v1592
      %v1596 = vadd.f32 %v1585, %v1591
      %1597 = vst [vmem:[%s1180 - $0x1] sm:$0xfc] %v1595
      %1598 = vst [vmem:[%s1180 + $0x7] sm:$0x1] %v1596
      %v1599 = vld [vmem:[#allocation3] sm:$0xff]
      %v1600 = vld [vmem:[%s1180] sm:$0xff]
      %v1601 = vadd.f32 %v1599, %v1600
      %v1602 = vld [vmem:[%s1177] sm:$0x7f]
      %s1603 = scalar_lea.vmem [#allocation4], 180
      %1604 = vst [vmem:[%s1603] ss:$2 sm:$0xff] %v1601
      %s1605 = scalar_lea.vmem [#allocation4], 181
      %1606 = vst [vmem:[%s1605] ss:$2 sm:$0x7f] %v1602
      %v1607 = vld [vmem:[#allocation2 + $0x180] sm:$0xfc]
      %v1608 = vld [vmem:[#allocation2 + $0x1c8] sm:$0x1]
      %1609 = vst [vmem:[#allocation3 - $0x2] sm:$0xfc] %v1607
      %1610 = vst [vmem:[#allocation3 + $0x6] sm:$0x1] %v1608
      %v1611 = vld [vmem:[#allocation2 + $0x188] sm:$0xfc]
      %v1612 = vld [vmem:[#allocation2 + $0x1d0] sm:$0x1]
      %1613 = vst [vmem:[%s1177 - $0x2] sm:$0xfc] %v1611
      %1614 = vst [vmem:[%s1177 + $0x6] sm:$0x1] %v1612
      %v1615 = vld [vmem:[#allocation2 + $0x190] sm:$0xfc]
      %v1616 = vld [vmem:[#allocation2 + $0x1d8] sm:$0x1]
      %1617 = vst [vmem:[%s1180 - $0x1] sm:$0xfc] %v1615
      %1618 = vst [vmem:[%s1180 + $0x7] sm:$0x1] %v1616
      %v1619 = vld [vmem:[#allocation3] sm:$0xff]
      %v1620 = vld [vmem:[%s1180] sm:$0xff]
      %v1621 = vadd.f32 %v1619, %v1620
      %v1622 = vld [vmem:[%s1177] sm:$0x7f]
      %s1623 = scalar_lea.vmem [#allocation4], 195
      %1624 = vst [vmem:[%s1623] ss:$2 sm:$0xff] %v1621
      %s1625 = scalar_lea.vmem [#allocation4], 196
      %1626 = vst [vmem:[%s1625] ss:$2 sm:$0x7f] %v1622
      %v1627 = vld [vmem:[#allocation2 + $0x198] sm:$0xfc]
      %v1628 = vld [vmem:[#allocation2 + $0x1e0] sm:$0x1]
      %1629 = vst [vmem:[#allocation3 - $0x2] sm:$0xfc] %v1627
      %1630 = vst [vmem:[#allocation3 + $0x6] sm:$0x1] %v1628
      %v1631 = vld [vmem:[#allocation2 + $0x1a0] sm:$0xfc]
      %v1632 = vld [vmem:[#allocation2 + $0x1e8] sm:$0x1]
      %1633 = vst [vmem:[%s1177 - $0x2] sm:$0xfc] %v1631
      %1634 = vst [vmem:[%s1177 + $0x6] sm:$0x1] %v1632
      %v1635 = vld [vmem:[#allocation2 + $0x1a8] sm:$0xfc]
      %v1636 = vld [vmem:[#allocation2 + $0x1f0] sm:$0x1]
      %1637 = vst [vmem:[%s1180 - $0x1] sm:$0xfc] %v1635
      %1638 = vst [vmem:[%s1180 + $0x7] sm:$0x1] %v1636
      %v1639 = vld [vmem:[#allocation3] sm:$0xff]
      %v1640 = vld [vmem:[%s1180] sm:$0xff]
      %v1641 = vadd.f32 %v1639, %v1640
      %v1642 = vld [vmem:[%s1177] sm:$0x7f]
      %s1643 = scalar_lea.vmem [#allocation4], 210
      %1644 = vst [vmem:[%s1643] ss:$2 sm:$0xff] %v1641
      %s1645 = scalar_lea.vmem [#allocation4], 211
      %1646 = vst [vmem:[%s1645] ss:$2 sm:$0x7f] %v1642
      %v1647 = vld [vmem:[#allocation4] sm:$0xff]
      %v1648 = vld [vmem:[#allocation4 + $0x8] sm:$0xff]
      %v1649 = vld [vmem:[#allocation4 + $0x10] sm:$0xff]
      %v1650 = vld [vmem:[#allocation4 + $0x18] sm:$0xff]
      %v1651 = vld [vmem:[#allocation4 + $0x20] sm:$0xff]
      %v1652 = vld [vmem:[#allocation4 + $0x28] sm:$0xff]
      %v1653 = vld [vmem:[#allocation4 + $0x30] sm:$0xff]
      %v1654 = vld [vmem:[#allocation4 + $0x38] sm:$0xff]
      %v1655 = vld [vmem:[#allocation4 + $0x40] sm:$0xff]
      %v1656 = vld [vmem:[#allocation4 + $0x48] sm:$0xff]
      %v1657 = vld [vmem:[#allocation4 + $0x50] sm:$0xff]
      %v1658 = vld [vmem:[#allocation4 + $0x58] sm:$0xff]
      %v1659 = vld [vmem:[#allocation4 + $0x60] sm:$0xff]
      %v1660 = vld [vmem:[#allocation4 + $0x68] sm:$0xff]
      %v1661 = vld [vmem:[#allocation4 + $0x70] sm:$0xff]
      %v1662 = vld [vmem:[#allocation4 + $0x78] sm:$0xff]
      %v1663 = vld [vmem:[#allocation4 + $0x80] sm:$0xff]
      %v1664 = vld [vmem:[#allocation4 + $0x88] sm:$0xff]
      %v1665 = vld [vmem:[#allocation4 + $0x90] sm:$0xff]
      %v1666 = vld [vmem:[#allocation4 + $0x98] sm:$0xff]
      %v1667 = vld [vmem:[#allocation4 + $0xa0] sm:$0xff]
      %v1668 = vld [vmem:[#allocation4 + $0xa8] sm:$0xff]
      %v1669 = vld [vmem:[#allocation4 + $0xb0] sm:$0xff]
      %v1670 = vld [vmem:[#allocation4 + $0xb8] sm:$0xff]
      %v1671 = vld [vmem:[#allocation4 + $0xc0] sm:$0xff]
      %v1672 = vld [vmem:[#allocation4 + $0xc8] sm:$0xff]
      %v1673 = vld [vmem:[#allocation4 + $0xd0] sm:$0xff]
      %v1674 = vld [vmem:[#allocation4 + $0xd8] sm:$0xff]
      %v1675 = vld [vmem:[#allocation4 + $0xe0] sm:$0x1]
      %v1676 = vadd.f32 %v1647, %v1648
      %v1677 = vadd.f32 %v1676, %v1649
      %v1678 = vadd.f32 %v1677, %v1650
      %v1679 = vadd.f32 %v1678, %v1651
      %v1680 = vadd.f32 %v1679, %v1652
      %v1681 = vadd.f32 %v1680, %v1653
      %v1682 = vadd.f32 %v1681, %v1654
      %v1683 = vadd.f32 %v1682, %v1655
      %v1684 = vadd.f32 %v1683, %v1656
      %v1685 = vadd.f32 %v1684, %v1657
      %v1686 = vadd.f32 %v1685, %v1658
      %v1687 = vadd.f32 %v1686, %v1659
      %v1688 = vadd.f32 %v1687, %v1660
      %v1689 = vadd.f32 %v1688, %v1661
      %v1690 = vadd.f32 %v1689, %v1662
      %v1691 = vadd.f32 %v1690, %v1663
      %v1692 = vadd.f32 %v1691, %v1664
      %v1693 = vadd.f32 %v1692, %v1665
      %v1694 = vadd.f32 %v1693, %v1666
      %v1695 = vadd.f32 %v1694, %v1667
      %v1696 = vadd.f32 %v1695, %v1668
      %v1697 = vadd.f32 %v1696, %v1669
      %v1698 = vadd.f32 %v1697, %v1670
      %v1699 = vadd.f32 %v1698, %v1671
      %v1700 = vadd.f32 %v1699, %v1672
      %v1701 = vadd.f32 %v1700, %v1673
      %v1702 = vadd.f32 %v1701, %v1674
      %vm1703 = vcmask 1040384
      %v1704 = vsel %vm1703, %v1675, 0.0
      %v1705 = vadd.f32 %v1702, %v1704
      %v1706 = vrot.slane %v1705, 4
      %v1707 = vadd.f32 %v1705, %v1706
      %v1708 = vrot.slane %v1707, 2
      %v1709 = vadd.f32 %v1707, %v1708
      %v1710 = vrot.slane %v1709, 1
      %v1711 = vadd.f32 %v1709, %v1710
      %v1712 = vmul.f32 %v1647, %v1647
      %v1713 = vmul.f32 %v1648, %v1648
      %v1714 = vmul.f32 %v1649, %v1649
      %v1715 = vmul.f32 %v1650, %v1650
      %v1716 = vmul.f32 %v1651, %v1651
      %v1717 = vmul.f32 %v1652, %v1652
      %v1718 = vmul.f32 %v1653, %v1653
      %v1719 = vmul.f32 %v1654, %v1654
      %v1720 = vmul.f32 %v1655, %v1655
      %v1721 = vmul.f32 %v1656, %v1656
      %v1722 = vmul.f32 %v1657, %v1657
      %v1723 = vmul.f32 %v1658, %v1658
      %v1724 = vmul.f32 %v1659, %v1659
      %v1725 = vmul.f32 %v1660, %v1660
      %v1726 = vmul.f32 %v1661, %v1661
      %v1727 = vmul.f32 %v1662, %v1662
      %v1728 = vmul.f32 %v1663, %v1663
      %v1729 = vmul.f32 %v1664, %v1664
      %v1730 = vmul.f32 %v1665, %v1665
      %v1731 = vmul.f32 %v1666, %v1666
      %v1732 = vmul.f32 %v1667, %v1667
      %v1733 = vmul.f32 %v1668, %v1668
      %v1734 = vmul.f32 %v1669, %v1669
      %v1735 = vmul.f32 %v1670, %v1670
      %v1736 = vmul.f32 %v1671, %v1671
      %v1737 = vmul.f32 %v1672, %v1672
      %v1738 = vmul.f32 %v1673, %v1673
      %v1739 = vmul.f32 %v1674, %v1674
      %v1740 = vmul.f32 %v1675, %v1675
      %v1741 = vadd.f32 %v1712, %v1713
      %v1742 = vadd.f32 %v1741, %v1714
      %v1743 = vadd.f32 %v1742, %v1715
      %v1744 = vadd.f32 %v1743, %v1716
      %v1745 = vadd.f32 %v1744, %v1717
      %v1746 = vadd.f32 %v1745, %v1718
      %v1747 = vadd.f32 %v1746, %v1719
      %v1748 = vadd.f32 %v1747, %v1720
      %v1749 = vadd.f32 %v1748, %v1721
      %v1750 = vadd.f32 %v1749, %v1722
      %v1751 = vadd.f32 %v1750, %v1723
      %v1752 = vadd.f32 %v1751, %v1724
      %v1753 = vadd.f32 %v1752, %v1725
      %v1754 = vadd.f32 %v1753, %v1726
      %v1755 = vadd.f32 %v1754, %v1727
      %v1756 = vadd.f32 %v1755, %v1728
      %v1757 = vadd.f32 %v1756, %v1729
      %v1758 = vadd.f32 %v1757, %v1730
      %v1759 = vadd.f32 %v1758, %v1731
      %v1760 = vadd.f32 %v1759, %v1732
      %v1761 = vadd.f32 %v1760, %v1733
      %v1762 = vadd.f32 %v1761, %v1734
      %v1763 = vadd.f32 %v1762, %v1735
      %v1764 = vadd.f32 %v1763, %v1736
      %v1765 = vadd.f32 %v1764, %v1737
      %v1766 = vadd.f32 %v1765, %v1738
      %v1767 = vadd.f32 %v1766, %v1739
      %v1768 = vsel %vm1703, %v1740, 0.0
      %v1769 = vadd.f32 %v1767, %v1768
      %v1770 = vrot.slane %v1769, 4
      %v1771 = vadd.f32 %v1769, %v1770
      %v1772 = vrot.slane %v1771, 2
      %v1773 = vadd.f32 %v1771, %v1772
      %v1774 = vrot.slane %v1773, 1
      %v1775 = vadd.f32 %v1773, %v1774
      %v1776 = vmul.f32 %v1711, 0.0044444446
      %v1777 = vmul.f32 %v1775, 0.0044444446
      %v1778 = vmul.f32 %v1776, %v1776
      %v1779 = vsub.f32 %v1777, %v1778
      %v1780 = vadd.f32 %v1779, 1e-05
      %v1781 = vrsqrt.pop %v1780
      %v1782 = vsub.f32 %v1647, %v1776
      %v1783 = vsub.f32 %v1648, %v1776
      %v1784 = vsub.f32 %v1649, %v1776
      %v1785 = vsub.f32 %v1650, %v1776
      %v1786 = vsub.f32 %v1651, %v1776
      %v1787 = vsub.f32 %v1652, %v1776
      %v1788 = vsub.f32 %v1653, %v1776
      %v1789 = vsub.f32 %v1654, %v1776
      %v1790 = vsub.f32 %v1655, %v1776
      %v1791 = vsub.f32 %v1656, %v1776
      %v1792 = vsub.f32 %v1657, %v1776
      %v1793 = vsub.f32 %v1658, %v1776
      %v1794 = vsub.f32 %v1659, %v1776
      %v1795 = vsub.f32 %v1660, %v1776
      %v1796 = vsub.f32 %v1661, %v1776
      %v1797 = vsub.f32 %v1662, %v1776
      %v1798 = vsub.f32 %v1663, %v1776
      %v1799 = vsub.f32 %v1664, %v1776
      %v1800 = vsub.f32 %v1665, %v1776
      %v1801 = vsub.f32 %v1666, %v1776
      %v1802 = vsub.f32 %v1667, %v1776
      %v1803 = vsub.f32 %v1668, %v1776
      %v1804 = vsub.f32 %v1669, %v1776
      %v1805 = vsub.f32 %v1670, %v1776
      %v1806 = vsub.f32 %v1671, %v1776
      %v1807 = vsub.f32 %v1672, %v1776
      %v1808 = vsub.f32 %v1673, %v1776
      %v1809 = vsub.f32 %v1674, %v1776
      %v1810 = vsub.f32 %v1675, %v1776
      %v1811 = vmul.f32 %v1782, %v1781
      %v1812 = vmul.f32 %v1783, %v1781
      %v1813 = vmul.f32 %v1784, %v1781
      %v1814 = vmul.f32 %v1785, %v1781
      %v1815 = vmul.f32 %v1786, %v1781
      %v1816 = vmul.f32 %v1787, %v1781
      %v1817 = vmul.f32 %v1788, %v1781
      %v1818 = vmul.f32 %v1789, %v1781
      %v1819 = vmul.f32 %v1790, %v1781
      %v1820 = vmul.f32 %v1791, %v1781
      %v1821 = vmul.f32 %v1792, %v1781
      %v1822 = vmul.f32 %v1793, %v1781
      %v1823 = vmul.f32 %v1794, %v1781
      %v1824 = vmul.f32 %v1795, %v1781
      %v1825 = vmul.f32 %v1796, %v1781
      %v1826 = vmul.f32 %v1797, %v1781
      %v1827 = vmul.f32 %v1798, %v1781
      %v1828 = vmul.f32 %v1799, %v1781
      %v1829 = vmul.f32 %v1800, %v1781
      %v1830 = vmul.f32 %v1801, %v1781
      %v1831 = vmul.f32 %v1802, %v1781
      %v1832 = vmul.f32 %v1803, %v1781
      %v1833 = vmul.f32 %v1804, %v1781
      %v1834 = vmul.f32 %v1805, %v1781
      %v1835 = vmul.f32 %v1806, %v1781
      %v1836 = vmul.f32 %v1807, %v1781
      %v1837 = vmul.f32 %v1808, %v1781
      %v1838 = vmul.f32 %v1809, %v1781
      %v1839 = vmul.f32 %v1810, %v1781
      %v1840 = vmax.f32 %v1811, 0.0
      %v1841 = vmax.f32 %v1812, 0.0
      %v1842 = vmax.f32 %v1813, 0.0
      %v1843 = vmax.f32 %v1814, 0.0
      %v1844 = vmax.f32 %v1815, 0.0
      %v1845 = vmax.f32 %v1816, 0.0
      %v1846 = vmax.f32 %v1817, 0.0
      %v1847 = vmax.f32 %v1818, 0.0
      %v1848 = vmax.f32 %v1819, 0.0
      %v1849 = vmax.f32 %v1820, 0.0
      %v1850 = vmax.f32 %v1821, 0.0
      %v1851 = vmax.f32 %v1822, 0.0
      %v1852 = vmax.f32 %v1823, 0.0
      %v1853 = vmax.f32 %v1824, 0.0
      %v1854 = vmax.f32 %v1825, 0.0
      %v1855 = vmax.f32 %v1826, 0.0
      %v1856 = vmax.f32 %v1827, 0.0
      %v1857 = vmax.f32 %v1828, 0.0
      %v1858 = vmax.f32 %v1829, 0.0
      %v1859 = vmax.f32 %v1830, 0.0
      %v1860 = vmax.f32 %v1831, 0.0
      %v1861 = vmax.f32 %v1832, 0.0
      %v1862 = vmax.f32 %v1833, 0.0
      %v1863 = vmax.f32 %v1834, 0.0
      %v1864 = vmax.f32 %v1835, 0.0
      %v1865 = vmax.f32 %v1836, 0.0
      %v1866 = vmax.f32 %v1837, 0.0
      %v1867 = vmax.f32 %v1838, 0.0
      %v1868 = vmax.f32 %v1839, 0.0
      %v1869 = vpack.c.bf16 %v1841, %v1840
      %v1870 = vpack.c.bf16 %v1843, %v1842
      %v1871 = vpack.c.bf16 %v1845, %v1844
      %v1872 = vpack.c.bf16 %v1847, %v1846
      %v1873 = vpack.c.bf16 %v1849, %v1848
      %v1874 = vpack.c.bf16 %v1851, %v1850
      %v1875 = vpack.c.bf16 %v1853, %v1852
      %v1876 = vpack.c.bf16 %v1855, %v1854
      %v1877 = vpack.c.bf16 %v1857, %v1856
      %v1878 = vpack.c.bf16 %v1859, %v1858
      %v1879 = vpack.c.bf16 %v1861, %v1860
      %v1880 = vpack.c.bf16 %v1863, %v1862
      %v1881 = vpack.c.bf16 %v1865, %v1864
      %v1882 = vpack.c.bf16 %v1867, %v1866
      %v1883 = vpack.c.bf16 %v1868, %v1868
      %v1899 = vunpack.c.l.b16 %v1869
      %v1900 = vunpack.c.h.b16 %v1869
      %v1901 = vunpack.c.l.b16 %v1870
      %v1902 = vunpack.c.h.b16 %v1870
      %v1903 = vunpack.c.l.b16 %v1871
      %v1904 = vunpack.c.h.b16 %v1871
      %v1905 = vunpack.c.l.b16 %v1872
      %v1906 = vunpack.c.h.b16 %v1872
      %v1907 = vunpack.c.l.b16 %v1873
      %v1908 = vunpack.c.h.b16 %v1873
      %v1909 = vunpack.c.l.b16 %v1874
      %v1910 = vunpack.c.h.b16 %v1874
      %v1911 = vunpack.c.l.b16 %v1875
      %v1912 = vunpack.c.h.b16 %v1875
      %v1913 = vunpack.c.l.b16 %v1876
      %v1914 = vunpack.c.h.b16 %v1876
      %v1915 = vunpack.c.l.b16 %v1877
      %v1916 = vunpack.c.h.b16 %v1877
      %v1917 = vunpack.c.l.b16 %v1878
      %v1918 = vunpack.c.h.b16 %v1878
      %v1919 = vunpack.c.l.b16 %v1879
      %v1920 = vunpack.c.h.b16 %v1879
      %v1921 = vunpack.c.l.b16 %v1880
      %v1922 = vunpack.c.h.b16 %v1880
      %v1923 = vunpack.c.l.b16 %v1881
      %v1924 = vunpack.c.h.b16 %v1881
      %v1925 = vunpack.c.l.b16 %v1882
      %v1926 = vunpack.c.h.b16 %v1882
      %v1927 = vunpack.c.l.b16 %v1883
      %v1928 = vpack.c.b16 %v1899, %v1899
      %v1929 = vpack.c.b16 %v1900, %v1900
      %v1930 = vpack.c.b16 %v1901, %v1901
      %v1931 = vpack.c.b16 %v1902, %v1902
      %v1932 = vpack.c.b16 %v1903, %v1903
      %v1933 = vpack.c.b16 %v1904, %v1904
      %v1934 = vpack.c.b16 %v1905, %v1905
      %v1935 = vpack.c.b16 %v1906, %v1906
      %v1936 = vpack.c.b16 %v1907, %v1907
      %v1937 = vpack.c.b16 %v1908, %v1908
      %v1938 = vpack.c.b16 %v1909, %v1909
      %v1939 = vpack.c.b16 %v1910, %v1910
      %v1940 = vpack.c.b16 %v1911, %v1911
      %v1941 = vpack.c.b16 %v1912, %v1912
      %v1942 = vpack.c.b16 %v1913, %v1913
      %v1943 = vpack.c.b16 %v1914, %v1914
      %v1944 = vpack.c.b16 %v1915, %v1915
      %v1945 = vpack.c.b16 %v1916, %v1916
      %v1946 = vpack.c.b16 %v1917, %v1917
      %v1947 = vpack.c.b16 %v1918, %v1918
      %v1948 = vpack.c.b16 %v1919, %v1919
      %v1949 = vpack.c.b16 %v1920, %v1920
      %v1950 = vpack.c.b16 %v1921, %v1921
      %v1951 = vpack.c.b16 %v1922, %v1922
      %v1952 = vpack.c.b16 %v1923, %v1923
      %v1953 = vpack.c.b16 %v1924, %v1924
      %v1954 = vpack.c.b16 %v1925, %v1925
      %v1955 = vpack.c.b16 %v1926, %v1926
      %v1956 = vpack.c.b16 %v1927, %v1927
      %1986 = vst [vmem:[%s190] sm:$0xf] %v1928
      %1987 = vst [vmem:[%s190 + $0x8] sm:$0xf] %v1929
      %1988 = vst [vmem:[%s190 + $0x10] sm:$0xf] %v1930
      %1989 = vst [vmem:[%s190 + $0x18] sm:$0xf] %v1931
      %1990 = vst [vmem:[%s190 + $0x20] sm:$0xf] %v1932
      %1991 = vst [vmem:[%s190 + $0x28] sm:$0xf] %v1933
      %1992 = vst [vmem:[%s190 + $0x30] sm:$0xf] %v1934
      %1993 = vst [vmem:[%s190 + $0x38] sm:$0xf] %v1935
      %1994 = vst [vmem:[%s190 + $0x40] sm:$0xf] %v1936
      %1995 = vst [vmem:[%s190 + $0x48] sm:$0xf] %v1937
      %1996 = vst [vmem:[%s190 + $0x50] sm:$0xf] %v1938
      %1997 = vst [vmem:[%s190 + $0x58] sm:$0xf] %v1939
      %1998 = vst [vmem:[%s190 + $0x60] sm:$0xf] %v1940
      %1999 = vst [vmem:[%s190 + $0x68] sm:$0xf] %v1941
      %2000 = vst [vmem:[%s190 + $0x70] sm:$0xf] %v1942
      %2001 = vst [vmem:[%s190 + $0x78] sm:$0xf] %v1943
      %2002 = vst [vmem:[%s190 + $0x80] sm:$0xf] %v1944
      %2003 = vst [vmem:[%s190 + $0x88] sm:$0xf] %v1945
      %2004 = vst [vmem:[%s190 + $0x90] sm:$0xf] %v1946
      %2005 = vst [vmem:[%s190 + $0x98] sm:$0xf] %v1947
      %2006 = vst [vmem:[%s190 + $0xa0] sm:$0xf] %v1948
      %2007 = vst [vmem:[%s190 + $0xa8] sm:$0xf] %v1949
      %2008 = vst [vmem:[%s190 + $0xb0] sm:$0xf] %v1950
      %2009 = vst [vmem:[%s190 + $0xb8] sm:$0xf] %v1951
      %2010 = vst [vmem:[%s190 + $0xc0] sm:$0xf] %v1952
      %2011 = vst [vmem:[%s190 + $0xc8] sm:$0xf] %v1953
      %2012 = vst [vmem:[%s190 + $0xd0] sm:$0xf] %v1954
      %2013 = vst [vmem:[%s190 + $0xd8] sm:$0xf] %v1955
      %vm2014 = vcmask 1040384
      %vm2015 = vsmask.f32 256
      %vm2016 = vmand %vm2014, %vm2015
      %v2017 = vld [vmem:[%s190 + $0xe0] sm:$0x1]
      %v2018 = vsel %vm2016, %v1956, %v2017
      %2019 = vst [vmem:[%s190 + $0xe0] sm:$0x1] %v2018
      %v2020 = vld [vmem:[%s185] sm:$0xf]
      %v2021 = vld [vmem:[%s185 + $0x4] sm:$0xf]
      %v2022 = vld [vmem:[%s185 + $0x8] sm:$0xf]
      %v2023 = vld [vmem:[%s185 + $0xc] sm:$0xf]
      %v2024 = vld [vmem:[%s185 + $0x10] sm:$0xf]
      %v2025 = vld [vmem:[%s185 + $0x14] sm:$0xf]
      %v2026 = vld [vmem:[%s185 + $0x18] sm:$0xf]
      %v2027 = vld [vmem:[%s185 + $0x1c] sm:$0xf]
      %v2028 = vld [vmem:[%s185 + $0x20] sm:$0xf]
      %v2029 = vld [vmem:[%s185 + $0x24] sm:$0xf]
      %v2030 = vld [vmem:[%s185 + $0x28] sm:$0xf]
      %v2031 = vld [vmem:[%s185 + $0x2c] sm:$0xf]
      %v2032 = vld [vmem:[%s185 + $0x30] sm:$0xf]
      %v2033 = vld [vmem:[%s185 + $0x34] sm:$0xf]
      %v2034 = vld [vmem:[%s185 + $0x38] sm:$0xf]
      %v2035 = vld [vmem:[%s185 + $0x3c] sm:$0xf]
      %v2036 = vld [vmem:[%s185 + $0x40] sm:$0xf]
      %v2037 = vld [vmem:[%s185 + $0x44] sm:$0xf]
      %v2038 = vld [vmem:[%s185 + $0x48] sm:$0xf]
      %v2039 = vld [vmem:[%s185 + $0x4c] sm:$0xf]
      %v2040 = vld [vmem:[%s185 + $0x50] sm:$0xf]
      %v2041 = vld [vmem:[%s185 + $0x54] sm:$0xf]
      %v2042 = vld [vmem:[%s185 + $0x58] sm:$0xf]
      %v2043 = vld [vmem:[%s185 + $0x5c] sm:$0xf]
      %v2044 = vld [vmem:[%s185 + $0x60] sm:$0xf]
      %v2045 = vld [vmem:[%s185 + $0x64] sm:$0xf]
      %v2046 = vld [vmem:[%s185 + $0x68] sm:$0xf]
      %v2047 = vld [vmem:[%s185 + $0x6c] sm:$0xf]
      %v2048 = vld [vmem:[%s185 + $0x70] sm:$0x1]
      %2049 = vst [vmem:[%s190 + $0x4] sm:$0xf] %v2020
      %2050 = vst [vmem:[%s190 + $0xc] sm:$0xf] %v2021
      %2051 = vst [vmem:[%s190 + $0x14] sm:$0xf] %v2022
      %2052 = vst [vmem:[%s190 + $0x1c] sm:$0xf] %v2023
      %2053 = vst [vmem:[%s190 + $0x24] sm:$0xf] %v2024
      %2054 = vst [vmem:[%s190 + $0x2c] sm:$0xf] %v2025
      %2055 = vst [vmem:[%s190 + $0x34] sm:$0xf] %v2026
      %2056 = vst [vmem:[%s190 + $0x3c] sm:$0xf] %v2027
      %2057 = vst [vmem:[%s190 + $0x44] sm:$0xf] %v2028
      %2058 = vst [vmem:[%s190 + $0x4c] sm:$0xf] %v2029
      %2059 = vst [vmem:[%s190 + $0x54] sm:$0xf] %v2030
      %2060 = vst [vmem:[%s190 + $0x5c] sm:$0xf] %v2031
      %2061 = vst [vmem:[%s190 + $0x64] sm:$0xf] %v2032
      %2062 = vst [vmem:[%s190 + $0x6c] sm:$0xf] %v2033
      %2063 = vst [vmem:[%s190 + $0x74] sm:$0xf] %v2034
      %2064 = vst [vmem:[%s190 + $0x7c] sm:$0xf] %v2035
      %2065 = vst [vmem:[%s190 + $0x84] sm:$0xf] %v2036
      %2066 = vst [vmem:[%s190 + $0x8c] sm:$0xf] %v2037
      %2067 = vst [vmem:[%s190 + $0x94] sm:$0xf] %v2038
      %2068 = vst [vmem:[%s190 + $0x9c] sm:$0xf] %v2039
      %2069 = vst [vmem:[%s190 + $0xa4] sm:$0xf] %v2040
      %2070 = vst [vmem:[%s190 + $0xac] sm:$0xf] %v2041
      %2071 = vst [vmem:[%s190 + $0xb4] sm:$0xf] %v2042
      %2072 = vst [vmem:[%s190 + $0xbc] sm:$0xf] %v2043
      %2073 = vst [vmem:[%s190 + $0xc4] sm:$0xf] %v2044
      %2074 = vst [vmem:[%s190 + $0xcc] sm:$0xf] %v2045
      %2075 = vst [vmem:[%s190 + $0xd4] sm:$0xf] %v2046
      %2076 = vst [vmem:[%s190 + $0xdc] sm:$0xf] %v2047
      %v2077 = vld [vmem:[%s190 + $0xe4] sm:$0x1]
      %v2078 = vsel %vm2016, %v2048, %v2077
      %2079 = vst [vmem:[%s190 + $0xe4] sm:$0x1] %v2078
      %p2080 = scmp.lt.s32.totalorder %s14, 1
      %s2081 = scalar_select %p2080, %s14, 1
      %s2082 = smul.addr %s2081, 58
      %s2083 = smul.addr %s2082, 4
      %s2084 = scalar_lea.vmem %s3, %s2083
      // Predicated region
      $region33: #{unet_up_forward.1} parent=31 // pred_check
        %p2085 = pneg %p105
      $region34: #{unet_up_forward.1} parent=31 // pred_check_branch
        %2087 = sbr.rel (%p2085) target = $region36
      $region35: #{unet_up_forward.1} parent=31 // pred_region
        _
      $region36: #{unet_up_forward.1} parent=31 // pred_fallthru
        _
    $region32: #{unet_up_forward.1} parent=5 // pred_fallthru
      _
    %p2088 = scmp.le.s32.totalorder 2, %s9
    // Predicated region
    $region37: #{unet_up_forward.1} parent=5 // pred_check
      %p2089 = pneg %p2088
    $region38: #{unet_up_forward.1} parent=5 // pred_check_branch
      %2091 = sbr.rel (%p2089) target = $region40
    $region39: #{unet_up_forward.1} parent=5 // pred_region
      %s2092 = ssub.s32 %s9, 2
      // Predicated region
      $region41: #{unet_up_forward.1} parent=39 // pred_check
        %p2093 = pneg %p111
      $region42: #{unet_up_forward.1} parent=39 // pred_check_branch
        %2095 = sbr.rel (%p2093) target = $region44
      $region43: #{unet_up_forward.1} parent=39 // pred_region
        %p2096 = scmp.lt.s32.totalorder %s15, 1
        %s2097 = scalar_select %p2096, %s15, 1
        %s2098 = smul.addr %s2097, 58
        %s2099 = smul.addr %s2098, 4
        %s2100 = scalar_lea.vmem %s3, %s2099
      $region44: #{unet_up_forward.1} parent=39 // pred_fallthru
        _
    $region40: #{unet_up_forward.1} parent=5 // pred_fallthru
      _
  $region6: #{unet_up_forward.1} parent=0 // loop_footer
    %s13 = sadd.s32 1, %s9
  $region7: #{unet_up_forward.1} parent=0 // loop_footer_branch
    %8 = sbr.rel target = $region3
  $region8: #{unet_up_forward.1} parent=0 // loop_exit
    _

</llo_original>
